<compile_context>
chip_gen: v7x
topology: tpu7x:2x2x1
jax: 0.10.0
libtpu: 0.0.40
codegen_flags: <defaults>
</compile_context>

<pallas_src>
import functools

import jax
import jax.numpy as jnp
from jax import lax
from jax.experimental import pallas as pl
from jax.experimental.pallas import tpu as pltpu

EPS = 1e-5


# ---------------------------------------------------------------------------
# Kernels
# ---------------------------------------------------------------------------

def _partial_sums(y):
    """Per-tile BN partial sums: rows [sum(y), sum(y*y)] reduced over axis 0."""
    s = jnp.sum(y, axis=0, keepdims=True)
    ss = jnp.sum(y * y, axis=0, keepdims=True)
    return jnp.concatenate([s, ss], axis=0)          # (2, C)


def conv1x1_kernel(x_ref, w_ref, y_ref, ps_ref):
    """conv1 (1x1) as a channel matmul on a (TM, Cin) row tile + BN1 psums."""
    y = jnp.dot(x_ref[...].astype(jnp.bfloat16), w_ref[...],
                preferred_element_type=jnp.float32)
    y_ref[...] = y
    ps_ref[...] = _partial_sums(y)


def bn_relu_conv1x1_kernel(x_ref, w_ref, scale_ref, shift_ref, y_ref, ps_ref):
    """bn(prev, precomputed scale/shift) + relu fused with a 1x1 conv."""
    a = jnp.maximum(x_ref[...] * scale_ref[...] + shift_ref[...], 0.0)
    y = jnp.dot(a.astype(jnp.bfloat16), w_ref[...],
                preferred_element_type=jnp.float32)
    y_ref[...] = y
    ps_ref[...] = _partial_sums(y)


def bn_relu_conv3x3_kernel(x_ref, w_ref, scale_ref, shift_ref, y_ref, ps_ref,
                           pad_ref):
    """bn1 + relu fused with the 3x3 conv (stride 1, pad 1) for one image.

    The 9 taps are concatenated channel-wise so the whole convolution is a
    single deep matmul: (H*W, 9*C) @ (9*C, C) on the MXU.
    """
    H, W, C = x_ref.shape
    a = jnp.maximum(x_ref[...] * scale_ref[...] + shift_ref[...], 0.0)  # (H,W,C)

    # Halo-only zeroing: the interior is fully overwritten right after.
    pad_ref[0:1, :, :] = jnp.zeros((1, W + 2, C), jnp.float32)
    pad_ref[H + 1:H + 2, :, :] = jnp.zeros((1, W + 2, C), jnp.float32)
    pad_ref[1:H + 1, 0:1, :] = jnp.zeros((H, 1, C), jnp.float32)
    pad_ref[1:H + 1, W + 1:W + 2, :] = jnp.zeros((H, 1, C), jnp.float32)
    pad_ref[1:H + 1, 1:W + 1, :] = a

    taps = [pad_ref[kh:kh + H, kw:kw + W, :]
            for kh in range(3) for kw in range(3)]                      # tap kh*3+kw
    patches = jnp.concatenate(taps, axis=-1).reshape(H * W, 9 * C)
    y = jnp.dot(patches.astype(jnp.bfloat16), w_ref[...],
                preferred_element_type=jnp.float32)                     # (H*W, C)
    ps_ref[...] = _partial_sums(y)
    y_ref[...] = y.reshape(H, W, C)


def bn_add_relu_kernel(y_ref, x_ref, scale_ref, shift_ref, o_ref):
    """bn3 + identity residual + relu on a lane-dense (rows, W*Cout) tile."""
    o_ref[...] = jnp.maximum(
        y_ref[...] * scale_ref[...] + shift_ref[...] + x_ref[...], 0.0)


# ---------------------------------------------------------------------------
# Host-side helpers
# ---------------------------------------------------------------------------

def _bn_scale_shift(psums, count, gamma, beta):
    """Fold global batch statistics + affine params into per-channel scale/shift.

    psums: (num_tiles, 2, C) stacked per-tile [sum, sum_sq] partial sums.
    Returns (1, C) scale/shift so that bn(y) == y * scale + shift.
    """
    total = jnp.sum(psums[:, 0, :], axis=0)
    total_sq = jnp.sum(psums[:, 1, :], axis=0)
    mean = total / count
    var = jnp.maximum(total_sq / count - mean * mean, 0.0)   # biased (training mode)
    scale = gamma.reshape(-1) * lax.rsqrt(var + EPS)
    shift = beta.reshape(-1) - mean * scale
    return scale.reshape(1, -1), shift.reshape(1, -1)


def _row_tile(total_rows, row_elems, block_bytes, elem_bytes=4):
    """Largest multiple-of-8 divisor of total_rows whose f32 block <= block_bytes."""
    cap = max(1, block_bytes // max(1, row_elems * elem_bytes))
    best = None
    t = 8
    limit = min(total_rows, cap)
    while t <= limit:
        if total_rows % t == 0:
            best = t
        t += 8
    return best if best is not None else total_rows   # full extent always legal


# ---------------------------------------------------------------------------
# Wrapper
# ---------------------------------------------------------------------------

def bottleneck_pallas(x_nchw, params, *, block_bytes=4 << 20,
                      vmem_limit_bytes=48 * 1024 * 1024):
    """Bottleneck forward. x_nchw: (N, Cin, H, W) f32 -> (N, Cout, H, W) f32."""
    w1, w2, w3, g1, b1, g2, b2, g3, b3 = params
    x = jnp.transpose(x_nchw, (0, 2, 3, 1)).astype(jnp.float32)       # NHWC
    N, H, W, Cin = x.shape
    Cmid = w1.shape[1]
    Cout = w3.shape[1]
    assert Cin == Cout, (
        "identity residual requires conv3 output channels (= out_channels*4) "
        "to equal the input channel count")
    M = N * H * W

    # MXU-native bf16 weight operands (f32 accumulation happens in-kernel).
    w1b = w1.astype(jnp.bfloat16)
    w2b = w2.reshape(9 * Cmid, Cmid).astype(jnp.bfloat16)   # rows = (kh*3+kw, cin)
    w3b = w3.astype(jnp.bfloat16)

    cparams = pltpu.CompilerParams(
        dimension_semantics=("parallel",),      # megacore-splittable grid axes
        vmem_limit_bytes=vmem_limit_bytes)      # explicit: fits v7x's 64 MiB VMEM

    # ---- stage 1: conv1 (1x1) + per-tile BN1 partial sums ------------------
    xf = x.reshape(M, Cin)
    tm1 = _row_tile(M, max(Cin, Cmid), block_bytes)
    nt1 = M // tm1
    y1, ps1 = pl.pallas_call(
        conv1x1_kernel,
        grid=(nt1,),
        in_specs=[pl.BlockSpec((tm1, Cin), lambda i: (i, 0)),
                  pl.BlockSpec((Cin, Cmid), lambda i: (0, 0))],      # VMEM-resident
        out_specs=[pl.BlockSpec((tm1, Cmid), lambda i: (i, 0)),
                   pl.BlockSpec((None, 2, Cmid), lambda i: (i, 0, 0))],
        out_shape=[jax.ShapeDtypeStruct((M, Cmid), jnp.float32),
                   jax.ShapeDtypeStruct((nt1, 2, Cmid), jnp.float32)],
        compiler_params=cparams,
    )(xf, w1b)
    scale1, shift1 = _bn_scale_shift(ps1, M, g1, b1)

    # ---- stage 2: bn1 + relu + conv2 (3x3, pad 1) + BN2 partial sums -------
    # TODO(synk): for very large H*W, additionally tile H with a 1-row halo via
    # manual DMA (overlapping blocks are not expressible with plain BlockSpecs).
    y2, ps2 = pl.pallas_call(
        bn_relu_conv3x3_kernel,
        grid=(N,),
        in_specs=[pl.BlockSpec((None, H, W, Cmid), lambda n: (n, 0, 0, 0)),
                  pl.BlockSpec((9 * Cmid, Cmid), lambda n: (0, 0)),
                  pl.BlockSpec((1, Cmid), lambda n: (0, 0)),
                  pl.BlockSpec((1, Cmid), lambda n: (0, 0))],
        out_specs=[pl.BlockSpec((None, H, W, Cmid), lambda n: (n, 0, 0, 0)),
                   pl.BlockSpec((None, 2, Cmid), lambda n: (n, 0, 0))],
        out_shape=[jax.ShapeDtypeStruct((N, H, W, Cmid), jnp.float32),
                   jax.ShapeDtypeStruct((N, 2, Cmid), jnp.float32)],
        scratch_shapes=[pltpu.VMEM((H + 2, W + 2, Cmid), jnp.float32)],
        compiler_params=cparams,
    )(y1.reshape(N, H, W, Cmid), w2b, scale1, shift1)
    scale2, shift2 = _bn_scale_shift(ps2, M, g2, b2)

    # ---- stage 3: bn2 + relu + conv3 (1x1) + BN3 partial sums --------------
    tm3 = _row_tile(M, max(Cmid, Cout), block_bytes)
    nt3 = M // tm3
    y3, ps3 = pl.pallas_call(
        bn_relu_conv1x1_kernel,
        grid=(nt3,),
        in_specs=[pl.BlockSpec((tm3, Cmid), lambda i: (i, 0)),
                  pl.BlockSpec((Cmid, Cout), lambda i: (0, 0)),
                  pl.BlockSpec((1, Cmid), lambda i: (0, 0)),
                  pl.BlockSpec((1, Cmid), lambda i: (0, 0))],
        out_specs=[pl.BlockSpec((tm3, Cout), lambda i: (i, 0)),
                   pl.BlockSpec((None, 2, Cout), lambda i: (i, 0, 0))],
        out_shape=[jax.ShapeDtypeStruct((M, Cout), jnp.float32),
                   jax.ShapeDtypeStruct((nt3, 2, Cout), jnp.float32)],
        compiler_params=cparams,
    )(y2.reshape(M, Cmid), w3b, scale2, shift2)
    scale3, shift3 = _bn_scale_shift(ps3, M, g3, b3)

    # ---- stage 4: bn3 + residual + relu on a lane-dense (N*H, W*Cout) view --
    rows, lanes = N * H, W * Cout
    tr = _row_tile(rows, lanes, block_bytes)
    nt4 = rows // tr
    outw = pl.pallas_call(
        bn_add_relu_kernel,
        grid=(nt4,),
        in_specs=[pl.BlockSpec((tr, lanes), lambda i: (i, 0)),
                  pl.BlockSpec((tr, lanes), lambda i: (i, 0)),
                  pl.BlockSpec((1, lanes), lambda i: (0, 0)),
                  pl.BlockSpec((1, lanes), lambda i: (0, 0))],
        out_specs=pl.BlockSpec((tr, lanes), lambda i: (i, 0)),
        out_shape=jax.ShapeDtypeStruct((rows, lanes), jnp.float32),
        compiler_params=cparams,
    )(y3.reshape(rows, lanes), x.reshape(rows, lanes),
      jnp.tile(scale3, (1, W)), jnp.tile(shift3, (1, W)))

    return jnp.transpose(outw.reshape(N, H, W, Cout), (0, 3, 1, 2))   # -> NCHW


# ---------------------------------------------------------------------------
# Pure-JAX reference (independent XLA implementation) for validation
# ---------------------------------------------------------------------------

def bottleneck_reference(x_nchw, params, mxu_dtype=jnp.float32):
    """XLA reference. `mxu_dtype=bf16` mirrors the kernel's MXU operand rounding
    (bf16 inputs, f32 accumulation); everything else stays f32."""
    w1, w2, w3, g1, b1, g2, b2, g3, b3 = params
    x = jnp.transpose(x_nchw, (0, 2, 3, 1)).astype(jnp.float32)

    def cast(a):
        return a.astype(mxu_dtype).astype(jnp.float32)

    def bn(y, g, b):
        m = jnp.mean(y, axis=(0, 1, 2))
        v = jnp.mean((y - m) ** 2, axis=(0, 1, 2))
        return (y - m) * (g.reshape(-1) * lax.rsqrt(v + EPS)) + b.reshape(-1)

    hi = lax.Precision.HIGHEST
    y = jnp.einsum("nhwc,cd->nhwd", cast(x), cast(w1), precision=hi)
    y = jnp.maximum(bn(y, g1, b1), 0.0)
    Cmid = w1.shape[1]
    w2_hwio = w2.reshape(3, 3, Cmid, Cmid)
    y = lax.conv_general_dilated(
        cast(y), cast(w2_hwio), window_strides=(1, 1), padding=((1, 1), (1, 1)),
        dimension_numbers=("NHWC", "HWIO", "NHWC"), precision=hi)
    y = jnp.maximum(bn(y, g2, b2), 0.0)
    y = jnp.einsum("nhwc,cd->nhwd", cast(y), cast(w3), precision=hi)
    y = bn(y, g3, b3)
    y = jnp.maximum(y + x, 0.0)
    return jnp.transpose(y, (0, 3, 1, 2))


def make_params(key, in_channels, out_channels, expansion=4):
    """Deterministic synthetic parameters (PyTorch layout pre-transposed for matmul)."""
    cmid = out_channels
    cout = out_channels * expansion
    k1, k2, k3 = jax.random.split(key, 3)
    # w1: (Cin, Cmid)      <- conv1.weight (Cmid, Cin, 1, 1)
    # w2: (9, Cmid, Cmid)  <- conv2.weight (Cmid, Cmid, 3, 3), tap index kh*3+kw
    # w3: (Cmid, Cout)     <- conv3.weight (Cout, Cmid, 1, 1)
    w1 = jax.random.normal(k1, (in_channels, cmid), jnp.float32) * 0.1
    w2 = jax.random.normal(k2, (9, cmid, cmid), jnp.float32) * 0.1
    w3 = jax.random.normal(k3, (cmid, cout), jnp.float32) * 0.1
    # BatchNorm defaults: gamma=1, beta=0.
    g1, b1 = jnp.ones((1, cmid), jnp.float32), jnp.zeros((1, cmid), jnp.float32)
    g2, b2 = jnp.ones((1, cmid), jnp.float32), jnp.zeros((1, cmid), jnp.float32)
    g3, b3 = jnp.ones((1, cout), jnp.float32), jnp.zeros((1, cout), jnp.float32)
    return (w1, w2, w3, g1, b1, g2, b2, g3, b3)


if __name__ == "__main__":
    # Bottleneck(in_channels=16, out_channels=4): conv3 emits 16 channels, so the
    # identity residual is valid without a downsample (module defaults).
    N, Cin, H, W = 2, 16, 16, 16
    out_channels = 4

    key = jax.random.PRNGKey(0)
    kx, kp = jax.random.split(key)
    x = jax.random.normal(kx, (N, Cin, H, W), jnp.float32)
    params = make_params(kp, Cin, out_channels)

    # Small block_bytes so the toy problem still exercises multi-tile grids
    # (and therefore the cross-tile two-phase BN reduction).
    fwd = jax.jit(functools.partial(bottleneck_pallas, block_bytes=8 * 1024))
    out = jax.block_until_ready(fwd(x, params))
    assert out.shape == (N, Cin, H, W), out.shape

    # Validate against an independent XLA implementation that only mirrors the
    # kernels' MXU operand rounding (bf16 inputs, f32 accumulation).
    ref = jax.block_until_ready(
        bottleneck_reference(x, params, mxu_dtype=jnp.bfloat16))
    max_err = float(jnp.max(jnp.abs(out - ref)))
    assert jnp.allclose(out, ref, rtol=2e-3, atol=2e-3), max_err

    print("KERNEL_OK")
</pallas_src>

<mosaic_0001>
module attributes {stable_mosaic.version = 11 : i64} {
  func.func @conv1x1_kernel(%arg0: i32, %arg1: memref<128x16xf32, #tpu.memory_space<vmem>>, %arg2: memref<16x4xbf16, #tpu.memory_space<vmem>>, %arg3: memref<128x4xf32, #tpu.memory_space<vmem>>, %arg4: memref<1x2x4xf32, #tpu.memory_space<vmem>>) attributes {dimension_semantics = [#tpu.dimension_semantics<parallel>], iteration_bounds = array<i64: 4>, scalar_prefetch = 0 : i64, scratch_operands = 0 : i64, tpu.core_type = #tpu.core_type<tc>, window_params = [{transform_indices = @transform_0, window_bounds = array<i64: 128, 16>}, {pipeline_mode = #tpu.pipeline_mode<synchronous>, transform_indices = @transform_1, window_bounds = array<i64: 16, 4>}, {transform_indices = @transform_2, window_bounds = array<i64: 128, 4>}, {transform_indices = @transform_3, window_bounds = array<i64: 1, 2, 4>}]} {
    %c0 = arith.constant 0 : index
    %c0_0 = arith.constant 0 : index
    %0 = vector.load %arg1[%c0, %c0_0] : memref<128x16xf32, #tpu.memory_space<vmem>>, vector<128x16xf32>
    %1 = arith.truncf %0 : vector<128x16xf32> to vector<128x16xbf16>
    %c0_1 = arith.constant 0 : index
    %c0_2 = arith.constant 0 : index
    %2 = vector.load %arg2[%c0_1, %c0_2] : memref<16x4xbf16, #tpu.memory_space<vmem>>, vector<16x4xbf16>
    %cst = arith.constant dense<0.000000e+00> : vector<128x4xf32>
    %3 = tpu.matmul %1, %2, %cst {dimension_numbers = #tpu.dot_dimension_numbers<[1], [0], [0], [1], [0, 0, 1, 1], [], []>} : vector<128x16xbf16>, vector<16x4xbf16>, vector<128x4xf32> -> vector<128x4xf32>
    %c0_3 = arith.constant 0 : index
    %c0_4 = arith.constant 0 : index
    %4 = vector.load %arg3[%c0_3, %c0_4] : memref<128x4xf32, #tpu.memory_space<vmem>>, vector<128x4xf32>
    tpu.vector_store %arg3[%c0_3, %c0_4], %3 {strides = array<i32>} : memref<128x4xf32, #tpu.memory_space<vmem>>, vector<128x4xf32>,
    %cst_5 = arith.constant dense<0.000000e+00> : vector<4xf32>
    %5 = vector.multi_reduction <add>, %3, %cst_5 [0] : vector<128x4xf32> to vector<4xf32>
    %6 = vector.shape_cast %5 : vector<4xf32> to vector<1x4xf32>
    %7 = arith.mulf %3, %3 : vector<128x4xf32>
    %cst_6 = arith.constant dense<0.000000e+00> : vector<4xf32>
    %8 = vector.multi_reduction <add>, %7, %cst_6 [0] : vector<128x4xf32> to vector<4xf32>
    %9 = vector.shape_cast %8 : vector<4xf32> to vector<1x4xf32>
    %10 = tpu.concatenate %6, %9 in 0 : vector<1x4xf32>, vector<1x4xf32> -> vector<2x4xf32>
    %c0_7 = arith.constant 0 : index
    %c0_8 = arith.constant 0 : index
    %c0_9 = arith.constant 0 : index
    %11 = vector.load %arg4[%c0_7, %c0_8, %c0_9] : memref<1x2x4xf32, #tpu.memory_space<vmem>>, vector<1x2x4xf32>
    %12 = vector.shape_cast %11 : vector<1x2x4xf32> to vector<2x4xf32>
    %13 = vector.shape_cast %10 : vector<2x4xf32> to vector<1x2x4xf32>
    tpu.vector_store %arg4[%c0_7, %c0_8, %c0_9], %13 {strides = array<i32>} : memref<1x2x4xf32, #tpu.memory_space<vmem>>, vector<1x2x4xf32>,
    return
  }
  func.func @transform_0(%arg0: i32) -> (i32, i32) {
    %c0_i32 = arith.constant 0 : i32
    %c0_i32_0 = arith.constant 0 : i32
    return %arg0, %c0_i32 : i32, i32
  }
  func.func @transform_1(%arg0: i32) -> (i32, i32) {
    %c0_i32 = arith.constant 0 : i32
    %c0_i32_0 = arith.constant 0 : i32
    %c0_i32_1 = arith.constant 0 : i32
    return %c0_i32, %c0_i32_0 : i32, i32
  }
  func.func @transform_2(%arg0: i32) -> (i32, i32) {
    %c0_i32 = arith.constant 0 : i32
    %c0_i32_0 = arith.constant 0 : i32
    return %arg0, %c0_i32 : i32, i32
  }
  func.func @transform_3(%arg0: i32) -> (i32, i32, i32) {
    %c0_i32 = arith.constant 0 : i32
    %c0_i32_0 = arith.constant 0 : i32
    %c0_i32_1 = arith.constant 0 : i32
    return %arg0, %c0_i32, %c0_i32_0 : i32, i32, i32
  }
}

module attributes {stable_mosaic.version = 11 : i64} {
  func.func @bn_relu_conv3x3_kernel(%arg0: i32, %arg1: memref<1x16x16x4xf32, #tpu.memory_space<vmem>>, %arg2: memref<36x4xbf16, #tpu.memory_space<vmem>>, %arg3: memref<1x4xf32, #tpu.memory_space<vmem>>, %arg4: memref<1x4xf32, #tpu.memory_space<vmem>>, %arg5: memref<1x16x16x4xf32, #tpu.memory_space<vmem>>, %arg6: memref<1x2x4xf32, #tpu.memory_space<vmem>>, %arg7: memref<18x18x4xf32, #tpu.memory_space<vmem>>) attributes {dimension_semantics = [#tpu.dimension_semantics<parallel>], iteration_bounds = array<i64: 2>, scalar_prefetch = 0 : i64, scratch_operands = 1 : i64, tpu.core_type = #tpu.core_type<tc>, window_params = [{transform_indices = @transform_0, window_bounds = array<i64: 1, 16, 16, 4>}, {pipeline_mode = #tpu.pipeline_mode<synchronous>, transform_indices = @transform_1, window_bounds = array<i64: 36, 4>}, {pipeline_mode = #tpu.pipeline_mode<synchronous>, transform_indices = @transform_2, window_bounds = array<i64: 1, 4>}, {pipeline_mode = #tpu.pipeline_mode<synchronous>, transform_indices = @transform_3, window_bounds = array<i64: 1, 4>}, {transform_indices = @transform_4, window_bounds = array<i64: 1, 16, 16, 4>}, {transform_indices = @transform_5, window_bounds = array<i64: 1, 2, 4>}]} {
    %c0 = arith.constant 0 : index
    %c0_0 = arith.constant 0 : index
    %c0_1 = arith.constant 0 : index
    %c0_2 = arith.constant 0 : index
    %0 = vector.load %arg1[%c0, %c0_0, %c0_1, %c0_2] : memref<1x16x16x4xf32, #tpu.memory_space<vmem>>, vector<1x16x16x4xf32>
    %1 = vector.shape_cast %0 : vector<1x16x16x4xf32> to vector<16x16x4xf32>
    %c0_3 = arith.constant 0 : index
    %c0_4 = arith.constant 0 : index
    %2 = vector.load %arg3[%c0_3, %c0_4] : memref<1x4xf32, #tpu.memory_space<vmem>>, vector<1x4xf32>
    %3 = vector.shape_cast %2 : vector<1x4xf32> to vector<1x1x4xf32>
    %4 = vector.broadcast %3 : vector<1x1x4xf32> to vector<16x16x4xf32>
    %5 = arith.mulf %1, %4 : vector<16x16x4xf32>
    %c0_5 = arith.constant 0 : index
    %c0_6 = arith.constant 0 : index
    %6 = vector.load %arg4[%c0_5, %c0_6] : memref<1x4xf32, #tpu.memory_space<vmem>>, vector<1x4xf32>
    %7 = vector.shape_cast %6 : vector<1x4xf32> to vector<1x1x4xf32>
    %8 = vector.broadcast %7 : vector<1x1x4xf32> to vector<16x16x4xf32>
    %9 = arith.addf %5, %8 : vector<16x16x4xf32>
    %cst = arith.constant 0.000000e+00 : f32
    %10 = vector.broadcast %cst : f32 to vector<16x16x4xf32>
    %11 = arith.maximumf %9, %10 : vector<16x16x4xf32>
    %cst_7 = arith.constant 0.000000e+00 : f32
    %12 = vector.broadcast %cst_7 : f32 to vector<1x18x4xf32>
    %c0_8 = arith.constant 0 : index
    %c0_9 = arith.constant 0 : index
    %c0_10 = arith.constant 0 : index
    %13 = vector.load %arg7[%c0_8, %c0_9, %c0_10] : memref<18x18x4xf32, #tpu.memory_space<vmem>>, vector<1x18x4xf32>
    tpu.vector_store %arg7[%c0_8, %c0_9, %c0_10], %12 {strides = array<i32>} : memref<18x18x4xf32, #tpu.memory_space<vmem>>, vector<1x18x4xf32>,
    %cst_11 = arith.constant 0.000000e+00 : f32
    %14 = vector.broadcast %cst_11 : f32 to vector<1x18x4xf32>
    %c17 = arith.constant 17 : index
    %c0_12 = arith.constant 0 : index
    %c0_13 = arith.constant 0 : index
    %15 = vector.load %arg7[%c17, %c0_12, %c0_13] : memref<18x18x4xf32, #tpu.memory_space<vmem>>, vector<1x18x4xf32>
    tpu.vector_store %arg7[%c17, %c0_12, %c0_13], %14 {strides = array<i32>} : memref<18x18x4xf32, #tpu.memory_space<vmem>>, vector<1x18x4xf32>,
    %cst_14 = arith.constant 0.000000e+00 : f32
    %16 = vector.broadcast %cst_14 : f32 to vector<16x1x4xf32>
    %c1 = arith.constant 1 : index
    %c0_15 = arith.constant 0 : index
    %c0_16 = arith.constant 0 : index
    %17 = vector.load %arg7[%c1, %c0_15, %c0_16] : memref<18x18x4xf32, #tpu.memory_space<vmem>>, vector<16x1x4xf32>
    tpu.vector_store %arg7[%c1, %c0_15, %c0_16], %16 {strides = array<i32>} : memref<18x18x4xf32, #tpu.memory_space<vmem>>, vector<16x1x4xf32>,
    %cst_17 = arith.constant 0.000000e+00 : f32
    %18 = vector.broadcast %cst_17 : f32 to vector<16x1x4xf32>
    %c1_18 = arith.constant 1 : index
    %c17_19 = arith.constant 17 : index
    %c0_20 = arith.constant 0 : index
    %19 = vector.load %arg7[%c1_18, %c17_19, %c0_20] : memref<18x18x4xf32, #tpu.memory_space<vmem>>, vector<16x1x4xf32>
    tpu.vector_store %arg7[%c1_18, %c17_19, %c0_20], %18 {strides = array<i32>} : memref<18x18x4xf32, #tpu.memory_space<vmem>>, vector<16x1x4xf32>,
    %c1_21 = arith.constant 1 : index
    %c1_22 = arith.constant 1 : index
    %c0_23 = arith.constant 0 : index
    %20 = vector.load %arg7[%c1_21, %c1_22, %c0_23] : memref<18x18x4xf32, #tpu.memory_space<vmem>>, vector<16x16x4xf32>
    tpu.vector_store %arg7[%c1_21, %c1_22, %c0_23], %11 {strides = array<i32>} : memref<18x18x4xf32, #tpu.memory_space<vmem>>, vector<16x16x4xf32>,
    %c0_24 = arith.constant 0 : index
    %c0_25 = arith.constant 0 : index
    %c0_26 = arith.constant 0 : index
    %21 = vector.load %arg7[%c0_24, %c0_25, %c0_26] : memref<18x18x4xf32, #tpu.memory_space<vmem>>, vector<16x16x4xf32>
    %c0_27 = arith.constant 0 : index
    %c1_28 = arith.constant 1 : index
    %c0_29 = arith.constant 0 : index
    %22 = vector.load %arg7[%c0_27, %c1_28, %c0_29] : memref<18x18x4xf32, #tpu.memory_space<vmem>>, vector<16x16x4xf32>
    %c0_30 = arith.constant 0 : index
    %c2 = arith.constant 2 : index
    %c0_31 = arith.constant 0 : index
    %23 = vector.load %arg7[%c0_30, %c2, %c0_31] : memref<18x18x4xf32, #tpu.memory_space<vmem>>, vector<16x16x4xf32>
    %c1_32 = arith.constant 1 : index
    %c0_33 = arith.constant 0 : index
    %c0_34 = arith.constant 0 : index
    %24 = vector.load %arg7[%c1_32, %c0_33, %c0_34] : memref<18x18x4xf32, #tpu.memory_space<vmem>>, vector<16x16x4xf32>
    %c1_35 = arith.constant 1 : index
    %c1_36 = arith.constant 1 : index
    %c0_37 = arith.constant 0 : index
    %25 = vector.load %arg7[%c1_35, %c1_36, %c0_37] : memref<18x18x4xf32, #tpu.memory_space<vmem>>, vector<16x16x4xf32>
    %c1_38 = arith.constant 1 : index
    %c2_39 = arith.constant 2 : index
    %c0_40 = arith.constant 0 : index
    %26 = vector.load %arg7[%c1_38, %c2_39, %c0_40] : memref<18x18x4xf32, #tpu.memory_space<vmem>>, vector<16x16x4xf32>
    %c2_41 = arith.constant 2 : index
    %c0_42 = arith.constant 0 : index
    %c0_43 = arith.constant 0 : index
    %27 = vector.load %arg7[%c2_41, %c0_42, %c0_43] : memref<18x18x4xf32, #tpu.memory_space<vmem>>, vector<16x16x4xf32>
    %c2_44 = arith.constant 2 : index
    %c1_45 = arith.constant 1 : index
    %c0_46 = arith.constant 0 : index
    %28 = vector.load %arg7[%c2_44, %c1_45, %c0_46] : memref<18x18x4xf32, #tpu.memory_space<vmem>>, vector<16x16x4xf32>
    %c2_47 = arith.constant 2 : index
    %c2_48 = arith.constant 2 : index
    %c0_49 = arith.constant 0 : index
    %29 = vector.load %arg7[%c2_47, %c2_48, %c0_49] : memref<18x18x4xf32, #tpu.memory_space<vmem>>, vector<16x16x4xf32>
    %30 = tpu.concatenate %21, %22, %23, %24, %25, %26, %27, %28, %29 in 2 : vector<16x16x4xf32>, vector<16x16x4xf32>, vector<16x16x4xf32>, vector<16x16x4xf32>, vector<16x16x4xf32>, vector<16x16x4xf32>, vector<16x16x4xf32>, vector<16x16x4xf32>, vector<16x16x4xf32> -> vector<16x16x36xf32>
    %31 = vector.shape_cast %30 : vector<16x16x36xf32> to vector<256x36xf32>
    %32 = arith.truncf %31 : vector<256x36xf32> to vector<256x36xbf16>
    %c0_50 = arith.constant 0 : index
    %c0_51 = arith.constant 0 : index
    %33 = vector.load %arg2[%c0_50, %c0_51] : memref<36x4xbf16, #tpu.memory_space<vmem>>, vector<36x4xbf16>
    %cst_52 = arith.constant dense<0.000000e+00> : vector<256x4xf32>
    %34 = tpu.matmul %32, %33, %cst_52 {dimension_numbers = #tpu.dot_dimension_numbers<[1], [0], [0], [1], [0, 0, 1, 1], [], []>} : vector<256x36xbf16>, vector<36x4xbf16>, vector<256x4xf32> -> vector<256x4xf32>
    %cst_53 = arith.constant dense<0.000000e+00> : vector<4xf32>
    %35 = vector.multi_reduction <add>, %34, %cst_53 [0] : vector<256x4xf32> to vector<4xf32>
    %36 = vector.shape_cast %35 : vector<4xf32> to vector<1x4xf32>
    %37 = arith.mulf %34, %34 : vector<256x4xf32>
    %cst_54 = arith.constant dense<0.000000e+00> : vector<4xf32>
    %38 = vector.multi_reduction <add>, %37, %cst_54 [0] : vector<256x4xf32> to vector<4xf32>
    %39 = vector.shape_cast %38 : vector<4xf32> to vector<1x4xf32>
    %40 = tpu.concatenate %36, %39 in 0 : vector<1x4xf32>, vector<1x4xf32> -> vector<2x4xf32>
    %c0_55 = arith.constant 0 : index
    %c0_56 = arith.constant 0 : index
    %c0_57 = arith.constant 0 : index
    %41 = vector.load %arg6[%c0_55, %c0_56, %c0_57] : memref<1x2x4xf32, #tpu.memory_space<vmem>>, vector<1x2x4xf32>
    %42 = vector.shape_cast %41 : vector<1x2x4xf32> to vector<2x4xf32>
    %43 = vector.shape_cast %40 : vector<2x4xf32> to vector<1x2x4xf32>
    tpu.vector_store %arg6[%c0_55, %c0_56, %c0_57], %43 {strides = array<i32>} : memref<1x2x4xf32, #tpu.memory_space<vmem>>, vector<1x2x4xf32>,
    %44 = vector.shape_cast %34 : vector<256x4xf32> to vector<16x16x4xf32>
    %c0_58 = arith.constant 0 : index
    %c0_59 = arith.constant 0 : index
    %c0_60 = arith.constant 0 : index
    %c0_61 = arith.constant 0 : index
    %45 = vector.load %arg5[%c0_58, %c0_59, %c0_60, %c0_61] : memref<1x16x16x4xf32, #tpu.memory_space<vmem>>, vector<1x16x16x4xf32>
    %46 = vector.shape_cast %45 : vector<1x16x16x4xf32> to vector<16x16x4xf32>
    %47 = vector.shape_cast %44 : vector<16x16x4xf32> to vector<1x16x16x4xf32>
    tpu.vector_store %arg5[%c0_58, %c0_59, %c0_60, %c0_61], %47 {strides = array<i32>} : memref<1x16x16x4xf32, #tpu.memory_space<vmem>>, vector<1x16x16x4xf32>,
    return
  }
  func.func @transform_0(%arg0: i32) -> (i32, i32, i32, i32) {
    %c0_i32 = arith.constant 0 : i32
    %c0_i32_0 = arith.constant 0 : i32
    %c0_i32_1 = arith.constant 0 : i32
    %c0_i32_2 = arith.constant 0 : i32
    return %arg0, %c0_i32, %c0_i32_0, %c0_i32_1 : i32, i32, i32, i32
  }
  func.func @transform_1(%arg0: i32) -> (i32, i32) {
    %c0_i32 = arith.constant 0 : i32
    %c0_i32_0 = arith.constant 0 : i32
    %c0_i32_1 = arith.constant 0 : i32
    return %c0_i32, %c0_i32_0 : i32, i32
  }
  func.func @transform_2(%arg0: i32) -> (i32, i32) {
    %c0_i32 = arith.constant 0 : i32
    %c0_i32_0 = arith.constant 0 : i32
    %c0_i32_1 = arith.constant 0 : i32
    return %c0_i32, %c0_i32_0 : i32, i32
  }
  func.func @transform_3(%arg0: i32) -> (i32, i32) {
    %c0_i32 = arith.constant 0 : i32
    %c0_i32_0 = arith.constant 0 : i32
    %c0_i32_1 = arith.constant 0 : i32
    return %c0_i32, %c0_i32_0 : i32, i32
  }
  func.func @transform_4(%arg0: i32) -> (i32, i32, i32, i32) {
    %c0_i32 = arith.constant 0 : i32
    %c0_i32_0 = arith.constant 0 : i32
    %c0_i32_1 = arith.constant 0 : i32
    %c0_i32_2 = arith.constant 0 : i32
    return %arg0, %c0_i32, %c0_i32_0, %c0_i32_1 : i32, i32, i32, i32
  }
  func.func @transform_5(%arg0: i32) -> (i32, i32, i32) {
    %c0_i32 = arith.constant 0 : i32
    %c0_i32_0 = arith.constant 0 : i32
    %c0_i32_1 = arith.constant 0 : i32
    return %arg0, %c0_i32, %c0_i32_0 : i32, i32, i32
  }
}

module attributes {stable_mosaic.version = 11 : i64} {
  func.func @bn_relu_conv1x1_kernel(%arg0: i32, %arg1: memref<128x4xf32, #tpu.memory_space<vmem>>, %arg2: memref<4x16xbf16, #tpu.memory_space<vmem>>, %arg3: memref<1x4xf32, #tpu.memory_space<vmem>>, %arg4: memref<1x4xf32, #tpu.memory_space<vmem>>, %arg5: memref<128x16xf32, #tpu.memory_space<vmem>>, %arg6: memref<1x2x16xf32, #tpu.memory_space<vmem>>) attributes {dimension_semantics = [#tpu.dimension_semantics<parallel>], iteration_bounds = array<i64: 4>, scalar_prefetch = 0 : i64, scratch_operands = 0 : i64, tpu.core_type = #tpu.core_type<tc>, window_params = [{transform_indices = @transform_0, window_bounds = array<i64: 128, 4>}, {pipeline_mode = #tpu.pipeline_mode<synchronous>, transform_indices = @transform_1, window_bounds = array<i64: 4, 16>}, {pipeline_mode = #tpu.pipeline_mode<synchronous>, transform_indices = @transform_2, window_bounds = array<i64: 1, 4>}, {pipeline_mode = #tpu.pipeline_mode<synchronous>, transform_indices = @transform_3, window_bounds = array<i64: 1, 4>}, {transform_indices = @transform_4, window_bounds = array<i64: 128, 16>}, {transform_indices = @transform_5, window_bounds = array<i64: 1, 2, 16>}]} {
    %c0 = arith.constant 0 : index
    %c0_0 = arith.constant 0 : index
    %0 = vector.load %arg1[%c0, %c0_0] : memref<128x4xf32, #tpu.memory_space<vmem>>, vector<128x4xf32>
    %c0_1 = arith.constant 0 : index
    %c0_2 = arith.constant 0 : index
    %1 = vector.load %arg3[%c0_1, %c0_2] : memref<1x4xf32, #tpu.memory_space<vmem>>, vector<1x4xf32>
    %2 = vector.broadcast %1 : vector<1x4xf32> to vector<128x4xf32>
    %3 = arith.mulf %0, %2 : vector<128x4xf32>
    %c0_3 = arith.constant 0 : index
    %c0_4 = arith.constant 0 : index
    %4 = vector.load %arg4[%c0_3, %c0_4] : memref<1x4xf32, #tpu.memory_space<vmem>>, vector<1x4xf32>
    %5 = vector.broadcast %4 : vector<1x4xf32> to vector<128x4xf32>
    %6 = arith.addf %3, %5 : vector<128x4xf32>
    %cst = arith.constant 0.000000e+00 : f32
    %7 = vector.broadcast %cst : f32 to vector<128x4xf32>
    %8 = arith.maximumf %6, %7 : vector<128x4xf32>
    %9 = arith.truncf %8 : vector<128x4xf32> to vector<128x4xbf16>
    %c0_5 = arith.constant 0 : index
    %c0_6 = arith.constant 0 : index
    %10 = vector.load %arg2[%c0_5, %c0_6] : memref<4x16xbf16, #tpu.memory_space<vmem>>, vector<4x16xbf16>
    %cst_7 = arith.constant dense<0.000000e+00> : vector<128x16xf32>
    %11 = tpu.matmul %9, %10, %cst_7 {dimension_numbers = #tpu.dot_dimension_numbers<[1], [0], [0], [1], [0, 0, 1, 1], [], []>} : vector<128x4xbf16>, vector<4x16xbf16>, vector<128x16xf32> -> vector<128x16xf32>
    %c0_8 = arith.constant 0 : index
    %c0_9 = arith.constant 0 : index
    %12 = vector.load %arg5[%c0_8, %c0_9] : memref<128x16xf32, #tpu.memory_space<vmem>>, vector<128x16xf32>
    tpu.vector_store %arg5[%c0_8, %c0_9], %11 {strides = array<i32>} : memref<128x16xf32, #tpu.memory_space<vmem>>, vector<128x16xf32>,
    %cst_10 = arith.constant dense<0.000000e+00> : vector<16xf32>
    %13 = vector.multi_reduction <add>, %11, %cst_10 [0] : vector<128x16xf32> to vector<16xf32>
    %14 = vector.shape_cast %13 : vector<16xf32> to vector<1x16xf32>
    %15 = arith.mulf %11, %11 : vector<128x16xf32>
    %cst_11 = arith.constant dense<0.000000e+00> : vector<16xf32>
    %16 = vector.multi_reduction <add>, %15, %cst_11 [0] : vector<128x16xf32> to vector<16xf32>
    %17 = vector.shape_cast %16 : vector<16xf32> to vector<1x16xf32>
    %18 = tpu.concatenate %14, %17 in 0 : vector<1x16xf32>, vector<1x16xf32> -> vector<2x16xf32>
    %c0_12 = arith.constant 0 : index
    %c0_13 = arith.constant 0 : index
    %c0_14 = arith.constant 0 : index
    %19 = vector.load %arg6[%c0_12, %c0_13, %c0_14] : memref<1x2x16xf32, #tpu.memory_space<vmem>>, vector<1x2x16xf32>
    %20 = vector.shape_cast %19 : vector<1x2x16xf32> to vector<2x16xf32>
    %21 = vector.shape_cast %18 : vector<2x16xf32> to vector<1x2x16xf32>
    tpu.vector_store %arg6[%c0_12, %c0_13, %c0_14], %21 {strides = array<i32>} : memref<1x2x16xf32, #tpu.memory_space<vmem>>, vector<1x2x16xf32>,
    return
  }
  func.func @transform_0(%arg0: i32) -> (i32, i32) {
    %c0_i32 = arith.constant 0 : i32
    %c0_i32_0 = arith.constant 0 : i32
    return %arg0, %c0_i32 : i32, i32
  }
  func.func @transform_1(%arg0: i32) -> (i32, i32) {
    %c0_i32 = arith.constant 0 : i32
    %c0_i32_0 = arith.constant 0 : i32
    %c0_i32_1 = arith.constant 0 : i32
    return %c0_i32, %c0_i32_0 : i32, i32
  }
  func.func @transform_2(%arg0: i32) -> (i32, i32) {
    %c0_i32 = arith.constant 0 : i32
    %c0_i32_0 = arith.constant 0 : i32
    %c0_i32_1 = arith.constant 0 : i32
    return %c0_i32, %c0_i32_0 : i32, i32
  }
  func.func @transform_3(%arg0: i32) -> (i32, i32) {
    %c0_i32 = arith.constant 0 : i32
    %c0_i32_0 = arith.constant 0 : i32
    %c0_i32_1 = arith.constant 0 : i32
    return %c0_i32, %c0_i32_0 : i32, i32
  }
  func.func @transform_4(%arg0: i32) -> (i32, i32) {
    %c0_i32 = arith.constant 0 : i32
    %c0_i32_0 = arith.constant 0 : i32
    return %arg0, %c0_i32 : i32, i32
  }
  func.func @transform_5(%arg0: i32) -> (i32, i32, i32) {
    %c0_i32 = arith.constant 0 : i32
    %c0_i32_0 = arith.constant 0 : i32
    %c0_i32_1 = arith.constant 0 : i32
    return %arg0, %c0_i32, %c0_i32_0 : i32, i32, i32
  }
}

module attributes {stable_mosaic.version = 11 : i64} {
  func.func @bn_add_relu_kernel(%arg0: i32, %arg1: memref<8x256xf32, #tpu.memory_space<vmem>>, %arg2: memref<8x256xf32, #tpu.memory_space<vmem>>, %arg3: memref<1x256xf32, #tpu.memory_space<vmem>>, %arg4: memref<1x256xf32, #tpu.memory_space<vmem>>, %arg5: memref<8x256xf32, #tpu.memory_space<vmem>>) attributes {dimension_semantics = [#tpu.dimension_semantics<parallel>], iteration_bounds = array<i64: 4>, scalar_prefetch = 0 : i64, scratch_operands = 0 : i64, tpu.core_type = #tpu.core_type<tc>, window_params = [{transform_indices = @transform_0, window_bounds = array<i64: 8, 256>}, {transform_indices = @transform_1, window_bounds = array<i64: 8, 256>}, {pipeline_mode = #tpu.pipeline_mode<synchronous>, transform_indices = @transform_2, window_bounds = array<i64: 1, 256>}, {pipeline_mode = #tpu.pipeline_mode<synchronous>, transform_indices = @transform_3, window_bounds = array<i64: 1, 256>}, {transform_indices = @transform_4, window_bounds = array<i64: 8, 256>}]} {
    %c0 = arith.constant 0 : index
    %c0_0 = arith.constant 0 : index
    %0 = vector.load %arg1[%c0, %c0_0] : memref<8x256xf32, #tpu.memory_space<vmem>>, vector<8x256xf32>
    %c0_1 = arith.constant 0 : index
    %c0_2 = arith.constant 0 : index
    %1 = vector.load %arg3[%c0_1, %c0_2] : memref<1x256xf32, #tpu.memory_space<vmem>>, vector<1x256xf32>
    %2 = vector.broadcast %1 : vector<1x256xf32> to vector<8x256xf32>
    %3 = arith.mulf %0, %2 : vector<8x256xf32>
    %c0_3 = arith.constant 0 : index
    %c0_4 = arith.constant 0 : index
    %4 = vector.load %arg4[%c0_3, %c0_4] : memref<1x256xf32, #tpu.memory_space<vmem>>, vector<1x256xf32>
    %5 = vector.broadcast %4 : vector<1x256xf32> to vector<8x256xf32>
    %6 = arith.addf %3, %5 : vector<8x256xf32>
    %c0_5 = arith.constant 0 : index
    %c0_6 = arith.constant 0 : index
    %7 = vector.load %arg2[%c0_5, %c0_6] : memref<8x256xf32, #tpu.memory_space<vmem>>, vector<8x256xf32>
    %8 = arith.addf %6, %7 : vector<8x256xf32>
    %cst = arith.constant 0.000000e+00 : f32
    %9 = vector.broadcast %cst : f32 to vector<8x256xf32>
    %10 = arith.maximumf %8, %9 : vector<8x256xf32>
    %c0_7 = arith.constant 0 : index
    %c0_8 = arith.constant 0 : index
    %11 = vector.load %arg5[%c0_7, %c0_8] : memref<8x256xf32, #tpu.memory_space<vmem>>, vector<8x256xf32>
    tpu.vector_store %arg5[%c0_7, %c0_8], %10 {strides = array<i32>} : memref<8x256xf32, #tpu.memory_space<vmem>>, vector<8x256xf32>,
    return
  }
  func.func @transform_0(%arg0: i32) -> (i32, i32) {
    %c0_i32 = arith.constant 0 : i32
    %c0_i32_0 = arith.constant 0 : i32
    return %arg0, %c0_i32 : i32, i32
  }
  func.func @transform_1(%arg0: i32) -> (i32, i32) {
    %c0_i32 = arith.constant 0 : i32
    %c0_i32_0 = arith.constant 0 : i32
    return %arg0, %c0_i32 : i32, i32
  }
  func.func @transform_2(%arg0: i32) -> (i32, i32) {
    %c0_i32 = arith.constant 0 : i32
    %c0_i32_0 = arith.constant 0 : i32
    %c0_i32_1 = arith.constant 0 : i32
    return %c0_i32, %c0_i32_0 : i32, i32
  }
  func.func @transform_3(%arg0: i32) -> (i32, i32) {
    %c0_i32 = arith.constant 0 : i32
    %c0_i32_0 = arith.constant 0 : i32
    %c0_i32_1 = arith.constant 0 : i32
    return %c0_i32, %c0_i32_0 : i32, i32
  }
  func.func @transform_4(%arg0: i32) -> (i32, i32) {
    %c0_i32 = arith.constant 0 : i32
    %c0_i32_0 = arith.constant 0 : i32
    return %arg0, %c0_i32 : i32, i32
  }
}

</mosaic_0001>

<llo_original>
// kernel: bottleneck_pallas.4
$region0: #{bottleneck_pallas.4}
  #allocation0 [shape = 'u32[]', space=smem, size = 0x4, offset = 0x4, fixed_abs, tag = 'smem constant byte address 0x4 - core index']
  #allocation1 [shape = 'u32[144,128]{1,0:T(1,128)}', space=vmem, size = 0x12000, scoped, tag = 'internal scratch']
  %s0 = inlined_call_operand.vmem [shape: f32[512,16], index: 0, kind: input, shape index: {}]
  %s1 = inlined_call_operand.vmem [shape: bf16[16,4], index: 1, kind: input, shape index: {}]
  %s2 = inlined_call_operand.vmem [shape: f32[512,4], index: 2, kind: output, shape index: {0}]
  %s3 = inlined_call_operand.vmem [shape: f32[4,2,4], index: 3, kind: output, shape index: {1}]
  %4 = xla_tuple %s2, %s3
  %s5 = sld [smem:[#allocation0]]
  $region49: #{bottleneck_pallas.4} parent=0
    _
  %s7 = ssub.s32 1, %s5
  %s8 = scalar_select 0, %s7, %s5
  loop: start=0, step=1, limit=6
  $region2: #{bottleneck_pallas.4} parent=0 // loop_pre_header
    _
  $region3: #{bottleneck_pallas.4} parent=0 // loop_header
    %s10 = sphi 0, %s14
    %p11 = scmp.ge.s32.totalorder %s10, 6
    %s20 = sphi 0, %s22
    %s23 = sphi 0, %s20
    %s24 = sphi 0, %s23
    %s40 = sphi 0, %s24
    %s44 = sphi 0, %s44
    %s46 = sphi 0, %s44
    %s47 = sphi 0, %s46
    %s61 = sphi 0, %s47
    %s67 = sphi 0, %s69
    %s70 = sphi 0, %s67
    %s71 = sphi 0, %s70
    %s87 = sphi 0, %s71
    %s93 = sphi 0, %s95
    %s96 = sphi 0, %s93
    %s97 = sphi 0, %s96
    %s113 = sphi 0, %s97
  $region4: #{bottleneck_pallas.4} parent=0 // loop_header_branch
    %13 = sbr.rel (%p11) target = $region8
  $region5: #{bottleneck_pallas.4} parent=0 // loop_body
    %s15 = ssub.s32 %s10, 1
    %s16 = ssub.s32 %s10, 2
    %s17 = sadd.s32 %s10, 1
    %s18 = ssub.s32 %s10, %s17
    %p19 = scmp.eq.s32.totalorder %s18, 0
    %s21 = sadd.s32 %s20, 1
    %s22 = scalar_select %p19, %s20, %s21
    %p25 = pneg %p19
    %p26 = scmp.eq.s32.totalorder %s10, 3
    %p27 = por %p25, %p26
    %p28 = scmp.ne.s32.totalorder %s20, %s23
    %p29 = scmp.eq.s32.totalorder %s10, 0
    %p30 = por %p28, %p29
    %p31 = scmp.ne.s32.totalorder %s20, %s23
    %p32 = scmp.eq.s32.totalorder %s15, 3
    %p33 = por %p31, %p32
    %p34 = scmp.ne.s32.totalorder %s23, %s24
    %p35 = scmp.eq.s32.totalorder %s15, 0
    %p36 = por %p34, %p35
    %p37 = scmp.ne.s32.totalorder %s23, %s24
    %p38 = scmp.eq.s32.totalorder %s16, 3
    %p39 = por %p37, %p38
    %p41 = scmp.ne.s32.totalorder %s24, %s40
    %p42 = scmp.eq.s32.totalorder %s16, 0
    %p43 = por %p41, %p42
    %s45 = sadd.s32 %s44, 1
    %p48 = scmp.eq.s32.totalorder %s10, 3
    %p49 = scmp.ne.s32.totalorder %s44, %s46
    %p50 = scmp.eq.s32.totalorder %s10, 0
    %p51 = por %p49, %p50
    %p52 = scmp.ne.s32.totalorder %s44, %s46
    %p53 = scmp.eq.s32.totalorder %s15, 3
    %p54 = por %p52, %p53
    %p55 = scmp.ne.s32.totalorder %s46, %s47
    %p56 = scmp.eq.s32.totalorder %s15, 0
    %p57 = por %p55, %p56
    %p58 = scmp.ne.s32.totalorder %s46, %s47
    %p59 = scmp.eq.s32.totalorder %s16, 3
    %p60 = por %p58, %p59
    %p62 = scmp.ne.s32.totalorder %s47, %s61
    %p63 = scmp.eq.s32.totalorder %s16, 0
    %p64 = por %p62, %p63
    %s65 = ssub.s32 %s10, %s17
    %p66 = scmp.eq.s32.totalorder %s65, 0
    %s68 = sadd.s32 %s67, 1
    %s69 = scalar_select %p66, %s67, %s68
    %p72 = pneg %p66
    %p73 = scmp.eq.s32.totalorder %s10, 3
    %p74 = por %p72, %p73
    %p75 = scmp.ne.s32.totalorder %s67, %s70
    %p76 = scmp.eq.s32.totalorder %s10, 0
    %p77 = por %p75, %p76
    %p78 = scmp.ne.s32.totalorder %s67, %s70
    %p79 = scmp.eq.s32.totalorder %s15, 3
    %p80 = por %p78, %p79
    %p81 = scmp.ne.s32.totalorder %s70, %s71
    %p82 = scmp.eq.s32.totalorder %s15, 0
    %p83 = por %p81, %p82
    %p84 = scmp.ne.s32.totalorder %s70, %s71
    %p85 = scmp.eq.s32.totalorder %s16, 3
    %p86 = por %p84, %p85
    %p88 = scmp.ne.s32.totalorder %s71, %s87
    %p89 = scmp.eq.s32.totalorder %s16, 0
    %p90 = por %p88, %p89
    %s91 = ssub.s32 %s10, %s17
    %p92 = scmp.eq.s32.totalorder %s91, 0
    %s94 = sadd.s32 %s93, 1
    %s95 = scalar_select %p92, %s93, %s94
    %p98 = pneg %p92
    %p99 = scmp.eq.s32.totalorder %s10, 3
    %p100 = por %p98, %p99
    %p101 = scmp.ne.s32.totalorder %s93, %s96
    %p102 = scmp.eq.s32.totalorder %s10, 0
    %p103 = por %p101, %p102
    %p104 = scmp.ne.s32.totalorder %s93, %s96
    %p105 = scmp.eq.s32.totalorder %s15, 3
    %p106 = por %p104, %p105
    %p107 = scmp.ne.s32.totalorder %s96, %s97
    %p108 = scmp.eq.s32.totalorder %s15, 0
    %p109 = por %p107, %p108
    %p110 = scmp.ne.s32.totalorder %s96, %s97
    %p111 = scmp.eq.s32.totalorder %s16, 3
    %p112 = por %p110, %p111
    %p114 = scmp.ne.s32.totalorder %s97, %s113
    %p115 = scmp.eq.s32.totalorder %s16, 0
    %p116 = por %p114, %p115
    %p117 = scmp.le.s32.totalorder 1, %s10
    %p118 = scmp.lt.s32.totalorder %s10, 5
    %p119 = pnand %p117, %p118
    %p120 = pneg %p119
    // Predicated region
    $region9: #{bottleneck_pallas.4} parent=5 // pred_check
      _
    $region10: #{bottleneck_pallas.4} parent=5 // pred_check_branch
      %122 = sbr.rel (%p119) target = $region12
    $region11: #{bottleneck_pallas.4} parent=5 // pred_region
      %s123 = ssub.s32 %s10, 1
      // Predicated region
      $region13: #{bottleneck_pallas.4} parent=11 // pred_check
        %p124 = pneg %p57
      $region14: #{bottleneck_pallas.4} parent=11 // pred_check_branch
        %126 = sbr.rel (%p124) target = $region16
      $region15: #{bottleneck_pallas.4} parent=11 // pred_region
        _
      $region16: #{bottleneck_pallas.4} parent=11 // pred_fallthru
        _
    $region12: #{bottleneck_pallas.4} parent=5 // pred_fallthru
      _
    %p127 = scmp.lt.s32.totalorder %s10, 4
    // Predicated region
    $region17: #{bottleneck_pallas.4} parent=5 // pred_check
      %p128 = pneg %p127
    $region18: #{bottleneck_pallas.4} parent=5 // pred_check_branch
      %130 = sbr.rel (%p128) target = $region20
    $region19: #{bottleneck_pallas.4} parent=5 // pred_region
      // Predicated region
      $region21: #{bottleneck_pallas.4} parent=19 // pred_check
        %p131 = pneg %p30
      $region22: #{bottleneck_pallas.4} parent=19 // pred_check_branch
        %133 = sbr.rel (%p131) target = $region24
      $region23: #{bottleneck_pallas.4} parent=19 // pred_region
        %s134 = smul.u32 16, %s10
        %p135 = scmp.lt.s32.totalorder %s134, 63
        %s136 = scalar_select %p135, %s134, 63
        %s137 = smul.addr %s136, 8
        %s138 = scalar_lea.vmem %s0, %s137
        %s139 = smul.u32 16, %s10
      $region24: #{bottleneck_pallas.4} parent=19 // pred_fallthru
        _
    $region20: #{bottleneck_pallas.4} parent=5 // pred_fallthru
      _
    %p140 = scmp.le.s32.totalorder 1, %s10
    %p141 = scmp.lt.s32.totalorder %s10, 5
    %p142 = pnand %p140, %p141
    %p143 = pneg %p142
    // Predicated region
    $region25: #{bottleneck_pallas.4} parent=5 // pred_check
      _
    $region26: #{bottleneck_pallas.4} parent=5 // pred_check_branch
      %145 = sbr.rel (%p142) target = $region28
    $region27: #{bottleneck_pallas.4} parent=5 // pred_region
      %s146 = ssub.s32 %s10, 1
      %s147 = smul.u32 16, %s15
      %p148 = scmp.lt.s32.totalorder %s147, 63
      %s149 = scalar_select %p148, %s147, 63
      %s150 = smul.addr %s149, 8
      %s151 = scalar_lea.vmem %s0, %s150
      %p152 = pneg %p36
      %p153 = pneg %p33
      %p154 = pneg %p57
      %p155 = pneg %p54
      %p156 = pneg %p83
      %p157 = pneg %p80
      %s158 = smul.u32 16, %s15
      %p159 = scmp.lt.s32.totalorder %s158, 63
      %s160 = scalar_select %p159, %s158, 63
      %s161 = smul.addr %s160, 8
      %s162 = scalar_lea.vmem %s2, %s161
      %p163 = pneg %p109
      %p164 = pneg %p106
      %p165 = scmp.lt.s32.totalorder %s15, 3
      %s166 = scalar_select %p165, %s15, 3
      %s167 = smul.addr %s166, 2
      %s168 = scalar_lea.vmem %s3, %s167
      %s169 = smul.u32 16, %s15
      %p170 = scmp.lt.s32.totalorder %s169, 63
      %s171 = scalar_select %p170, %s169, 63
      %s172 = smul.addr %s171, 8
      %s173 = scalar_lea.vmem %s0, %s172
      %s174 = smul.u32 16, %s15
      %s175 = smul.u32 16, %s15
      %p176 = scmp.lt.s32.totalorder %s175, 63
      %s177 = scalar_select %p176, %s175, 63
      %s178 = smul.addr %s177, 8
      %s179 = scalar_lea.vmem %s2, %s178
      %s180 = smul.u32 16, %s15
      %p181 = scmp.lt.s32.totalorder %s15, 3
      %s182 = scalar_select %p181, %s15, 3
      %s183 = smul.addr %s182, 2
      %s184 = scalar_lea.vmem %s3, %s183
      %v186 = vld [vmem:[%s173] sm:$0xff]
      %v187 = vld [vmem:[%s173 + $0x8] sm:$0xff]
      %v188 = vld [vmem:[%s173 + $0x10] sm:$0xff]
      %v189 = vld [vmem:[%s173 + $0x18] sm:$0xff]
      %v190 = vld [vmem:[%s173 + $0x20] sm:$0xff]
      %v191 = vld [vmem:[%s173 + $0x28] sm:$0xff]
      %v192 = vld [vmem:[%s173 + $0x30] sm:$0xff]
      %v193 = vld [vmem:[%s173 + $0x38] sm:$0xff]
      %v194 = vld [vmem:[%s173 + $0x40] sm:$0xff]
      %v195 = vld [vmem:[%s173 + $0x48] sm:$0xff]
      %v196 = vld [vmem:[%s173 + $0x50] sm:$0xff]
      %v197 = vld [vmem:[%s173 + $0x58] sm:$0xff]
      %v198 = vld [vmem:[%s173 + $0x60] sm:$0xff]
      %v199 = vld [vmem:[%s173 + $0x68] sm:$0xff]
      %v200 = vld [vmem:[%s173 + $0x70] sm:$0xff]
      %v201 = vld [vmem:[%s173 + $0x78] sm:$0xff]
      %v202 = vpack.c.bf16 %v187, %v186
      %v203 = vpack.c.bf16 %v189, %v188
      %v204 = vpack.c.bf16 %v191, %v190
      %v205 = vpack.c.bf16 %v193, %v192
      %v206 = vpack.c.bf16 %v195, %v194
      %v207 = vpack.c.bf16 %v197, %v196
      %v208 = vpack.c.bf16 %v199, %v198
      %v209 = vpack.c.bf16 %v201, %v200
      %v210 = vld [vmem:[%s1] sm:$0xf]
      %v211 = vld [vmem:[%s1 + $0x4] sm:$0xf]
      %v214 = vunpack.c.l.b16 %v210
      %v215 = vunpack.c.l.b16 %v211
      %v216 = vpack.c.b16 %v215, %v214
      %vm218 = vcmask 130048
      %v220 = vsel %vm218, %v202, 0
      %v223 = vsel %vm218, %v203, 0
      %v226 = vsel %vm218, %v204, 0
      %v229 = vsel %vm218, %v205, 0
      %v232 = vsel %vm218, %v206, 0
      %v235 = vsel %vm218, %v207, 0
      %v238 = vsel %vm218, %v208, 0
      %v241 = vsel %vm218, %v209, 0
      %243 = vmatprep.subr.bf16.mxu0 0
      %244 = vmatpush1.bf16.msra.mxu0 %v216
      %245 = vmatprep.subr.bf16.mxu0 0
      %246 = vmatpush1.bf16.msra.mxu0 0
      %247 = vmatprep.subr.bf16.mxu0 0
      %248 = vmatpush1.bf16.msra.mxu0 0
      %249 = vmatprep.subr.bf16.mxu0 0
      %250 = vmatpush1.bf16.msra.mxu0 0
      %251 = vmatprep.subr.bf16.mxu0 0
      %252 = vmatpush1.bf16.msra.mxu0 0
      %253 = vmatprep.subr.bf16.mxu0 0
      %254 = vmatpush1.bf16.msra.mxu0 0
      %255 = vmatprep.subr.bf16.mxu0 0
      %256 = vmatpush1.bf16.msra.mxu0 0
      %257 = vmatprep.subr.bf16.mxu0 0
      %258 = vmatpush1.bf16.msra.mxu0 0
      %259 = vmatprep.subr.bf16.mxu0 0
      %260 = vmatpush1.bf16.msra.mxu0 0
      %261 = vmatprep.subr.bf16.mxu0 0
      %262 = vmatpush1.bf16.msra.mxu0 0
      %263 = vmatprep.subr.bf16.mxu0 0
      %264 = vmatpush1.bf16.msra.mxu0 0
      %265 = vmatprep.subr.bf16.mxu0 0
      %266 = vmatpush1.bf16.msra.mxu0 0
      %267 = vmatprep.subr.bf16.mxu0 0
      %268 = vmatpush1.bf16.msra.mxu0 0
      %269 = vmatprep.subr.bf16.mxu0 0
      %270 = vmatpush1.bf16.msra.mxu0 0
      %271 = vmatprep.subr.bf16.mxu0 0
      %272 = vmatpush1.bf16.msra.mxu0 0
      %273 = vmatprep.subr.bf16.mxu0 0
      %274 = vmatpush1.bf16.msra.mxu0 0
      %275 = vmatprep.mubr.bf16.mxu0 0
      %276 = vmatmul.mubr.bf16.gmra.mrb[0].mxu0 %v220
      %v277 = vpop.f32.mrb[0].mxu0
      %v278 = vadd.f32 0.0, %v277
      %v279 = vpop.f32.mrb[0].mxu0
      %v280 = vpop.f32.mrb[0].mxu0
      %v281 = vadd.f32 0.0, %v280
      %v282 = vpop.f32.mrb[0].mxu0
      %283 = vmatprep.mubr.bf16.mxu0 0
      %284 = vmatmul.mubr.bf16.gmra.mrb[0].mxu0 %v223
      %v285 = vpop.f32.mrb[0].mxu0
      %v286 = vadd.f32 0.0, %v285
      %v287 = vpop.f32.mrb[0].mxu0
      %v288 = vpop.f32.mrb[0].mxu0
      %v289 = vadd.f32 0.0, %v288
      %v290 = vpop.f32.mrb[0].mxu0
      %291 = vmatprep.mubr.bf16.mxu0 0
      %292 = vmatmul.mubr.bf16.gmra.mrb[0].mxu0 %v226
      %v293 = vpop.f32.mrb[0].mxu0
      %v294 = vadd.f32 0.0, %v293
      %v295 = vpop.f32.mrb[0].mxu0
      %v296 = vpop.f32.mrb[0].mxu0
      %v297 = vadd.f32 0.0, %v296
      %v298 = vpop.f32.mrb[0].mxu0
      %299 = vmatprep.mubr.bf16.mxu0 0
      %300 = vmatmul.mubr.bf16.gmra.mrb[0].mxu0 %v229
      %v301 = vpop.f32.mrb[0].mxu0
      %v302 = vadd.f32 0.0, %v301
      %v303 = vpop.f32.mrb[0].mxu0
      %v304 = vpop.f32.mrb[0].mxu0
      %v305 = vadd.f32 0.0, %v304
      %v306 = vpop.f32.mrb[0].mxu0
      %307 = vmatprep.mubr.bf16.mxu0 0
      %308 = vmatmul.mubr.bf16.gmra.mrb[0].mxu0 %v232
      %v309 = vpop.f32.mrb[0].mxu0
      %v310 = vadd.f32 0.0, %v309
      %v311 = vpop.f32.mrb[0].mxu0
      %v312 = vpop.f32.mrb[0].mxu0
      %v313 = vadd.f32 0.0, %v312
      %v314 = vpop.f32.mrb[0].mxu0
      %315 = vmatprep.mubr.bf16.mxu0 0
      %316 = vmatmul.mubr.bf16.gmra.mrb[0].mxu0 %v235
      %v317 = vpop.f32.mrb[0].mxu0
      %v318 = vadd.f32 0.0, %v317
      %v319 = vpop.f32.mrb[0].mxu0
      %v320 = vpop.f32.mrb[0].mxu0
      %v321 = vadd.f32 0.0, %v320
      %v322 = vpop.f32.mrb[0].mxu0
      %323 = vmatprep.mubr.bf16.mxu0 0
      %324 = vmatmul.mubr.bf16.gmra.mrb[0].mxu0 %v238
      %v325 = vpop.f32.mrb[0].mxu0
      %v326 = vadd.f32 0.0, %v325
      %v327 = vpop.f32.mrb[0].mxu0
      %v328 = vpop.f32.mrb[0].mxu0
      %v329 = vadd.f32 0.0, %v328
      %v330 = vpop.f32.mrb[0].mxu0
      %331 = vmatprep.mubr.bf16.mxu0 0
      %332 = vmatmul.mubr.bf16.gmra.mrb[0].mxu0 %v241
      %v333 = vpop.f32.mrb[0].mxu0
      %v334 = vadd.f32 0.0, %v333
      %v335 = vpop.f32.mrb[0].mxu0
      %v336 = vpop.f32.mrb[0].mxu0
      %v337 = vadd.f32 0.0, %v336
      %v338 = vpop.f32.mrb[0].mxu0
      %339 = vdwg.mxu0
      %vm340 = vcmask 31744
      %341 = vst.msk [vmem:[%s179] sm:$0xff] %vm340, %v278
      %342 = vst.msk [vmem:[%s179 + $0x8] sm:$0xff] %vm340, %v281
      %343 = vst.msk [vmem:[%s179 + $0x10] sm:$0xff] %vm340, %v286
      %344 = vst.msk [vmem:[%s179 + $0x18] sm:$0xff] %vm340, %v289
      %345 = vst.msk [vmem:[%s179 + $0x20] sm:$0xff] %vm340, %v294
      %346 = vst.msk [vmem:[%s179 + $0x28] sm:$0xff] %vm340, %v297
      %347 = vst.msk [vmem:[%s179 + $0x30] sm:$0xff] %vm340, %v302
      %348 = vst.msk [vmem:[%s179 + $0x38] sm:$0xff] %vm340, %v305
      %349 = vst.msk [vmem:[%s179 + $0x40] sm:$0xff] %vm340, %v310
      %350 = vst.msk [vmem:[%s179 + $0x48] sm:$0xff] %vm340, %v313
      %351 = vst.msk [vmem:[%s179 + $0x50] sm:$0xff] %vm340, %v318
      %352 = vst.msk [vmem:[%s179 + $0x58] sm:$0xff] %vm340, %v321
      %353 = vst.msk [vmem:[%s179 + $0x60] sm:$0xff] %vm340, %v326
      %354 = vst.msk [vmem:[%s179 + $0x68] sm:$0xff] %vm340, %v329
      %355 = vst.msk [vmem:[%s179 + $0x70] sm:$0xff] %vm340, %v334
      %356 = vst.msk [vmem:[%s179 + $0x78] sm:$0xff] %vm340, %v337
      %v357 = vsel %vm340, %v278, 0.0
      %v358 = vsel %vm340, %v281, 0.0
      %v359 = vadd.f32 %v357, %v358
      %v360 = vsel %vm340, %v286, 0.0
      %v361 = vadd.f32 %v359, %v360
      %v362 = vsel %vm340, %v289, 0.0
      %v363 = vadd.f32 %v361, %v362
      %v364 = vsel %vm340, %v294, 0.0
      %v365 = vadd.f32 %v363, %v364
      %v366 = vsel %vm340, %v297, 0.0
      %v367 = vadd.f32 %v365, %v366
      %v368 = vsel %vm340, %v302, 0.0
      %v369 = vadd.f32 %v367, %v368
      %v370 = vsel %vm340, %v305, 0.0
      %v371 = vadd.f32 %v369, %v370
      %v372 = vsel %vm340, %v310, 0.0
      %v373 = vadd.f32 %v371, %v372
      %v374 = vsel %vm340, %v313, 0.0
      %v375 = vadd.f32 %v373, %v374
      %v376 = vsel %vm340, %v318, 0.0
      %v377 = vadd.f32 %v375, %v376
      %v378 = vsel %vm340, %v321, 0.0
      %v379 = vadd.f32 %v377, %v378
      %v380 = vsel %vm340, %v326, 0.0
      %v381 = vadd.f32 %v379, %v380
      %v382 = vsel %vm340, %v329, 0.0
      %v383 = vadd.f32 %v381, %v382
      %v384 = vsel %vm340, %v334, 0.0
      %v385 = vadd.f32 %v383, %v384
      %v386 = vsel %vm340, %v337, 0.0
      %v387 = vadd.f32 %v385, %v386
      %v388 = vrot.slane %v387, 4
      %v389 = vadd.f32 %v387, %v388
      %v390 = vrot.slane %v389, 2
      %v391 = vadd.f32 %v389, %v390
      %v392 = vrot.slane %v391, 1
      %v393 = vadd.f32 %v391, %v392
      %v394 = vmul.f32 %v278, %v278
      %v395 = vmul.f32 %v281, %v281
      %v396 = vmul.f32 %v286, %v286
      %v397 = vmul.f32 %v289, %v289
      %v398 = vmul.f32 %v294, %v294
      %v399 = vmul.f32 %v297, %v297
      %v400 = vmul.f32 %v302, %v302
      %v401 = vmul.f32 %v305, %v305
      %v402 = vmul.f32 %v310, %v310
      %v403 = vmul.f32 %v313, %v313
      %v404 = vmul.f32 %v318, %v318
      %v405 = vmul.f32 %v321, %v321
      %v406 = vmul.f32 %v326, %v326
      %v407 = vmul.f32 %v329, %v329
      %v408 = vmul.f32 %v334, %v334
      %v409 = vmul.f32 %v337, %v337
      %v410 = vsel %vm340, %v394, 0.0
      %v411 = vsel %vm340, %v395, 0.0
      %v412 = vadd.f32 %v410, %v411
      %v413 = vsel %vm340, %v396, 0.0
      %v414 = vadd.f32 %v412, %v413
      %v415 = vsel %vm340, %v397, 0.0
      %v416 = vadd.f32 %v414, %v415
      %v417 = vsel %vm340, %v398, 0.0
      %v418 = vadd.f32 %v416, %v417
      %v419 = vsel %vm340, %v399, 0.0
      %v420 = vadd.f32 %v418, %v419
      %v421 = vsel %vm340, %v400, 0.0
      %v422 = vadd.f32 %v420, %v421
      %v423 = vsel %vm340, %v401, 0.0
      %v424 = vadd.f32 %v422, %v423
      %v425 = vsel %vm340, %v402, 0.0
      %v426 = vadd.f32 %v424, %v425
      %v427 = vsel %vm340, %v403, 0.0
      %v428 = vadd.f32 %v426, %v427
      %v429 = vsel %vm340, %v404, 0.0
      %v430 = vadd.f32 %v428, %v429
      %v431 = vsel %vm340, %v405, 0.0
      %v432 = vadd.f32 %v430, %v431
      %v433 = vsel %vm340, %v406, 0.0
      %v434 = vadd.f32 %v432, %v433
      %v435 = vsel %vm340, %v407, 0.0
      %v436 = vadd.f32 %v434, %v435
      %v437 = vsel %vm340, %v408, 0.0
      %v438 = vadd.f32 %v436, %v437
      %v439 = vsel %vm340, %v409, 0.0
      %v440 = vadd.f32 %v438, %v439
      %v441 = vrot.slane %v440, 4
      %v442 = vadd.f32 %v440, %v441
      %v443 = vrot.slane %v442, 2
      %v444 = vadd.f32 %v442, %v443
      %v445 = vrot.slane %v444, 1
      %v446 = vadd.f32 %v444, %v445
      %vm447 = vcmask 1040384
      %v448 = vsel %vm447, %v393, %v446
      %vm449 = vcmask 25600
      %450 = vst.msk [vmem:[%s184] sm:$0x3] %vm449, %v448
      %s451 = smul.u32 16, %s15
      %p452 = scmp.lt.s32.totalorder %s451, 63
      %s453 = scalar_select %p452, %s451, 63
      %s454 = smul.addr %s453, 8
      %s455 = scalar_lea.vmem %s2, %s454
      %p456 = scmp.lt.s32.totalorder %s15, 3
      %s457 = scalar_select %p456, %s15, 3
      %s458 = smul.addr %s457, 2
      %s459 = scalar_lea.vmem %s3, %s458
      // Predicated region
      $region29: #{bottleneck_pallas.4} parent=27 // pred_check
        %p460 = pneg %p80
      $region30: #{bottleneck_pallas.4} parent=27 // pred_check_branch
        %462 = sbr.rel (%p460) target = $region32
      $region31: #{bottleneck_pallas.4} parent=27 // pred_region
        %s463 = smul.u32 16, %s15
      $region32: #{bottleneck_pallas.4} parent=27 // pred_fallthru
        _
      // Predicated region
      $region33: #{bottleneck_pallas.4} parent=27 // pred_check
        %p464 = pneg %p106
      $region34: #{bottleneck_pallas.4} parent=27 // pred_check_branch
        %466 = sbr.rel (%p464) target = $region36
      $region35: #{bottleneck_pallas.4} parent=27 // pred_region
        _
      $region36: #{bottleneck_pallas.4} parent=27 // pred_fallthru
        _
    $region28: #{bottleneck_pallas.4} parent=5 // pred_fallthru
      _
    %p467 = scmp.le.s32.totalorder 2, %s10
    // Predicated region
    $region37: #{bottleneck_pallas.4} parent=5 // pred_check
      %p468 = pneg %p467
    $region38: #{bottleneck_pallas.4} parent=5 // pred_check_branch
      %470 = sbr.rel (%p468) target = $region40
    $region39: #{bottleneck_pallas.4} parent=5 // pred_region
      %s471 = ssub.s32 %s10, 2
      // Predicated region
      $region41: #{bottleneck_pallas.4} parent=39 // pred_check
        %p472 = pneg %p86
      $region42: #{bottleneck_pallas.4} parent=39 // pred_check_branch
        %474 = sbr.rel (%p472) target = $region44
      $region43: #{bottleneck_pallas.4} parent=39 // pred_region
        %s475 = smul.u32 16, %s16
        %p476 = scmp.lt.s32.totalorder %s475, 63
        %s477 = scalar_select %p476, %s475, 63
        %s478 = smul.addr %s477, 8
        %s479 = scalar_lea.vmem %s2, %s478
      $region44: #{bottleneck_pallas.4} parent=39 // pred_fallthru
        _
      // Predicated region
      $region45: #{bottleneck_pallas.4} parent=39 // pred_check
        %p480 = pneg %p112
      $region46: #{bottleneck_pallas.4} parent=39 // pred_check_branch
        %482 = sbr.rel (%p480) target = $region48
      $region47: #{bottleneck_pallas.4} parent=39 // pred_region
        %p483 = scmp.lt.s32.totalorder %s16, 3
        %s484 = scalar_select %p483, %s16, 3
        %s485 = smul.addr %s484, 2
        %s486 = scalar_lea.vmem %s3, %s485
      $region48: #{bottleneck_pallas.4} parent=39 // pred_fallthru
        _
    $region40: #{bottleneck_pallas.4} parent=5 // pred_fallthru
      _
  $region6: #{bottleneck_pallas.4} parent=0 // loop_footer
    %s14 = sadd.s32 1, %s10
  $region7: #{bottleneck_pallas.4} parent=0 // loop_footer_branch
    %9 = sbr.rel target = $region3
  $region8: #{bottleneck_pallas.4} parent=0 // loop_exit
    _

// kernel: bottleneck_pallas.6
$region0: #{bottleneck_pallas.6}
  #allocation0 [shape = 'u32[]', space=smem, size = 0x4, offset = 0x4, fixed_abs, tag = 'smem constant byte address 0x4 - core index']
  #allocation1 [shape = 'u32[144,128]{1,0:T(1,128)}', space=vmem, size = 0x12000, scoped, tag = 'internal scratch']
  %s0 = inlined_call_operand.vmem [shape: f32[512,4], index: 0, kind: input, shape index: {}]
  %s1 = inlined_call_operand.vmem [shape: bf16[4,16], index: 1, kind: input, shape index: {}]
  %s2 = inlined_call_operand.vmem [shape: f32[1,4], index: 2, kind: input, shape index: {}]
  %s3 = inlined_call_operand.vmem [shape: f32[1,4], index: 3, kind: input, shape index: {}]
  %s4 = inlined_call_operand.vmem [shape: f32[512,16], index: 4, kind: output, shape index: {0}]
  %s5 = inlined_call_operand.vmem [shape: f32[4,2,16], index: 5, kind: output, shape index: {1}]
  %6 = xla_tuple %s4, %s5
  %s7 = sld [smem:[#allocation0]]
  $region57: #{bottleneck_pallas.6} parent=0
    _
  %s9 = ssub.s32 1, %s7
  %s10 = scalar_select 0, %s9, %s7
  loop: start=0, step=1, limit=6
  $region2: #{bottleneck_pallas.6} parent=0 // loop_pre_header
    _
  $region3: #{bottleneck_pallas.6} parent=0 // loop_header
    %s12 = sphi 0, %s16
    %p13 = scmp.ge.s32.totalorder %s12, 6
    %s22 = sphi 0, %s24
    %s25 = sphi 0, %s22
    %s26 = sphi 0, %s25
    %s42 = sphi 0, %s26
    %s46 = sphi 0, %s46
    %s48 = sphi 0, %s46
    %s49 = sphi 0, %s48
    %s63 = sphi 0, %s49
    %s67 = sphi 0, %s67
    %s69 = sphi 0, %s67
    %s70 = sphi 0, %s69
    %s84 = sphi 0, %s70
    %s88 = sphi 0, %s88
    %s90 = sphi 0, %s88
    %s91 = sphi 0, %s90
    %s105 = sphi 0, %s91
    %s111 = sphi 0, %s113
    %s114 = sphi 0, %s111
    %s115 = sphi 0, %s114
    %s131 = sphi 0, %s115
    %s137 = sphi 0, %s139
    %s140 = sphi 0, %s137
    %s141 = sphi 0, %s140
    %s157 = sphi 0, %s141
  $region4: #{bottleneck_pallas.6} parent=0 // loop_header_branch
    %15 = sbr.rel (%p13) target = $region8
  $region5: #{bottleneck_pallas.6} parent=0 // loop_body
    %s17 = ssub.s32 %s12, 1
    %s18 = ssub.s32 %s12, 2
    %s19 = sadd.s32 %s12, 1
    %s20 = ssub.s32 %s12, %s19
    %p21 = scmp.eq.s32.totalorder %s20, 0
    %s23 = sadd.s32 %s22, 1
    %s24 = scalar_select %p21, %s22, %s23
    %p27 = pneg %p21
    %p28 = scmp.eq.s32.totalorder %s12, 3
    %p29 = por %p27, %p28
    %p30 = scmp.ne.s32.totalorder %s22, %s25
    %p31 = scmp.eq.s32.totalorder %s12, 0
    %p32 = por %p30, %p31
    %p33 = scmp.ne.s32.totalorder %s22, %s25
    %p34 = scmp.eq.s32.totalorder %s17, 3
    %p35 = por %p33, %p34
    %p36 = scmp.ne.s32.totalorder %s25, %s26
    %p37 = scmp.eq.s32.totalorder %s17, 0
    %p38 = por %p36, %p37
    %p39 = scmp.ne.s32.totalorder %s25, %s26
    %p40 = scmp.eq.s32.totalorder %s18, 3
    %p41 = por %p39, %p40
    %p43 = scmp.ne.s32.totalorder %s26, %s42
    %p44 = scmp.eq.s32.totalorder %s18, 0
    %p45 = por %p43, %p44
    %s47 = sadd.s32 %s46, 1
    %p50 = scmp.eq.s32.totalorder %s12, 3
    %p51 = scmp.ne.s32.totalorder %s46, %s48
    %p52 = scmp.eq.s32.totalorder %s12, 0
    %p53 = por %p51, %p52
    %p54 = scmp.ne.s32.totalorder %s46, %s48
    %p55 = scmp.eq.s32.totalorder %s17, 3
    %p56 = por %p54, %p55
    %p57 = scmp.ne.s32.totalorder %s48, %s49
    %p58 = scmp.eq.s32.totalorder %s17, 0
    %p59 = por %p57, %p58
    %p60 = scmp.ne.s32.totalorder %s48, %s49
    %p61 = scmp.eq.s32.totalorder %s18, 3
    %p62 = por %p60, %p61
    %p64 = scmp.ne.s32.totalorder %s49, %s63
    %p65 = scmp.eq.s32.totalorder %s18, 0
    %p66 = por %p64, %p65
    %s68 = sadd.s32 %s67, 1
    %p71 = scmp.eq.s32.totalorder %s12, 3
    %p72 = scmp.ne.s32.totalorder %s67, %s69
    %p73 = scmp.eq.s32.totalorder %s12, 0
    %p74 = por %p72, %p73
    %p75 = scmp.ne.s32.totalorder %s67, %s69
    %p76 = scmp.eq.s32.totalorder %s17, 3
    %p77 = por %p75, %p76
    %p78 = scmp.ne.s32.totalorder %s69, %s70
    %p79 = scmp.eq.s32.totalorder %s17, 0
    %p80 = por %p78, %p79
    %p81 = scmp.ne.s32.totalorder %s69, %s70
    %p82 = scmp.eq.s32.totalorder %s18, 3
    %p83 = por %p81, %p82
    %p85 = scmp.ne.s32.totalorder %s70, %s84
    %p86 = scmp.eq.s32.totalorder %s18, 0
    %p87 = por %p85, %p86
    %s89 = sadd.s32 %s88, 1
    %p92 = scmp.eq.s32.totalorder %s12, 3
    %p93 = scmp.ne.s32.totalorder %s88, %s90
    %p94 = scmp.eq.s32.totalorder %s12, 0
    %p95 = por %p93, %p94
    %p96 = scmp.ne.s32.totalorder %s88, %s90
    %p97 = scmp.eq.s32.totalorder %s17, 3
    %p98 = por %p96, %p97
    %p99 = scmp.ne.s32.totalorder %s90, %s91
    %p100 = scmp.eq.s32.totalorder %s17, 0
    %p101 = por %p99, %p100
    %p102 = scmp.ne.s32.totalorder %s90, %s91
    %p103 = scmp.eq.s32.totalorder %s18, 3
    %p104 = por %p102, %p103
    %p106 = scmp.ne.s32.totalorder %s91, %s105
    %p107 = scmp.eq.s32.totalorder %s18, 0
    %p108 = por %p106, %p107
    %s109 = ssub.s32 %s12, %s19
    %p110 = scmp.eq.s32.totalorder %s109, 0
    %s112 = sadd.s32 %s111, 1
    %s113 = scalar_select %p110, %s111, %s112
    %p116 = pneg %p110
    %p117 = scmp.eq.s32.totalorder %s12, 3
    %p118 = por %p116, %p117
    %p119 = scmp.ne.s32.totalorder %s111, %s114
    %p120 = scmp.eq.s32.totalorder %s12, 0
    %p121 = por %p119, %p120
    %p122 = scmp.ne.s32.totalorder %s111, %s114
    %p123 = scmp.eq.s32.totalorder %s17, 3
    %p124 = por %p122, %p123
    %p125 = scmp.ne.s32.totalorder %s114, %s115
    %p126 = scmp.eq.s32.totalorder %s17, 0
    %p127 = por %p125, %p126
    %p128 = scmp.ne.s32.totalorder %s114, %s115
    %p129 = scmp.eq.s32.totalorder %s18, 3
    %p130 = por %p128, %p129
    %p132 = scmp.ne.s32.totalorder %s115, %s131
    %p133 = scmp.eq.s32.totalorder %s18, 0
    %p134 = por %p132, %p133
    %s135 = ssub.s32 %s12, %s19
    %p136 = scmp.eq.s32.totalorder %s135, 0
    %s138 = sadd.s32 %s137, 1
    %s139 = scalar_select %p136, %s137, %s138
    %p142 = pneg %p136
    %p143 = scmp.eq.s32.totalorder %s12, 3
    %p144 = por %p142, %p143
    %p145 = scmp.ne.s32.totalorder %s137, %s140
    %p146 = scmp.eq.s32.totalorder %s12, 0
    %p147 = por %p145, %p146
    %p148 = scmp.ne.s32.totalorder %s137, %s140
    %p149 = scmp.eq.s32.totalorder %s17, 3
    %p150 = por %p148, %p149
    %p151 = scmp.ne.s32.totalorder %s140, %s141
    %p152 = scmp.eq.s32.totalorder %s17, 0
    %p153 = por %p151, %p152
    %p154 = scmp.ne.s32.totalorder %s140, %s141
    %p155 = scmp.eq.s32.totalorder %s18, 3
    %p156 = por %p154, %p155
    %p158 = scmp.ne.s32.totalorder %s141, %s157
    %p159 = scmp.eq.s32.totalorder %s18, 0
    %p160 = por %p158, %p159
    %p161 = scmp.le.s32.totalorder 1, %s12
    %p162 = scmp.lt.s32.totalorder %s12, 5
    %p163 = pnand %p161, %p162
    %p164 = pneg %p163
    // Predicated region
    $region9: #{bottleneck_pallas.6} parent=5 // pred_check
      _
    $region10: #{bottleneck_pallas.6} parent=5 // pred_check_branch
      %166 = sbr.rel (%p163) target = $region12
    $region11: #{bottleneck_pallas.6} parent=5 // pred_region
      %s167 = ssub.s32 %s12, 1
      // Predicated region
      $region13: #{bottleneck_pallas.6} parent=11 // pred_check
        %p168 = pneg %p59
      $region14: #{bottleneck_pallas.6} parent=11 // pred_check_branch
        %170 = sbr.rel (%p168) target = $region16
      $region15: #{bottleneck_pallas.6} parent=11 // pred_region
        _
      $region16: #{bottleneck_pallas.6} parent=11 // pred_fallthru
        _
      // Predicated region
      $region17: #{bottleneck_pallas.6} parent=11 // pred_check
        %p171 = pneg %p80
      $region18: #{bottleneck_pallas.6} parent=11 // pred_check_branch
        %173 = sbr.rel (%p171) target = $region20
      $region19: #{bottleneck_pallas.6} parent=11 // pred_region
        _
      $region20: #{bottleneck_pallas.6} parent=11 // pred_fallthru
        _
      // Predicated region
      $region21: #{bottleneck_pallas.6} parent=11 // pred_check
        %p174 = pneg %p101
      $region22: #{bottleneck_pallas.6} parent=11 // pred_check_branch
        %176 = sbr.rel (%p174) target = $region24
      $region23: #{bottleneck_pallas.6} parent=11 // pred_region
        _
      $region24: #{bottleneck_pallas.6} parent=11 // pred_fallthru
        _
    $region12: #{bottleneck_pallas.6} parent=5 // pred_fallthru
      _
    %p177 = scmp.lt.s32.totalorder %s12, 4
    // Predicated region
    $region25: #{bottleneck_pallas.6} parent=5 // pred_check
      %p178 = pneg %p177
    $region26: #{bottleneck_pallas.6} parent=5 // pred_check_branch
      %180 = sbr.rel (%p178) target = $region28
    $region27: #{bottleneck_pallas.6} parent=5 // pred_region
      // Predicated region
      $region29: #{bottleneck_pallas.6} parent=27 // pred_check
        %p181 = pneg %p32
      $region30: #{bottleneck_pallas.6} parent=27 // pred_check_branch
        %183 = sbr.rel (%p181) target = $region32
      $region31: #{bottleneck_pallas.6} parent=27 // pred_region
        %s184 = smul.u32 16, %s12
        %p185 = scmp.lt.s32.totalorder %s184, 63
        %s186 = scalar_select %p185, %s184, 63
        %s187 = smul.addr %s186, 8
        %s188 = scalar_lea.vmem %s0, %s187
        %s189 = smul.u32 16, %s12
      $region32: #{bottleneck_pallas.6} parent=27 // pred_fallthru
        _
    $region28: #{bottleneck_pallas.6} parent=5 // pred_fallthru
      _
    %p190 = scmp.le.s32.totalorder 1, %s12
    %p191 = scmp.lt.s32.totalorder %s12, 5
    %p192 = pnand %p190, %p191
    %p193 = pneg %p192
    // Predicated region
    $region33: #{bottleneck_pallas.6} parent=5 // pred_check
      _
    $region34: #{bottleneck_pallas.6} parent=5 // pred_check_branch
      %195 = sbr.rel (%p192) target = $region36
    $region35: #{bottleneck_pallas.6} parent=5 // pred_region
      %s196 = ssub.s32 %s12, 1
      %s197 = smul.u32 16, %s17
      %p198 = scmp.lt.s32.totalorder %s197, 63
      %s199 = scalar_select %p198, %s197, 63
      %s200 = smul.addr %s199, 8
      %s201 = scalar_lea.vmem %s0, %s200
      %p202 = pneg %p38
      %p203 = pneg %p35
      %p204 = pneg %p59
      %p205 = pneg %p56
      %p206 = pneg %p80
      %p207 = pneg %p77
      %p208 = pneg %p101
      %p209 = pneg %p98
      %p210 = pneg %p127
      %p211 = pneg %p124
      %s212 = smul.u32 16, %s17
      %p213 = scmp.lt.s32.totalorder %s212, 63
      %s214 = scalar_select %p213, %s212, 63
      %s215 = smul.addr %s214, 8
      %s216 = scalar_lea.vmem %s4, %s215
      %p217 = pneg %p153
      %p218 = pneg %p150
      %p219 = scmp.lt.s32.totalorder %s17, 3
      %s220 = scalar_select %p219, %s17, 3
      %s221 = smul.addr %s220, 2
      %s222 = scalar_lea.vmem %s5, %s221
      %s223 = smul.u32 16, %s17
      %p224 = scmp.lt.s32.totalorder %s223, 63
      %s225 = scalar_select %p224, %s223, 63
      %s226 = smul.addr %s225, 8
      %s227 = scalar_lea.vmem %s0, %s226
      %s228 = smul.u32 16, %s17
      %s229 = smul.u32 16, %s17
      %p230 = scmp.lt.s32.totalorder %s229, 63
      %s231 = scalar_select %p230, %s229, 63
      %s232 = smul.addr %s231, 8
      %s233 = scalar_lea.vmem %s4, %s232
      %s234 = smul.u32 16, %s17
      %p235 = scmp.lt.s32.totalorder %s17, 3
      %s236 = scalar_select %p235, %s17, 3
      %s237 = smul.addr %s236, 2
      %s238 = scalar_lea.vmem %s5, %s237
      %v240 = vld [vmem:[%s227] sm:$0xff]
      %v241 = vld [vmem:[%s227 + $0x8] sm:$0xff]
      %v242 = vld [vmem:[%s227 + $0x10] sm:$0xff]
      %v243 = vld [vmem:[%s227 + $0x18] sm:$0xff]
      %v244 = vld [vmem:[%s227 + $0x20] sm:$0xff]
      %v245 = vld [vmem:[%s227 + $0x28] sm:$0xff]
      %v246 = vld [vmem:[%s227 + $0x30] sm:$0xff]
      %v247 = vld [vmem:[%s227 + $0x38] sm:$0xff]
      %v248 = vld [vmem:[%s227 + $0x40] sm:$0xff]
      %v249 = vld [vmem:[%s227 + $0x48] sm:$0xff]
      %v250 = vld [vmem:[%s227 + $0x50] sm:$0xff]
      %v251 = vld [vmem:[%s227 + $0x58] sm:$0xff]
      %v252 = vld [vmem:[%s227 + $0x60] sm:$0xff]
      %v253 = vld [vmem:[%s227 + $0x68] sm:$0xff]
      %v254 = vld [vmem:[%s227 + $0x70] sm:$0xff]
      %v255 = vld [vmem:[%s227 + $0x78] sm:$0xff]
      %v256 = vld [vmem:[%s2] sm:$0x1]
      %v258 = vlaneseq
      %v259 = vshrl.u32 %v258, 7
      %v260 = vsub.s32 0, %v259
      %v261 = vrot.slane %v256, %v260
      %v263 = vmul.f32 %v240, %v261
      %v264 = vmul.f32 %v241, %v261
      %v265 = vmul.f32 %v242, %v261
      %v266 = vmul.f32 %v243, %v261
      %v267 = vmul.f32 %v244, %v261
      %v268 = vmul.f32 %v245, %v261
      %v269 = vmul.f32 %v246, %v261
      %v270 = vmul.f32 %v247, %v261
      %v271 = vmul.f32 %v248, %v261
      %v272 = vmul.f32 %v249, %v261
      %v273 = vmul.f32 %v250, %v261
      %v274 = vmul.f32 %v251, %v261
      %v275 = vmul.f32 %v252, %v261
      %v276 = vmul.f32 %v253, %v261
      %v277 = vmul.f32 %v254, %v261
      %v278 = vmul.f32 %v255, %v261
      %v279 = vld [vmem:[%s3] sm:$0x1]
      %v281 = vlaneseq
      %v282 = vshrl.u32 %v281, 7
      %v283 = vsub.s32 0, %v282
      %v284 = vrot.slane %v279, %v283
      %v286 = vadd.f32 %v263, %v284
      %v287 = vadd.f32 %v264, %v284
      %v288 = vadd.f32 %v265, %v284
      %v289 = vadd.f32 %v266, %v284
      %v290 = vadd.f32 %v267, %v284
      %v291 = vadd.f32 %v268, %v284
      %v292 = vadd.f32 %v269, %v284
      %v293 = vadd.f32 %v270, %v284
      %v294 = vadd.f32 %v271, %v284
      %v295 = vadd.f32 %v272, %v284
      %v296 = vadd.f32 %v273, %v284
      %v297 = vadd.f32 %v274, %v284
      %v298 = vadd.f32 %v275, %v284
      %v299 = vadd.f32 %v276, %v284
      %v300 = vadd.f32 %v277, %v284
      %v301 = vadd.f32 %v278, %v284
      %v302 = vmax.f32 %v286, 0.0
      %v303 = vmax.f32 %v287, 0.0
      %v304 = vmax.f32 %v288, 0.0
      %v305 = vmax.f32 %v289, 0.0
      %v306 = vmax.f32 %v290, 0.0
      %v307 = vmax.f32 %v291, 0.0
      %v308 = vmax.f32 %v292, 0.0
      %v309 = vmax.f32 %v293, 0.0
      %v310 = vmax.f32 %v294, 0.0
      %v311 = vmax.f32 %v295, 0.0
      %v312 = vmax.f32 %v296, 0.0
      %v313 = vmax.f32 %v297, 0.0
      %v314 = vmax.f32 %v298, 0.0
      %v315 = vmax.f32 %v299, 0.0
      %v316 = vmax.f32 %v300, 0.0
      %v317 = vmax.f32 %v301, 0.0
      %v318 = vpack.c.bf16 %v303, %v302
      %v319 = vpack.c.bf16 %v305, %v304
      %v320 = vpack.c.bf16 %v307, %v306
      %v321 = vpack.c.bf16 %v309, %v308
      %v322 = vpack.c.bf16 %v311, %v310
      %v323 = vpack.c.bf16 %v313, %v312
      %v324 = vpack.c.bf16 %v315, %v314
      %v325 = vpack.c.bf16 %v317, %v316
      %v326 = vld [vmem:[%s1] sm:$0x3]
      %vm327 = vcmask 31744
      %v329 = vsel %vm327, %v318, 0
      %v332 = vsel %vm327, %v319, 0
      %v335 = vsel %vm327, %v320, 0
      %v338 = vsel %vm327, %v321, 0
      %v341 = vsel %vm327, %v322, 0
      %v344 = vsel %vm327, %v323, 0
      %v347 = vsel %vm327, %v324, 0
      %v350 = vsel %vm327, %v325, 0
      %vm352 = vcmask 1041408
      %v354 = vsel %vm352, %v326, 0
      %356 = vmatprep.subr.bf16.mxu0 0
      %357 = vmatpush1.bf16.msra.mxu0 %v354
      %358 = vmatprep.subr.bf16.mxu0 0
      %359 = vmatpush1.bf16.msra.mxu0 0
      %360 = vmatprep.subr.bf16.mxu0 0
      %361 = vmatpush1.bf16.msra.mxu0 0
      %362 = vmatprep.subr.bf16.mxu0 0
      %363 = vmatpush1.bf16.msra.mxu0 0
      %364 = vmatprep.subr.bf16.mxu0 0
      %365 = vmatpush1.bf16.msra.mxu0 0
      %366 = vmatprep.subr.bf16.mxu0 0
      %367 = vmatpush1.bf16.msra.mxu0 0
      %368 = vmatprep.subr.bf16.mxu0 0
      %369 = vmatpush1.bf16.msra.mxu0 0
      %370 = vmatprep.subr.bf16.mxu0 0
      %371 = vmatpush1.bf16.msra.mxu0 0
      %372 = vmatprep.subr.bf16.mxu0 0
      %373 = vmatpush1.bf16.msra.mxu0 0
      %374 = vmatprep.subr.bf16.mxu0 0
      %375 = vmatpush1.bf16.msra.mxu0 0
      %376 = vmatprep.subr.bf16.mxu0 0
      %377 = vmatpush1.bf16.msra.mxu0 0
      %378 = vmatprep.subr.bf16.mxu0 0
      %379 = vmatpush1.bf16.msra.mxu0 0
      %380 = vmatprep.subr.bf16.mxu0 0
      %381 = vmatpush1.bf16.msra.mxu0 0
      %382 = vmatprep.subr.bf16.mxu0 0
      %383 = vmatpush1.bf16.msra.mxu0 0
      %384 = vmatprep.subr.bf16.mxu0 0
      %385 = vmatpush1.bf16.msra.mxu0 0
      %386 = vmatprep.subr.bf16.mxu0 0
      %387 = vmatpush1.bf16.msra.mxu0 0
      %388 = vmatprep.mubr.bf16.mxu0 0
      %389 = vmatmul.mubr.bf16.gmra.mrb[0].mxu0 %v329
      %v390 = vpop.f32.mrb[0].mxu0
      %v391 = vadd.f32 0.0, %v390
      %v392 = vpop.f32.mrb[0].mxu0
      %v393 = vpop.f32.mrb[0].mxu0
      %v394 = vadd.f32 0.0, %v393
      %v395 = vpop.f32.mrb[0].mxu0
      %396 = vmatprep.mubr.bf16.mxu0 0
      %397 = vmatmul.mubr.bf16.gmra.mrb[0].mxu0 %v332
      %v398 = vpop.f32.mrb[0].mxu0
      %v399 = vadd.f32 0.0, %v398
      %v400 = vpop.f32.mrb[0].mxu0
      %v401 = vpop.f32.mrb[0].mxu0
      %v402 = vadd.f32 0.0, %v401
      %v403 = vpop.f32.mrb[0].mxu0
      %404 = vmatprep.mubr.bf16.mxu0 0
      %405 = vmatmul.mubr.bf16.gmra.mrb[0].mxu0 %v335
      %v406 = vpop.f32.mrb[0].mxu0
      %v407 = vadd.f32 0.0, %v406
      %v408 = vpop.f32.mrb[0].mxu0
      %v409 = vpop.f32.mrb[0].mxu0
      %v410 = vadd.f32 0.0, %v409
      %v411 = vpop.f32.mrb[0].mxu0
      %412 = vmatprep.mubr.bf16.mxu0 0
      %413 = vmatmul.mubr.bf16.gmra.mrb[0].mxu0 %v338
      %v414 = vpop.f32.mrb[0].mxu0
      %v415 = vadd.f32 0.0, %v414
      %v416 = vpop.f32.mrb[0].mxu0
      %v417 = vpop.f32.mrb[0].mxu0
      %v418 = vadd.f32 0.0, %v417
      %v419 = vpop.f32.mrb[0].mxu0
      %420 = vmatprep.mubr.bf16.mxu0 0
      %421 = vmatmul.mubr.bf16.gmra.mrb[0].mxu0 %v341
      %v422 = vpop.f32.mrb[0].mxu0
      %v423 = vadd.f32 0.0, %v422
      %v424 = vpop.f32.mrb[0].mxu0
      %v425 = vpop.f32.mrb[0].mxu0
      %v426 = vadd.f32 0.0, %v425
      %v427 = vpop.f32.mrb[0].mxu0
      %428 = vmatprep.mubr.bf16.mxu0 0
      %429 = vmatmul.mubr.bf16.gmra.mrb[0].mxu0 %v344
      %v430 = vpop.f32.mrb[0].mxu0
      %v431 = vadd.f32 0.0, %v430
      %v432 = vpop.f32.mrb[0].mxu0
      %v433 = vpop.f32.mrb[0].mxu0
      %v434 = vadd.f32 0.0, %v433
      %v435 = vpop.f32.mrb[0].mxu0
      %436 = vmatprep.mubr.bf16.mxu0 0
      %437 = vmatmul.mubr.bf16.gmra.mrb[0].mxu0 %v347
      %v438 = vpop.f32.mrb[0].mxu0
      %v439 = vadd.f32 0.0, %v438
      %v440 = vpop.f32.mrb[0].mxu0
      %v441 = vpop.f32.mrb[0].mxu0
      %v442 = vadd.f32 0.0, %v441
      %v443 = vpop.f32.mrb[0].mxu0
      %444 = vmatprep.mubr.bf16.mxu0 0
      %445 = vmatmul.mubr.bf16.gmra.mrb[0].mxu0 %v350
      %v446 = vpop.f32.mrb[0].mxu0
      %v447 = vadd.f32 0.0, %v446
      %v448 = vpop.f32.mrb[0].mxu0
      %v449 = vpop.f32.mrb[0].mxu0
      %v450 = vadd.f32 0.0, %v449
      %v451 = vpop.f32.mrb[0].mxu0
      %452 = vdwg.mxu0
      %vm453 = vcmask 130048
      %454 = vst.msk [vmem:[%s233] sm:$0xff] %vm453, %v391
      %455 = vst.msk [vmem:[%s233 + $0x8] sm:$0xff] %vm453, %v394
      %456 = vst.msk [vmem:[%s233 + $0x10] sm:$0xff] %vm453, %v399
      %457 = vst.msk [vmem:[%s233 + $0x18] sm:$0xff] %vm453, %v402
      %458 = vst.msk [vmem:[%s233 + $0x20] sm:$0xff] %vm453, %v407
      %459 = vst.msk [vmem:[%s233 + $0x28] sm:$0xff] %vm453, %v410
      %460 = vst.msk [vmem:[%s233 + $0x30] sm:$0xff] %vm453, %v415
      %461 = vst.msk [vmem:[%s233 + $0x38] sm:$0xff] %vm453, %v418
      %462 = vst.msk [vmem:[%s233 + $0x40] sm:$0xff] %vm453, %v423
      %463 = vst.msk [vmem:[%s233 + $0x48] sm:$0xff] %vm453, %v426
      %464 = vst.msk [vmem:[%s233 + $0x50] sm:$0xff] %vm453, %v431
      %465 = vst.msk [vmem:[%s233 + $0x58] sm:$0xff] %vm453, %v434
      %466 = vst.msk [vmem:[%s233 + $0x60] sm:$0xff] %vm453, %v439
      %467 = vst.msk [vmem:[%s233 + $0x68] sm:$0xff] %vm453, %v442
      %468 = vst.msk [vmem:[%s233 + $0x70] sm:$0xff] %vm453, %v447
      %469 = vst.msk [vmem:[%s233 + $0x78] sm:$0xff] %vm453, %v450
      %v470 = vsel %vm453, %v391, 0.0
      %v471 = vsel %vm453, %v394, 0.0
      %v472 = vadd.f32 %v470, %v471
      %v473 = vsel %vm453, %v399, 0.0
      %v474 = vadd.f32 %v472, %v473
      %v475 = vsel %vm453, %v402, 0.0
      %v476 = vadd.f32 %v474, %v475
      %v477 = vsel %vm453, %v407, 0.0
      %v478 = vadd.f32 %v476, %v477
      %v479 = vsel %vm453, %v410, 0.0
      %v480 = vadd.f32 %v478, %v479
      %v481 = vsel %vm453, %v415, 0.0
      %v482 = vadd.f32 %v480, %v481
      %v483 = vsel %vm453, %v418, 0.0
      %v484 = vadd.f32 %v482, %v483
      %v485 = vsel %vm453, %v423, 0.0
      %v486 = vadd.f32 %v484, %v485
      %v487 = vsel %vm453, %v426, 0.0
      %v488 = vadd.f32 %v486, %v487
      %v489 = vsel %vm453, %v431, 0.0
      %v490 = vadd.f32 %v488, %v489
      %v491 = vsel %vm453, %v434, 0.0
      %v492 = vadd.f32 %v490, %v491
      %v493 = vsel %vm453, %v439, 0.0
      %v494 = vadd.f32 %v492, %v493
      %v495 = vsel %vm453, %v442, 0.0
      %v496 = vadd.f32 %v494, %v495
      %v497 = vsel %vm453, %v447, 0.0
      %v498 = vadd.f32 %v496, %v497
      %v499 = vsel %vm453, %v450, 0.0
      %v500 = vadd.f32 %v498, %v499
      %v501 = vrot.slane %v500, 4
      %v502 = vadd.f32 %v500, %v501
      %v503 = vrot.slane %v502, 2
      %v504 = vadd.f32 %v502, %v503
      %v505 = vrot.slane %v504, 1
      %v506 = vadd.f32 %v504, %v505
      %v507 = vmul.f32 %v391, %v391
      %v508 = vmul.f32 %v394, %v394
      %v509 = vmul.f32 %v399, %v399
      %v510 = vmul.f32 %v402, %v402
      %v511 = vmul.f32 %v407, %v407
      %v512 = vmul.f32 %v410, %v410
      %v513 = vmul.f32 %v415, %v415
      %v514 = vmul.f32 %v418, %v418
      %v515 = vmul.f32 %v423, %v423
      %v516 = vmul.f32 %v426, %v426
      %v517 = vmul.f32 %v431, %v431
      %v518 = vmul.f32 %v434, %v434
      %v519 = vmul.f32 %v439, %v439
      %v520 = vmul.f32 %v442, %v442
      %v521 = vmul.f32 %v447, %v447
      %v522 = vmul.f32 %v450, %v450
      %v523 = vsel %vm453, %v507, 0.0
      %v524 = vsel %vm453, %v508, 0.0
      %v525 = vadd.f32 %v523, %v524
      %v526 = vsel %vm453, %v509, 0.0
      %v527 = vadd.f32 %v525, %v526
      %v528 = vsel %vm453, %v510, 0.0
      %v529 = vadd.f32 %v527, %v528
      %v530 = vsel %vm453, %v511, 0.0
      %v531 = vadd.f32 %v529, %v530
      %v532 = vsel %vm453, %v512, 0.0
      %v533 = vadd.f32 %v531, %v532
      %v534 = vsel %vm453, %v513, 0.0
      %v535 = vadd.f32 %v533, %v534
      %v536 = vsel %vm453, %v514, 0.0
      %v537 = vadd.f32 %v535, %v536
      %v538 = vsel %vm453, %v515, 0.0
      %v539 = vadd.f32 %v537, %v538
      %v540 = vsel %vm453, %v516, 0.0
      %v541 = vadd.f32 %v539, %v540
      %v542 = vsel %vm453, %v517, 0.0
      %v543 = vadd.f32 %v541, %v542
      %v544 = vsel %vm453, %v518, 0.0
      %v545 = vadd.f32 %v543, %v544
      %v546 = vsel %vm453, %v519, 0.0
      %v547 = vadd.f32 %v545, %v546
      %v548 = vsel %vm453, %v520, 0.0
      %v549 = vadd.f32 %v547, %v548
      %v550 = vsel %vm453, %v521, 0.0
      %v551 = vadd.f32 %v549, %v550
      %v552 = vsel %vm453, %v522, 0.0
      %v553 = vadd.f32 %v551, %v552
      %v554 = vrot.slane %v553, 4
      %v555 = vadd.f32 %v553, %v554
      %v556 = vrot.slane %v555, 2
      %v557 = vadd.f32 %v555, %v556
      %v558 = vrot.slane %v557, 1
      %v559 = vadd.f32 %v557, %v558
      %vm560 = vcmask 1040384
      %v561 = vsel %vm560, %v506, %v559
      %vm562 = vcmask 123904
      %563 = vst.msk [vmem:[%s238] sm:$0x3] %vm562, %v561
      %s564 = smul.u32 16, %s17
      %p565 = scmp.lt.s32.totalorder %s564, 63
      %s566 = scalar_select %p565, %s564, 63
      %s567 = smul.addr %s566, 8
      %s568 = scalar_lea.vmem %s4, %s567
      %p569 = scmp.lt.s32.totalorder %s17, 3
      %s570 = scalar_select %p569, %s17, 3
      %s571 = smul.addr %s570, 2
      %s572 = scalar_lea.vmem %s5, %s571
      // Predicated region
      $region37: #{bottleneck_pallas.6} parent=35 // pred_check
        %p573 = pneg %p124
      $region38: #{bottleneck_pallas.6} parent=35 // pred_check_branch
        %575 = sbr.rel (%p573) target = $region40
      $region39: #{bottleneck_pallas.6} parent=35 // pred_region
        %s576 = smul.u32 16, %s17
      $region40: #{bottleneck_pallas.6} parent=35 // pred_fallthru
        _
      // Predicated region
      $region41: #{bottleneck_pallas.6} parent=35 // pred_check
        %p577 = pneg %p150
      $region42: #{bottleneck_pallas.6} parent=35 // pred_check_branch
        %579 = sbr.rel (%p577) target = $region44
      $region43: #{bottleneck_pallas.6} parent=35 // pred_region
        _
      $region44: #{bottleneck_pallas.6} parent=35 // pred_fallthru
        _
    $region36: #{bottleneck_pallas.6} parent=5 // pred_fallthru
      _
    %p580 = scmp.le.s32.totalorder 2, %s12
    // Predicated region
    $region45: #{bottleneck_pallas.6} parent=5 // pred_check
      %p581 = pneg %p580
    $region46: #{bottleneck_pallas.6} parent=5 // pred_check_branch
      %583 = sbr.rel (%p581) target = $region48
    $region47: #{bottleneck_pallas.6} parent=5 // pred_region
      %s584 = ssub.s32 %s12, 2
      // Predicated region
      $region49: #{bottleneck_pallas.6} parent=47 // pred_check
        %p585 = pneg %p130
      $region50: #{bottleneck_pallas.6} parent=47 // pred_check_branch
        %587 = sbr.rel (%p585) target = $region52
      $region51: #{bottleneck_pallas.6} parent=47 // pred_region
        %s588 = smul.u32 16, %s18
        %p589 = scmp.lt.s32.totalorder %s588, 63
        %s590 = scalar_select %p589, %s588, 63
        %s591 = smul.addr %s590, 8
        %s592 = scalar_lea.vmem %s4, %s591
      $region52: #{bottleneck_pallas.6} parent=47 // pred_fallthru
        _
      // Predicated region
      $region53: #{bottleneck_pallas.6} parent=47 // pred_check
        %p593 = pneg %p156
      $region54: #{bottleneck_pallas.6} parent=47 // pred_check_branch
        %595 = sbr.rel (%p593) target = $region56
      $region55: #{bottleneck_pallas.6} parent=47 // pred_region
        %p596 = scmp.lt.s32.totalorder %s18, 3
        %s597 = scalar_select %p596, %s18, 3
        %s598 = smul.addr %s597, 2
        %s599 = scalar_lea.vmem %s5, %s598
      $region56: #{bottleneck_pallas.6} parent=47 // pred_fallthru
        _
    $region48: #{bottleneck_pallas.6} parent=5 // pred_fallthru
      _
  $region6: #{bottleneck_pallas.6} parent=0 // loop_footer
    %s16 = sadd.s32 1, %s12
  $region7: #{bottleneck_pallas.6} parent=0 // loop_footer_branch
    %11 = sbr.rel target = $region3
  $region8: #{bottleneck_pallas.6} parent=0 // loop_exit
    _

// kernel: bottleneck_pallas.7
$region0: #{bottleneck_pallas.7}
  #allocation0 [shape = 'u32[]', space=smem, size = 0x4, offset = 0x4, fixed_abs, tag = 'smem constant byte address 0x4 - core index']
  #allocation1 [shape = 'u32[144,128]{1,0:T(1,128)}', space=vmem, size = 0x12000, scoped, tag = 'internal scratch']
  %s0 = inlined_call_operand.vmem [shape: f32[32,256], index: 0, kind: input, shape index: {}]
  %s1 = inlined_call_operand.vmem [shape: f32[32,256], index: 1, kind: input, shape index: {}]
  %s2 = inlined_call_operand.vmem [shape: f32[1,256], index: 2, kind: input, shape index: {}]
  %s3 = inlined_call_operand.vmem [shape: f32[1,256], index: 3, kind: input, shape index: {}]
  %s4 = inlined_call_operand.vmem [shape: f32[32,256], index: 4, kind: output, shape index: {}]
  %s5 = sld [smem:[#allocation0]]
  $region49: #{bottleneck_pallas.7} parent=0
    _
  %s7 = ssub.s32 1, %s5
  %s8 = scalar_select 0, %s7, %s5
  loop: start=0, step=1, limit=6
  $region2: #{bottleneck_pallas.7} parent=0 // loop_pre_header
    _
  $region3: #{bottleneck_pallas.7} parent=0 // loop_header
    %s10 = sphi 0, %s14
    %p11 = scmp.ge.s32.totalorder %s10, 6
    %s20 = sphi 0, %s22
    %s23 = sphi 0, %s20
    %s24 = sphi 0, %s23
    %s40 = sphi 0, %s24
    %s46 = sphi 0, %s48
    %s49 = sphi 0, %s46
    %s50 = sphi 0, %s49
    %s66 = sphi 0, %s50
    %s70 = sphi 0, %s70
    %s72 = sphi 0, %s70
    %s73 = sphi 0, %s72
    %s87 = sphi 0, %s73
    %s91 = sphi 0, %s91
    %s93 = sphi 0, %s91
    %s94 = sphi 0, %s93
    %s108 = sphi 0, %s94
    %s114 = sphi 0, %s116
    %s117 = sphi 0, %s114
    %s118 = sphi 0, %s117
    %s134 = sphi 0, %s118
  $region4: #{bottleneck_pallas.7} parent=0 // loop_header_branch
    %13 = sbr.rel (%p11) target = $region8
  $region5: #{bottleneck_pallas.7} parent=0 // loop_body
    %s15 = ssub.s32 %s10, 1
    %s16 = ssub.s32 %s10, 2
    %s17 = sadd.s32 %s10, 1
    %s18 = ssub.s32 %s10, %s17
    %p19 = scmp.eq.s32.totalorder %s18, 0
    %s21 = sadd.s32 %s20, 1
    %s22 = scalar_select %p19, %s20, %s21
    %p25 = pneg %p19
    %p26 = scmp.eq.s32.totalorder %s10, 3
    %p27 = por %p25, %p26
    %p28 = scmp.ne.s32.totalorder %s20, %s23
    %p29 = scmp.eq.s32.totalorder %s10, 0
    %p30 = por %p28, %p29
    %p31 = scmp.ne.s32.totalorder %s20, %s23
    %p32 = scmp.eq.s32.totalorder %s15, 3
    %p33 = por %p31, %p32
    %p34 = scmp.ne.s32.totalorder %s23, %s24
    %p35 = scmp.eq.s32.totalorder %s15, 0
    %p36 = por %p34, %p35
    %p37 = scmp.ne.s32.totalorder %s23, %s24
    %p38 = scmp.eq.s32.totalorder %s16, 3
    %p39 = por %p37, %p38
    %p41 = scmp.ne.s32.totalorder %s24, %s40
    %p42 = scmp.eq.s32.totalorder %s16, 0
    %p43 = por %p41, %p42
    %s44 = ssub.s32 %s10, %s17
    %p45 = scmp.eq.s32.totalorder %s44, 0
    %s47 = sadd.s32 %s46, 1
    %s48 = scalar_select %p45, %s46, %s47
    %p51 = pneg %p45
    %p52 = scmp.eq.s32.totalorder %s10, 3
    %p53 = por %p51, %p52
    %p54 = scmp.ne.s32.totalorder %s46, %s49
    %p55 = scmp.eq.s32.totalorder %s10, 0
    %p56 = por %p54, %p55
    %p57 = scmp.ne.s32.totalorder %s46, %s49
    %p58 = scmp.eq.s32.totalorder %s15, 3
    %p59 = por %p57, %p58
    %p60 = scmp.ne.s32.totalorder %s49, %s50
    %p61 = scmp.eq.s32.totalorder %s15, 0
    %p62 = por %p60, %p61
    %p63 = scmp.ne.s32.totalorder %s49, %s50
    %p64 = scmp.eq.s32.totalorder %s16, 3
    %p65 = por %p63, %p64
    %p67 = scmp.ne.s32.totalorder %s50, %s66
    %p68 = scmp.eq.s32.totalorder %s16, 0
    %p69 = por %p67, %p68
    %s71 = sadd.s32 %s70, 1
    %p74 = scmp.eq.s32.totalorder %s10, 3
    %p75 = scmp.ne.s32.totalorder %s70, %s72
    %p76 = scmp.eq.s32.totalorder %s10, 0
    %p77 = por %p75, %p76
    %p78 = scmp.ne.s32.totalorder %s70, %s72
    %p79 = scmp.eq.s32.totalorder %s15, 3
    %p80 = por %p78, %p79
    %p81 = scmp.ne.s32.totalorder %s72, %s73
    %p82 = scmp.eq.s32.totalorder %s15, 0
    %p83 = por %p81, %p82
    %p84 = scmp.ne.s32.totalorder %s72, %s73
    %p85 = scmp.eq.s32.totalorder %s16, 3
    %p86 = por %p84, %p85
    %p88 = scmp.ne.s32.totalorder %s73, %s87
    %p89 = scmp.eq.s32.totalorder %s16, 0
    %p90 = por %p88, %p89
    %s92 = sadd.s32 %s91, 1
    %p95 = scmp.eq.s32.totalorder %s10, 3
    %p96 = scmp.ne.s32.totalorder %s91, %s93
    %p97 = scmp.eq.s32.totalorder %s10, 0
    %p98 = por %p96, %p97
    %p99 = scmp.ne.s32.totalorder %s91, %s93
    %p100 = scmp.eq.s32.totalorder %s15, 3
    %p101 = por %p99, %p100
    %p102 = scmp.ne.s32.totalorder %s93, %s94
    %p103 = scmp.eq.s32.totalorder %s15, 0
    %p104 = por %p102, %p103
    %p105 = scmp.ne.s32.totalorder %s93, %s94
    %p106 = scmp.eq.s32.totalorder %s16, 3
    %p107 = por %p105, %p106
    %p109 = scmp.ne.s32.totalorder %s94, %s108
    %p110 = scmp.eq.s32.totalorder %s16, 0
    %p111 = por %p109, %p110
    %s112 = ssub.s32 %s10, %s17
    %p113 = scmp.eq.s32.totalorder %s112, 0
    %s115 = sadd.s32 %s114, 1
    %s116 = scalar_select %p113, %s114, %s115
    %p119 = pneg %p113
    %p120 = scmp.eq.s32.totalorder %s10, 3
    %p121 = por %p119, %p120
    %p122 = scmp.ne.s32.totalorder %s114, %s117
    %p123 = scmp.eq.s32.totalorder %s10, 0
    %p124 = por %p122, %p123
    %p125 = scmp.ne.s32.totalorder %s114, %s117
    %p126 = scmp.eq.s32.totalorder %s15, 3
    %p127 = por %p125, %p126
    %p128 = scmp.ne.s32.totalorder %s117, %s118
    %p129 = scmp.eq.s32.totalorder %s15, 0
    %p130 = por %p128, %p129
    %p131 = scmp.ne.s32.totalorder %s117, %s118
    %p132 = scmp.eq.s32.totalorder %s16, 3
    %p133 = por %p131, %p132
    %p135 = scmp.ne.s32.totalorder %s118, %s134
    %p136 = scmp.eq.s32.totalorder %s16, 0
    %p137 = por %p135, %p136
    %p138 = scmp.le.s32.totalorder 1, %s10
    %p139 = scmp.lt.s32.totalorder %s10, 5
    %p140 = pnand %p138, %p139
    %p141 = pneg %p140
    // Predicated region
    $region9: #{bottleneck_pallas.7} parent=5 // pred_check
      _
    $region10: #{bottleneck_pallas.7} parent=5 // pred_check_branch
      %143 = sbr.rel (%p140) target = $region12
    $region11: #{bottleneck_pallas.7} parent=5 // pred_region
      %s144 = ssub.s32 %s10, 1
      // Predicated region
      $region13: #{bottleneck_pallas.7} parent=11 // pred_check
        %p145 = pneg %p83
      $region14: #{bottleneck_pallas.7} parent=11 // pred_check_branch
        %147 = sbr.rel (%p145) target = $region16
      $region15: #{bottleneck_pallas.7} parent=11 // pred_region
        _
      $region16: #{bottleneck_pallas.7} parent=11 // pred_fallthru
        _
      // Predicated region
      $region17: #{bottleneck_pallas.7} parent=11 // pred_check
        %p148 = pneg %p104
      $region18: #{bottleneck_pallas.7} parent=11 // pred_check_branch
        %150 = sbr.rel (%p148) target = $region20
      $region19: #{bottleneck_pallas.7} parent=11 // pred_region
        _
      $region20: #{bottleneck_pallas.7} parent=11 // pred_fallthru
        _
    $region12: #{bottleneck_pallas.7} parent=5 // pred_fallthru
      _
    %p151 = scmp.lt.s32.totalorder %s10, 4
    // Predicated region
    $region21: #{bottleneck_pallas.7} parent=5 // pred_check
      %p152 = pneg %p151
    $region22: #{bottleneck_pallas.7} parent=5 // pred_check_branch
      %154 = sbr.rel (%p152) target = $region24
    $region23: #{bottleneck_pallas.7} parent=5 // pred_region
      // Predicated region
      $region25: #{bottleneck_pallas.7} parent=23 // pred_check
        %p155 = pneg %p30
      $region26: #{bottleneck_pallas.7} parent=23 // pred_check_branch
        %157 = sbr.rel (%p155) target = $region28
      $region27: #{bottleneck_pallas.7} parent=23 // pred_region
        %p158 = scmp.lt.s32.totalorder %s10, 3
        %s159 = scalar_select %p158, %s10, 3
        %s160 = smul.addr %s159, 2
        %s161 = smul.addr %s160, 8
        %s162 = scalar_lea.vmem %s0, %s161
      $region28: #{bottleneck_pallas.7} parent=23 // pred_fallthru
        _
      // Predicated region
      $region29: #{bottleneck_pallas.7} parent=23 // pred_check
        %p163 = pneg %p56
      $region30: #{bottleneck_pallas.7} parent=23 // pred_check_branch
        %165 = sbr.rel (%p163) target = $region32
      $region31: #{bottleneck_pallas.7} parent=23 // pred_region
        %p166 = scmp.lt.s32.totalorder %s10, 3
        %s167 = scalar_select %p166, %s10, 3
        %s168 = smul.addr %s167, 2
        %s169 = smul.addr %s168, 8
        %s170 = scalar_lea.vmem %s1, %s169
      $region32: #{bottleneck_pallas.7} parent=23 // pred_fallthru
        _
    $region24: #{bottleneck_pallas.7} parent=5 // pred_fallthru
      _
    %p171 = scmp.le.s32.totalorder 1, %s10
    %p172 = scmp.lt.s32.totalorder %s10, 5
    %p173 = pnand %p171, %p172
    %p174 = pneg %p173
    // Predicated region
    $region33: #{bottleneck_pallas.7} parent=5 // pred_check
      _
    $region34: #{bottleneck_pallas.7} parent=5 // pred_check_branch
      %176 = sbr.rel (%p173) target = $region36
    $region35: #{bottleneck_pallas.7} parent=5 // pred_region
      %s177 = ssub.s32 %s10, 1
      %p178 = scmp.lt.s32.totalorder %s15, 3
      %s179 = scalar_select %p178, %s15, 3
      %s180 = smul.addr %s179, 2
      %s181 = smul.addr %s180, 8
      %s182 = scalar_lea.vmem %s0, %s181
      %p183 = pneg %p36
      %p184 = pneg %p33
      %p185 = scmp.lt.s32.totalorder %s15, 3
      %s186 = scalar_select %p185, %s15, 3
      %s187 = smul.addr %s186, 2
      %s188 = smul.addr %s187, 8
      %s189 = scalar_lea.vmem %s1, %s188
      %p190 = pneg %p62
      %p191 = pneg %p59
      %p192 = pneg %p83
      %p193 = pneg %p80
      %p194 = pneg %p104
      %p195 = pneg %p101
      %p196 = pneg %p130
      %p197 = pneg %p127
      %p198 = scmp.lt.s32.totalorder %s15, 3
      %s199 = scalar_select %p198, %s15, 3
      %s200 = smul.addr %s199, 2
      %s201 = smul.addr %s200, 8
      %s202 = scalar_lea.vmem %s4, %s201
      %p203 = scmp.lt.s32.totalorder %s15, 3
      %s204 = scalar_select %p203, %s15, 3
      %s205 = smul.addr %s204, 2
      %s206 = smul.addr %s205, 8
      %s207 = scalar_lea.vmem %s0, %s206
      %p208 = scmp.lt.s32.totalorder %s15, 3
      %s209 = scalar_select %p208, %s15, 3
      %s210 = smul.addr %s209, 2
      %s211 = smul.addr %s210, 8
      %s212 = scalar_lea.vmem %s1, %s211
      %p213 = scmp.lt.s32.totalorder %s15, 3
      %s214 = scalar_select %p213, %s15, 3
      %s215 = smul.addr %s214, 2
      %s216 = smul.addr %s215, 8
      %s217 = scalar_lea.vmem %s4, %s216
      %v218 = vld [vmem:[%s207] sm:$0xff]
      %v219 = vld [vmem:[%s207 + $0x8] sm:$0xff]
      %v220 = vld [vmem:[%s2] sm:$0x3]
      %v222 = vlaneseq
      %v223 = vshrl.u32 %v222, 7
      %v224 = vsub.s32 0, %v223
      %v225 = vrot.slane %v220, %v224
      %v226 = vlaneseq
      %v227 = vshrl.u32 %v226, 7
      %v228 = vsub.s32 1, %v227
      %v229 = vrot.slane %v220, %v228
      %v232 = vmul.f32 %v218, %v225
      %v233 = vmul.f32 %v219, %v229
      %v234 = vld [vmem:[%s3] sm:$0x3]
      %v236 = vlaneseq
      %v237 = vshrl.u32 %v236, 7
      %v238 = vsub.s32 0, %v237
      %v239 = vrot.slane %v234, %v238
      %v240 = vlaneseq
      %v241 = vshrl.u32 %v240, 7
      %v242 = vsub.s32 1, %v241
      %v243 = vrot.slane %v234, %v242
      %v246 = vadd.f32 %v232, %v239
      %v247 = vadd.f32 %v233, %v243
      %v248 = vld [vmem:[%s212] sm:$0xff]
      %v249 = vld [vmem:[%s212 + $0x8] sm:$0xff]
      %v250 = vadd.f32 %v246, %v248
      %v251 = vadd.f32 %v247, %v249
      %v252 = vmax.f32 %v250, 0.0
      %v253 = vmax.f32 %v251, 0.0
      %254 = vst [vmem:[%s217] sm:$0xff] %v252
      %255 = vst [vmem:[%s217 + $0x8] sm:$0xff] %v253
      %p256 = scmp.lt.s32.totalorder %s15, 3
      %s257 = scalar_select %p256, %s15, 3
      %s258 = smul.addr %s257, 2
      %s259 = smul.addr %s258, 8
      %s260 = scalar_lea.vmem %s4, %s259
      // Predicated region
      $region37: #{bottleneck_pallas.7} parent=35 // pred_check
        %p261 = pneg %p127
      $region38: #{bottleneck_pallas.7} parent=35 // pred_check_branch
        %263 = sbr.rel (%p261) target = $region40
      $region39: #{bottleneck_pallas.7} parent=35 // pred_region
        _
      $region40: #{bottleneck_pallas.7} parent=35 // pred_fallthru
        _
    $region36: #{bottleneck_pallas.7} parent=5 // pred_fallthru
      _
    %p264 = scmp.le.s32.totalorder 2, %s10
    // Predicated region
    $region41: #{bottleneck_pallas.7} parent=5 // pred_check
      %p265 = pneg %p264
    $region42: #{bottleneck_pallas.7} parent=5 // pred_check_branch
      %267 = sbr.rel (%p265) target = $region44
    $region43: #{bottleneck_pallas.7} parent=5 // pred_region
      %s268 = ssub.s32 %s10, 2
      // Predicated region
      $region45: #{bottleneck_pallas.7} parent=43 // pred_check
        %p269 = pneg %p133
      $region46: #{bottleneck_pallas.7} parent=43 // pred_check_branch
        %271 = sbr.rel (%p269) target = $region48
      $region47: #{bottleneck_pallas.7} parent=43 // pred_region
        %p272 = scmp.lt.s32.totalorder %s16, 3
        %s273 = scalar_select %p272, %s16, 3
        %s274 = smul.addr %s273, 2
        %s275 = smul.addr %s274, 8
        %s276 = scalar_lea.vmem %s4, %s275
      $region48: #{bottleneck_pallas.7} parent=43 // pred_fallthru
        _
    $region44: #{bottleneck_pallas.7} parent=5 // pred_fallthru
      _
  $region6: #{bottleneck_pallas.7} parent=0 // loop_footer
    %s14 = sadd.s32 1, %s10
  $region7: #{bottleneck_pallas.7} parent=0 // loop_footer_branch
    %9 = sbr.rel target = $region3
  $region8: #{bottleneck_pallas.7} parent=0 // loop_exit
    _

// kernel: bottleneck_pallas.5
$region0: #{bottleneck_pallas.5}
  #allocation0 [shape = 'u32[]', space=smem, size = 0x4, offset = 0x4, fixed_abs, tag = 'smem constant byte address 0x4 - core index']
  #allocation1 [shape = 'u32[144,128]{1,0:T(1,128)}', space=vmem, size = 0x12000, scoped, tag = 'internal scratch']
  #allocation2 [shape = 'f32[18,18,4]{2,1,0:T(8,128)}', space=vmem, size = 0x36000, scoped, tag = 'scratch operand']
  %s0 = inlined_call_operand.vmem [shape: f32[2,16,16,4], index: 0, kind: input, shape index: {}]
  %s1 = inlined_call_operand.vmem [shape: bf16[36,4], index: 1, kind: input, shape index: {}]
  %s2 = inlined_call_operand.vmem [shape: f32[1,4], index: 2, kind: input, shape index: {}]
  %s3 = inlined_call_operand.vmem [shape: f32[1,4], index: 3, kind: input, shape index: {}]
  %s4 = inlined_call_operand.vmem [shape: f32[2,16,16,4], index: 4, kind: output, shape index: {0}]
  %s5 = inlined_call_operand.vmem [shape: f32[2,2,4], index: 5, kind: output, shape index: {1}]
  %6 = xla_tuple %s4, %s5
  %s7 = sld [smem:[#allocation0]]
  $region57: #{bottleneck_pallas.5} parent=0
    _
  %s9 = ssub.s32 1, %s7
  %s10 = scalar_select 0, %s9, %s7
  loop: start=0, step=1, limit=4
  $region2: #{bottleneck_pallas.5} parent=0 // loop_pre_header
    _
  $region3: #{bottleneck_pallas.5} parent=0 // loop_header
    %s12 = sphi 0, %s16
    %p13 = scmp.ge.s32.totalorder %s12, 4
    %s22 = sphi 0, %s24
    %s25 = sphi 0, %s22
    %s26 = sphi 0, %s25
    %s42 = sphi 0, %s26
    %s46 = sphi 0, %s46
    %s48 = sphi 0, %s46
    %s49 = sphi 0, %s48
    %s63 = sphi 0, %s49
    %s67 = sphi 0, %s67
    %s69 = sphi 0, %s67
    %s70 = sphi 0, %s69
    %s84 = sphi 0, %s70
    %s88 = sphi 0, %s88
    %s90 = sphi 0, %s88
    %s91 = sphi 0, %s90
    %s105 = sphi 0, %s91
    %s111 = sphi 0, %s113
    %s114 = sphi 0, %s111
    %s115 = sphi 0, %s114
    %s131 = sphi 0, %s115
    %s137 = sphi 0, %s139
    %s140 = sphi 0, %s137
    %s141 = sphi 0, %s140
    %s157 = sphi 0, %s141
  $region4: #{bottleneck_pallas.5} parent=0 // loop_header_branch
    %15 = sbr.rel (%p13) target = $region8
  $region5: #{bottleneck_pallas.5} parent=0 // loop_body
    %s17 = ssub.s32 %s12, 1
    %s18 = ssub.s32 %s12, 2
    %s19 = sadd.s32 %s12, 1
    %s20 = ssub.s32 %s12, %s19
    %p21 = scmp.eq.s32.totalorder %s20, 0
    %s23 = sadd.s32 %s22, 1
    %s24 = scalar_select %p21, %s22, %s23
    %p27 = pneg %p21
    %p28 = scmp.eq.s32.totalorder %s12, 1
    %p29 = por %p27, %p28
    %p30 = scmp.ne.s32.totalorder %s22, %s25
    %p31 = scmp.eq.s32.totalorder %s12, 0
    %p32 = por %p30, %p31
    %p33 = scmp.ne.s32.totalorder %s22, %s25
    %p34 = scmp.eq.s32.totalorder %s17, 1
    %p35 = por %p33, %p34
    %p36 = scmp.ne.s32.totalorder %s25, %s26
    %p37 = scmp.eq.s32.totalorder %s17, 0
    %p38 = por %p36, %p37
    %p39 = scmp.ne.s32.totalorder %s25, %s26
    %p40 = scmp.eq.s32.totalorder %s18, 1
    %p41 = por %p39, %p40
    %p43 = scmp.ne.s32.totalorder %s26, %s42
    %p44 = scmp.eq.s32.totalorder %s18, 0
    %p45 = por %p43, %p44
    %s47 = sadd.s32 %s46, 1
    %p50 = scmp.eq.s32.totalorder %s12, 1
    %p51 = scmp.ne.s32.totalorder %s46, %s48
    %p52 = scmp.eq.s32.totalorder %s12, 0
    %p53 = por %p51, %p52
    %p54 = scmp.ne.s32.totalorder %s46, %s48
    %p55 = scmp.eq.s32.totalorder %s17, 1
    %p56 = por %p54, %p55
    %p57 = scmp.ne.s32.totalorder %s48, %s49
    %p58 = scmp.eq.s32.totalorder %s17, 0
    %p59 = por %p57, %p58
    %p60 = scmp.ne.s32.totalorder %s48, %s49
    %p61 = scmp.eq.s32.totalorder %s18, 1
    %p62 = por %p60, %p61
    %p64 = scmp.ne.s32.totalorder %s49, %s63
    %p65 = scmp.eq.s32.totalorder %s18, 0
    %p66 = por %p64, %p65
    %s68 = sadd.s32 %s67, 1
    %p71 = scmp.eq.s32.totalorder %s12, 1
    %p72 = scmp.ne.s32.totalorder %s67, %s69
    %p73 = scmp.eq.s32.totalorder %s12, 0
    %p74 = por %p72, %p73
    %p75 = scmp.ne.s32.totalorder %s67, %s69
    %p76 = scmp.eq.s32.totalorder %s17, 1
    %p77 = por %p75, %p76
    %p78 = scmp.ne.s32.totalorder %s69, %s70
    %p79 = scmp.eq.s32.totalorder %s17, 0
    %p80 = por %p78, %p79
    %p81 = scmp.ne.s32.totalorder %s69, %s70
    %p82 = scmp.eq.s32.totalorder %s18, 1
    %p83 = por %p81, %p82
    %p85 = scmp.ne.s32.totalorder %s70, %s84
    %p86 = scmp.eq.s32.totalorder %s18, 0
    %p87 = por %p85, %p86
    %s89 = sadd.s32 %s88, 1
    %p92 = scmp.eq.s32.totalorder %s12, 1
    %p93 = scmp.ne.s32.totalorder %s88, %s90
    %p94 = scmp.eq.s32.totalorder %s12, 0
    %p95 = por %p93, %p94
    %p96 = scmp.ne.s32.totalorder %s88, %s90
    %p97 = scmp.eq.s32.totalorder %s17, 1
    %p98 = por %p96, %p97
    %p99 = scmp.ne.s32.totalorder %s90, %s91
    %p100 = scmp.eq.s32.totalorder %s17, 0
    %p101 = por %p99, %p100
    %p102 = scmp.ne.s32.totalorder %s90, %s91
    %p103 = scmp.eq.s32.totalorder %s18, 1
    %p104 = por %p102, %p103
    %p106 = scmp.ne.s32.totalorder %s91, %s105
    %p107 = scmp.eq.s32.totalorder %s18, 0
    %p108 = por %p106, %p107
    %s109 = ssub.s32 %s12, %s19
    %p110 = scmp.eq.s32.totalorder %s109, 0
    %s112 = sadd.s32 %s111, 1
    %s113 = scalar_select %p110, %s111, %s112
    %p116 = pneg %p110
    %p117 = scmp.eq.s32.totalorder %s12, 1
    %p118 = por %p116, %p117
    %p119 = scmp.ne.s32.totalorder %s111, %s114
    %p120 = scmp.eq.s32.totalorder %s12, 0
    %p121 = por %p119, %p120
    %p122 = scmp.ne.s32.totalorder %s111, %s114
    %p123 = scmp.eq.s32.totalorder %s17, 1
    %p124 = por %p122, %p123
    %p125 = scmp.ne.s32.totalorder %s114, %s115
    %p126 = scmp.eq.s32.totalorder %s17, 0
    %p127 = por %p125, %p126
    %p128 = scmp.ne.s32.totalorder %s114, %s115
    %p129 = scmp.eq.s32.totalorder %s18, 1
    %p130 = por %p128, %p129
    %p132 = scmp.ne.s32.totalorder %s115, %s131
    %p133 = scmp.eq.s32.totalorder %s18, 0
    %p134 = por %p132, %p133
    %s135 = ssub.s32 %s12, %s19
    %p136 = scmp.eq.s32.totalorder %s135, 0
    %s138 = sadd.s32 %s137, 1
    %s139 = scalar_select %p136, %s137, %s138
    %p142 = pneg %p136
    %p143 = scmp.eq.s32.totalorder %s12, 1
    %p144 = por %p142, %p143
    %p145 = scmp.ne.s32.totalorder %s137, %s140
    %p146 = scmp.eq.s32.totalorder %s12, 0
    %p147 = por %p145, %p146
    %p148 = scmp.ne.s32.totalorder %s137, %s140
    %p149 = scmp.eq.s32.totalorder %s17, 1
    %p150 = por %p148, %p149
    %p151 = scmp.ne.s32.totalorder %s140, %s141
    %p152 = scmp.eq.s32.totalorder %s17, 0
    %p153 = por %p151, %p152
    %p154 = scmp.ne.s32.totalorder %s140, %s141
    %p155 = scmp.eq.s32.totalorder %s18, 1
    %p156 = por %p154, %p155
    %p158 = scmp.ne.s32.totalorder %s141, %s157
    %p159 = scmp.eq.s32.totalorder %s18, 0
    %p160 = por %p158, %p159
    %p161 = scmp.le.s32.totalorder 1, %s12
    %p162 = scmp.lt.s32.totalorder %s12, 3
    %p163 = pnand %p161, %p162
    %p164 = pneg %p163
    // Predicated region
    $region9: #{bottleneck_pallas.5} parent=5 // pred_check
      _
    $region10: #{bottleneck_pallas.5} parent=5 // pred_check_branch
      %166 = sbr.rel (%p163) target = $region12
    $region11: #{bottleneck_pallas.5} parent=5 // pred_region
      %s167 = ssub.s32 %s12, 1
      // Predicated region
      $region13: #{bottleneck_pallas.5} parent=11 // pred_check
        %p168 = pneg %p59
      $region14: #{bottleneck_pallas.5} parent=11 // pred_check_branch
        %170 = sbr.rel (%p168) target = $region16
      $region15: #{bottleneck_pallas.5} parent=11 // pred_region
        _
      $region16: #{bottleneck_pallas.5} parent=11 // pred_fallthru
        _
      // Predicated region
      $region17: #{bottleneck_pallas.5} parent=11 // pred_check
        %p171 = pneg %p80
      $region18: #{bottleneck_pallas.5} parent=11 // pred_check_branch
        %173 = sbr.rel (%p171) target = $region20
      $region19: #{bottleneck_pallas.5} parent=11 // pred_region
        _
      $region20: #{bottleneck_pallas.5} parent=11 // pred_fallthru
        _
      // Predicated region
      $region21: #{bottleneck_pallas.5} parent=11 // pred_check
        %p174 = pneg %p101
      $region22: #{bottleneck_pallas.5} parent=11 // pred_check_branch
        %176 = sbr.rel (%p174) target = $region24
      $region23: #{bottleneck_pallas.5} parent=11 // pred_region
        _
      $region24: #{bottleneck_pallas.5} parent=11 // pred_fallthru
        _
    $region12: #{bottleneck_pallas.5} parent=5 // pred_fallthru
      _
    %p177 = scmp.lt.s32.totalorder %s12, 2
    // Predicated region
    $region25: #{bottleneck_pallas.5} parent=5 // pred_check
      %p178 = pneg %p177
    $region26: #{bottleneck_pallas.5} parent=5 // pred_check_branch
      %180 = sbr.rel (%p178) target = $region28
    $region27: #{bottleneck_pallas.5} parent=5 // pred_region
      // Predicated region
      $region29: #{bottleneck_pallas.5} parent=27 // pred_check
        %p181 = pneg %p32
      $region30: #{bottleneck_pallas.5} parent=27 // pred_check_branch
        %183 = sbr.rel (%p181) target = $region32
      $region31: #{bottleneck_pallas.5} parent=27 // pred_region
        %p184 = scmp.lt.s32.totalorder %s12, 1
        %s185 = scalar_select %p184, %s12, 1
        %s186 = smul.addr %s185, 32
        %s187 = smul.addr %s186, 8
        %s188 = scalar_lea.vmem %s0, %s187
      $region32: #{bottleneck_pallas.5} parent=27 // pred_fallthru
        _
    $region28: #{bottleneck_pallas.5} parent=5 // pred_fallthru
      _
    %p189 = scmp.le.s32.totalorder 1, %s12
    %p190 = scmp.lt.s32.totalorder %s12, 3
    %p191 = pnand %p189, %p190
    %p192 = pneg %p191
    // Predicated region
    $region33: #{bottleneck_pallas.5} parent=5 // pred_check
      _
    $region34: #{bottleneck_pallas.5} parent=5 // pred_check_branch
      %194 = sbr.rel (%p191) target = $region36
    $region35: #{bottleneck_pallas.5} parent=5 // pred_region
      %s195 = ssub.s32 %s12, 1
      %p196 = scmp.lt.s32.totalorder %s17, 1
      %s197 = scalar_select %p196, %s17, 1
      %s198 = smul.addr %s197, 32
      %s199 = smul.addr %s198, 8
      %s200 = scalar_lea.vmem %s0, %s199
      %p201 = pneg %p38
      %p202 = pneg %p35
      %p203 = pneg %p59
      %p204 = pneg %p56
      %p205 = pneg %p80
      %p206 = pneg %p77
      %p207 = pneg %p101
      %p208 = pneg %p98
      %p209 = pneg %p127
      %p210 = pneg %p124
      %p211 = scmp.lt.s32.totalorder %s17, 1
      %s212 = scalar_select %p211, %s17, 1
      %s213 = smul.addr %s212, 32
      %s214 = smul.addr %s213, 8
      %s215 = scalar_lea.vmem %s4, %s214
      %p216 = pneg %p153
      %p217 = pneg %p150
      %p218 = scmp.lt.s32.totalorder %s17, 1
      %s219 = scalar_select %p218, %s17, 1
      %s220 = smul.addr %s219, 2
      %s221 = scalar_lea.vmem %s5, %s220
      %p222 = scmp.lt.s32.totalorder %s17, 1
      %s223 = scalar_select %p222, %s17, 1
      %s224 = smul.addr %s223, 32
      %s225 = smul.addr %s224, 8
      %s226 = scalar_lea.vmem %s0, %s225
      %p227 = scmp.lt.s32.totalorder %s17, 1
      %s228 = scalar_select %p227, %s17, 1
      %s229 = smul.addr %s228, 32
      %s230 = smul.addr %s229, 8
      %s231 = scalar_lea.vmem %s4, %s230
      %p232 = scmp.lt.s32.totalorder %s17, 1
      %s233 = scalar_select %p232, %s17, 1
      %s234 = smul.addr %s233, 2
      %s235 = scalar_lea.vmem %s5, %s234
      %v237 = vld [vmem:[%s226] sm:$0xff]
      %v238 = vld [vmem:[%s226 + $0x8] sm:$0xff]
      %v239 = vld [vmem:[%s226 + $0x10] sm:$0xff]
      %v240 = vld [vmem:[%s226 + $0x18] sm:$0xff]
      %v241 = vld [vmem:[%s226 + $0x20] sm:$0xff]
      %v242 = vld [vmem:[%s226 + $0x28] sm:$0xff]
      %v243 = vld [vmem:[%s226 + $0x30] sm:$0xff]
      %v244 = vld [vmem:[%s226 + $0x38] sm:$0xff]
      %v245 = vld [vmem:[%s226 + $0x40] sm:$0xff]
      %v246 = vld [vmem:[%s226 + $0x48] sm:$0xff]
      %v247 = vld [vmem:[%s226 + $0x50] sm:$0xff]
      %v248 = vld [vmem:[%s226 + $0x58] sm:$0xff]
      %v249 = vld [vmem:[%s226 + $0x60] sm:$0xff]
      %v250 = vld [vmem:[%s226 + $0x68] sm:$0xff]
      %v251 = vld [vmem:[%s226 + $0x70] sm:$0xff]
      %v252 = vld [vmem:[%s226 + $0x78] sm:$0xff]
      %v253 = vld [vmem:[%s226 + $0x80] sm:$0xff]
      %v254 = vld [vmem:[%s226 + $0x88] sm:$0xff]
      %v255 = vld [vmem:[%s226 + $0x90] sm:$0xff]
      %v256 = vld [vmem:[%s226 + $0x98] sm:$0xff]
      %v257 = vld [vmem:[%s226 + $0xa0] sm:$0xff]
      %v258 = vld [vmem:[%s226 + $0xa8] sm:$0xff]
      %v259 = vld [vmem:[%s226 + $0xb0] sm:$0xff]
      %v260 = vld [vmem:[%s226 + $0xb8] sm:$0xff]
      %v261 = vld [vmem:[%s226 + $0xc0] sm:$0xff]
      %v262 = vld [vmem:[%s226 + $0xc8] sm:$0xff]
      %v263 = vld [vmem:[%s226 + $0xd0] sm:$0xff]
      %v264 = vld [vmem:[%s226 + $0xd8] sm:$0xff]
      %v265 = vld [vmem:[%s226 + $0xe0] sm:$0xff]
      %v266 = vld [vmem:[%s226 + $0xe8] sm:$0xff]
      %v267 = vld [vmem:[%s226 + $0xf0] sm:$0xff]
      %v268 = vld [vmem:[%s226 + $0xf8] sm:$0xff]
      %v269 = vld [vmem:[%s2] sm:$0x1]
      %v271 = vlaneseq
      %v272 = vshrl.u32 %v271, 7
      %v273 = vsub.s32 0, %v272
      %v274 = vrot.slane %v269, %v273
      %v276 = vmul.f32 %v237, %v274
      %v277 = vmul.f32 %v238, %v274
      %v278 = vmul.f32 %v239, %v274
      %v279 = vmul.f32 %v240, %v274
      %v280 = vmul.f32 %v241, %v274
      %v281 = vmul.f32 %v242, %v274
      %v282 = vmul.f32 %v243, %v274
      %v283 = vmul.f32 %v244, %v274
      %v284 = vmul.f32 %v245, %v274
      %v285 = vmul.f32 %v246, %v274
      %v286 = vmul.f32 %v247, %v274
      %v287 = vmul.f32 %v248, %v274
      %v288 = vmul.f32 %v249, %v274
      %v289 = vmul.f32 %v250, %v274
      %v290 = vmul.f32 %v251, %v274
      %v291 = vmul.f32 %v252, %v274
      %v292 = vmul.f32 %v253, %v274
      %v293 = vmul.f32 %v254, %v274
      %v294 = vmul.f32 %v255, %v274
      %v295 = vmul.f32 %v256, %v274
      %v296 = vmul.f32 %v257, %v274
      %v297 = vmul.f32 %v258, %v274
      %v298 = vmul.f32 %v259, %v274
      %v299 = vmul.f32 %v260, %v274
      %v300 = vmul.f32 %v261, %v274
      %v301 = vmul.f32 %v262, %v274
      %v302 = vmul.f32 %v263, %v274
      %v303 = vmul.f32 %v264, %v274
      %v304 = vmul.f32 %v265, %v274
      %v305 = vmul.f32 %v266, %v274
      %v306 = vmul.f32 %v267, %v274
      %v307 = vmul.f32 %v268, %v274
      %v308 = vld [vmem:[%s3] sm:$0x1]
      %v310 = vlaneseq
      %v311 = vshrl.u32 %v310, 7
      %v312 = vsub.s32 0, %v311
      %v313 = vrot.slane %v308, %v312
      %v315 = vadd.f32 %v276, %v313
      %v316 = vadd.f32 %v277, %v313
      %v317 = vadd.f32 %v278, %v313
      %v318 = vadd.f32 %v279, %v313
      %v319 = vadd.f32 %v280, %v313
      %v320 = vadd.f32 %v281, %v313
      %v321 = vadd.f32 %v282, %v313
      %v322 = vadd.f32 %v283, %v313
      %v323 = vadd.f32 %v284, %v313
      %v324 = vadd.f32 %v285, %v313
      %v325 = vadd.f32 %v286, %v313
      %v326 = vadd.f32 %v287, %v313
      %v327 = vadd.f32 %v288, %v313
      %v328 = vadd.f32 %v289, %v313
      %v329 = vadd.f32 %v290, %v313
      %v330 = vadd.f32 %v291, %v313
      %v331 = vadd.f32 %v292, %v313
      %v332 = vadd.f32 %v293, %v313
      %v333 = vadd.f32 %v294, %v313
      %v334 = vadd.f32 %v295, %v313
      %v335 = vadd.f32 %v296, %v313
      %v336 = vadd.f32 %v297, %v313
      %v337 = vadd.f32 %v298, %v313
      %v338 = vadd.f32 %v299, %v313
      %v339 = vadd.f32 %v300, %v313
      %v340 = vadd.f32 %v301, %v313
      %v341 = vadd.f32 %v302, %v313
      %v342 = vadd.f32 %v303, %v313
      %v343 = vadd.f32 %v304, %v313
      %v344 = vadd.f32 %v305, %v313
      %v345 = vadd.f32 %v306, %v313
      %v346 = vadd.f32 %v307, %v313
      %v347 = vmax.f32 %v315, 0.0
      %v348 = vmax.f32 %v316, 0.0
      %v349 = vmax.f32 %v317, 0.0
      %v350 = vmax.f32 %v318, 0.0
      %v351 = vmax.f32 %v319, 0.0
      %v352 = vmax.f32 %v320, 0.0
      %v353 = vmax.f32 %v321, 0.0
      %v354 = vmax.f32 %v322, 0.0
      %v355 = vmax.f32 %v323, 0.0
      %v356 = vmax.f32 %v324, 0.0
      %v357 = vmax.f32 %v325, 0.0
      %v358 = vmax.f32 %v326, 0.0
      %v359 = vmax.f32 %v327, 0.0
      %v360 = vmax.f32 %v328, 0.0
      %v361 = vmax.f32 %v329, 0.0
      %v362 = vmax.f32 %v330, 0.0
      %v363 = vmax.f32 %v331, 0.0
      %v364 = vmax.f32 %v332, 0.0
      %v365 = vmax.f32 %v333, 0.0
      %v366 = vmax.f32 %v334, 0.0
      %v367 = vmax.f32 %v335, 0.0
      %v368 = vmax.f32 %v336, 0.0
      %v369 = vmax.f32 %v337, 0.0
      %v370 = vmax.f32 %v338, 0.0
      %v371 = vmax.f32 %v339, 0.0
      %v372 = vmax.f32 %v340, 0.0
      %v373 = vmax.f32 %v341, 0.0
      %v374 = vmax.f32 %v342, 0.0
      %v375 = vmax.f32 %v343, 0.0
      %v376 = vmax.f32 %v344, 0.0
      %v377 = vmax.f32 %v345, 0.0
      %v378 = vmax.f32 %v346, 0.0
      %vm379 = vcmask 31744
      %380 = vst.msk [vmem:[#allocation2] sm:$0xff] %vm379, 0.0
      %381 = vst.msk [vmem:[#allocation2 + $0x8] sm:$0xff] %vm379, 0.0
      %vm382 = vcmask 25600
      %383 = vst.msk [vmem:[#allocation2 + $0x10] sm:$0x3] %vm382, 0.0
      %s384 = scalar_lea.vmem [#allocation2], 408
      %385 = vst.msk [vmem:[%s384] sm:$0xff] %vm379, 0.0
      %386 = vst.msk [vmem:[%s384 + $0x8] sm:$0xff] %vm379, 0.0
      %387 = vst.msk [vmem:[%s384 + $0x10] sm:$0x3] %vm382, 0.0
      %s388 = scalar_lea.vmem [#allocation2], 24
      %vm389 = vcmask 24576
      %390 = vst.msk [vmem:[%s388] sm:$0x1] %vm389, 0.0
      %391 = vst.msk [vmem:[%s388 + $0x18] sm:$0x1] %vm389, 0.0
      %392 = vst.msk [vmem:[%s388 + $0x30] sm:$0x1] %vm389, 0.0
      %393 = vst.msk [vmem:[%s388 + $0x48] sm:$0x1] %vm389, 0.0
      %394 = vst.msk [vmem:[%s388 + $0x60] sm:$0x1] %vm389, 0.0
      %395 = vst.msk [vmem:[%s388 + $0x78] sm:$0x1] %vm389, 0.0
      %396 = vst.msk [vmem:[%s388 + $0x90] sm:$0x1] %vm389, 0.0
      %397 = vst.msk [vmem:[%s388 + $0xa8] sm:$0x1] %vm389, 0.0
      %398 = vst.msk [vmem:[%s388 + $0xc0] sm:$0x1] %vm389, 0.0
      %399 = vst.msk [vmem:[%s388 + $0xd8] sm:$0x1] %vm389, 0.0
      %400 = vst.msk [vmem:[%s388 + $0xf0] sm:$0x1] %vm389, 0.0
      %401 = vst.msk [vmem:[%s388 + $0x108] sm:$0x1] %vm389, 0.0
      %402 = vst.msk [vmem:[%s388 + $0x120] sm:$0x1] %vm389, 0.0
      %403 = vst.msk [vmem:[%s388 + $0x138] sm:$0x1] %vm389, 0.0
      %404 = vst.msk [vmem:[%s388 + $0x150] sm:$0x1] %vm389, 0.0
      %405 = vst.msk [vmem:[%s388 + $0x168] sm:$0x1] %vm389, 0.0
      %406 = vst.msk [vmem:[%s388 + $0x11] sm:$0x1] %vm389, 0.0
      %407 = vst.msk [vmem:[%s388 + $0x29] sm:$0x1] %vm389, 0.0
      %408 = vst.msk [vmem:[%s388 + $0x41] sm:$0x1] %vm389, 0.0
      %409 = vst.msk [vmem:[%s388 + $0x59] sm:$0x1] %vm389, 0.0
      %410 = vst.msk [vmem:[%s388 + $0x71] sm:$0x1] %vm389, 0.0
      %411 = vst.msk [vmem:[%s388 + $0x89] sm:$0x1] %vm389, 0.0
      %412 = vst.msk [vmem:[%s388 + $0xa1] sm:$0x1] %vm389, 0.0
      %413 = vst.msk [vmem:[%s388 + $0xb9] sm:$0x1] %vm389, 0.0
      %414 = vst.msk [vmem:[%s388 + $0xd1] sm:$0x1] %vm389, 0.0
      %415 = vst.msk [vmem:[%s388 + $0xe9] sm:$0x1] %vm389, 0.0
      %416 = vst.msk [vmem:[%s388 + $0x101] sm:$0x1] %vm389, 0.0
      %417 = vst.msk [vmem:[%s388 + $0x119] sm:$0x1] %vm389, 0.0
      %418 = vst.msk [vmem:[%s388 + $0x131] sm:$0x1] %vm389, 0.0
      %419 = vst.msk [vmem:[%s388 + $0x149] sm:$0x1] %vm389, 0.0
      %420 = vst.msk [vmem:[%s388 + $0x161] sm:$0x1] %vm389, 0.0
      %421 = vst.msk [vmem:[%s388 + $0x179] sm:$0x1] %vm389, 0.0
      %422 = vst.msk [vmem:[%s388 + $0x1] sm:$0xff] %vm379, %v347
      %423 = vst.msk [vmem:[%s388 + $0x9] sm:$0xff] %vm379, %v348
      %424 = vst.msk [vmem:[%s388 + $0x19] sm:$0xff] %vm379, %v349
      %425 = vst.msk [vmem:[%s388 + $0x21] sm:$0xff] %vm379, %v350
      %426 = vst.msk [vmem:[%s388 + $0x31] sm:$0xff] %vm379, %v351
      %427 = vst.msk [vmem:[%s388 + $0x39] sm:$0xff] %vm379, %v352
      %428 = vst.msk [vmem:[%s388 + $0x49] sm:$0xff] %vm379, %v353
      %429 = vst.msk [vmem:[%s388 + $0x51] sm:$0xff] %vm379, %v354
      %430 = vst.msk [vmem:[%s388 + $0x61] sm:$0xff] %vm379, %v355
      %431 = vst.msk [vmem:[%s388 + $0x69] sm:$0xff] %vm379, %v356
      %432 = vst.msk [vmem:[%s388 + $0x79] sm:$0xff] %vm379, %v357
      %433 = vst.msk [vmem:[%s388 + $0x81] sm:$0xff] %vm379, %v358
      %434 = vst.msk [vmem:[%s388 + $0x91] sm:$0xff] %vm379, %v359
      %435 = vst.msk [vmem:[%s388 + $0x99] sm:$0xff] %vm379, %v360
      %436 = vst.msk [vmem:[%s388 + $0xa9] sm:$0xff] %vm379, %v361
      %437 = vst.msk [vmem:[%s388 + $0xb1] sm:$0xff] %vm379, %v362
      %438 = vst.msk [vmem:[%s388 + $0xc1] sm:$0xff] %vm379, %v363
      %439 = vst.msk [vmem:[%s388 + $0xc9] sm:$0xff] %vm379, %v364
      %440 = vst.msk [vmem:[%s388 + $0xd9] sm:$0xff] %vm379, %v365
      %441 = vst.msk [vmem:[%s388 + $0xe1] sm:$0xff] %vm379, %v366
      %442 = vst.msk [vmem:[%s388 + $0xf1] sm:$0xff] %vm379, %v367
      %443 = vst.msk [vmem:[%s388 + $0xf9] sm:$0xff] %vm379, %v368
      %444 = vst.msk [vmem:[%s388 + $0x109] sm:$0xff] %vm379, %v369
      %445 = vst.msk [vmem:[%s388 + $0x111] sm:$0xff] %vm379, %v370
      %446 = vst.msk [vmem:[%s388 + $0x121] sm:$0xff] %vm379, %v371
      %447 = vst.msk [vmem:[%s388 + $0x129] sm:$0xff] %vm379, %v372
      %448 = vst.msk [vmem:[%s388 + $0x139] sm:$0xff] %vm379, %v373
      %449 = vst.msk [vmem:[%s388 + $0x141] sm:$0xff] %vm379, %v374
      %450 = vst.msk [vmem:[%s388 + $0x151] sm:$0xff] %vm379, %v375
      %451 = vst.msk [vmem:[%s388 + $0x159] sm:$0xff] %vm379, %v376
      %452 = vst.msk [vmem:[%s388 + $0x169] sm:$0xff] %vm379, %v377
      %453 = vst.msk [vmem:[%s388 + $0x171] sm:$0xff] %vm379, %v378
      %v454 = vld [vmem:[#allocation2] sm:$0xff]
      %v455 = vld [vmem:[#allocation2 + $0x8] sm:$0xff]
      %v456 = vld [vmem:[#allocation2 + $0x18] sm:$0xff]
      %v457 = vld [vmem:[#allocation2 + $0x20] sm:$0xff]
      %v458 = vld [vmem:[#allocation2 + $0x30] sm:$0xff]
      %v459 = vld [vmem:[#allocation2 + $0x38] sm:$0xff]
      %v460 = vld [vmem:[#allocation2 + $0x48] sm:$0xff]
      %v461 = vld [vmem:[#allocation2 + $0x50] sm:$0xff]
      %v462 = vld [vmem:[#allocation2 + $0x60] sm:$0xff]
      %v463 = vld [vmem:[#allocation2 + $0x68] sm:$0xff]
      %v464 = vld [vmem:[#allocation2 + $0x78] sm:$0xff]
      %v465 = vld [vmem:[#allocation2 + $0x80] sm:$0xff]
      %v466 = vld [vmem:[#allocation2 + $0x90] sm:$0xff]
      %v467 = vld [vmem:[#allocation2 + $0x98] sm:$0xff]
      %v468 = vld [vmem:[#allocation2 + $0xa8] sm:$0xff]
      %v469 = vld [vmem:[#allocation2 + $0xb0] sm:$0xff]
      %v470 = vld [vmem:[#allocation2 + $0xc0] sm:$0xff]
      %v471 = vld [vmem:[#allocation2 + $0xc8] sm:$0xff]
      %v472 = vld [vmem:[#allocation2 + $0xd8] sm:$0xff]
      %v473 = vld [vmem:[#allocation2 + $0xe0] sm:$0xff]
      %v474 = vld [vmem:[#allocation2 + $0xf0] sm:$0xff]
      %v475 = vld [vmem:[#allocation2 + $0xf8] sm:$0xff]
      %v476 = vld [vmem:[#allocation2 + $0x108] sm:$0xff]
      %v477 = vld [vmem:[#allocation2 + $0x110] sm:$0xff]
      %v478 = vld [vmem:[#allocation2 + $0x120] sm:$0xff]
      %v479 = vld [vmem:[#allocation2 + $0x128] sm:$0xff]
      %v480 = vld [vmem:[#allocation2 + $0x138] sm:$0xff]
      %v481 = vld [vmem:[#allocation2 + $0x140] sm:$0xff]
      %v482 = vld [vmem:[#allocation2 + $0x150] sm:$0xff]
      %v483 = vld [vmem:[#allocation2 + $0x158] sm:$0xff]
      %v484 = vld [vmem:[#allocation2 + $0x168] sm:$0xff]
      %v485 = vld [vmem:[#allocation2 + $0x170] sm:$0xff]
      %v486 = vld [vmem:[#allocation2 + $0x1] sm:$0xff]
      %v487 = vld [vmem:[#allocation2 + $0x9] sm:$0xff]
      %v488 = vld [vmem:[#allocation2 + $0x19] sm:$0xff]
      %v489 = vld [vmem:[#allocation2 + $0x21] sm:$0xff]
      %v490 = vld [vmem:[#allocation2 + $0x31] sm:$0xff]
      %v491 = vld [vmem:[#allocation2 + $0x39] sm:$0xff]
      %v492 = vld [vmem:[#allocation2 + $0x49] sm:$0xff]
      %v493 = vld [vmem:[#allocation2 + $0x51] sm:$0xff]
      %v494 = vld [vmem:[#allocation2 + $0x61] sm:$0xff]
      %v495 = vld [vmem:[#allocation2 + $0x69] sm:$0xff]
      %v496 = vld [vmem:[#allocation2 + $0x79] sm:$0xff]
      %v497 = vld [vmem:[#allocation2 + $0x81] sm:$0xff]
      %v498 = vld [vmem:[#allocation2 + $0x91] sm:$0xff]
      %v499 = vld [vmem:[#allocation2 + $0x99] sm:$0xff]
      %v500 = vld [vmem:[#allocation2 + $0xa9] sm:$0xff]
      %v501 = vld [vmem:[#allocation2 + $0xb1] sm:$0xff]
      %v502 = vld [vmem:[#allocation2 + $0xc1] sm:$0xff]
      %v503 = vld [vmem:[#allocation2 + $0xc9] sm:$0xff]
      %v504 = vld [vmem:[#allocation2 + $0xd9] sm:$0xff]
      %v505 = vld [vmem:[#allocation2 + $0xe1] sm:$0xff]
      %v506 = vld [vmem:[#allocation2 + $0xf1] sm:$0xff]
      %v507 = vld [vmem:[#allocation2 + $0xf9] sm:$0xff]
      %v508 = vld [vmem:[#allocation2 + $0x109] sm:$0xff]
      %v509 = vld [vmem:[#allocation2 + $0x111] sm:$0xff]
      %v510 = vld [vmem:[#allocation2 + $0x121] sm:$0xff]
      %v511 = vld [vmem:[#allocation2 + $0x129] sm:$0xff]
      %v512 = vld [vmem:[#allocation2 + $0x139] sm:$0xff]
      %v513 = vld [vmem:[#allocation2 + $0x141] sm:$0xff]
      %v514 = vld [vmem:[#allocation2 + $0x151] sm:$0xff]
      %v515 = vld [vmem:[#allocation2 + $0x159] sm:$0xff]
      %v516 = vld [vmem:[#allocation2 + $0x169] sm:$0xff]
      %v517 = vld [vmem:[#allocation2 + $0x171] sm:$0xff]
      %v518 = vld [vmem:[#allocation2 + $0x2] sm:$0xff]
      %v519 = vld [vmem:[#allocation2 + $0xa] sm:$0xff]
      %v520 = vld [vmem:[#allocation2 + $0x1a] sm:$0xff]
      %v521 = vld [vmem:[#allocation2 + $0x22] sm:$0xff]
      %v522 = vld [vmem:[#allocation2 + $0x32] sm:$0xff]
      %v523 = vld [vmem:[#allocation2 + $0x3a] sm:$0xff]
      %v524 = vld [vmem:[#allocation2 + $0x4a] sm:$0xff]
      %v525 = vld [vmem:[#allocation2 + $0x52] sm:$0xff]
      %v526 = vld [vmem:[#allocation2 + $0x62] sm:$0xff]
      %v527 = vld [vmem:[#allocation2 + $0x6a] sm:$0xff]
      %v528 = vld [vmem:[#allocation2 + $0x7a] sm:$0xff]
      %v529 = vld [vmem:[#allocation2 + $0x82] sm:$0xff]
      %v530 = vld [vmem:[#allocation2 + $0x92] sm:$0xff]
      %v531 = vld [vmem:[#allocation2 + $0x9a] sm:$0xff]
      %v532 = vld [vmem:[#allocation2 + $0xaa] sm:$0xff]
      %v533 = vld [vmem:[#allocation2 + $0xb2] sm:$0xff]
      %v534 = vld [vmem:[#allocation2 + $0xc2] sm:$0xff]
      %v535 = vld [vmem:[#allocation2 + $0xca] sm:$0xff]
      %v536 = vld [vmem:[#allocation2 + $0xda] sm:$0xff]
      %v537 = vld [vmem:[#allocation2 + $0xe2] sm:$0xff]
      %v538 = vld [vmem:[#allocation2 + $0xf2] sm:$0xff]
      %v539 = vld [vmem:[#allocation2 + $0xfa] sm:$0xff]
      %v540 = vld [vmem:[#allocation2 + $0x10a] sm:$0xff]
      %v541 = vld [vmem:[#allocation2 + $0x112] sm:$0xff]
      %v542 = vld [vmem:[#allocation2 + $0x122] sm:$0xff]
      %v543 = vld [vmem:[#allocation2 + $0x12a] sm:$0xff]
      %v544 = vld [vmem:[#allocation2 + $0x13a] sm:$0xff]
      %v545 = vld [vmem:[#allocation2 + $0x142] sm:$0xff]
      %v546 = vld [vmem:[#allocation2 + $0x152] sm:$0xff]
      %v547 = vld [vmem:[#allocation2 + $0x15a] sm:$0xff]
      %v548 = vld [vmem:[#allocation2 + $0x16a] sm:$0xff]
      %v549 = vld [vmem:[#allocation2 + $0x172] sm:$0xff]
      %v550 = vld [vmem:[%s388] sm:$0xff]
      %v551 = vld [vmem:[%s388 + $0x8] sm:$0xff]
      %v552 = vld [vmem:[%s388 + $0x18] sm:$0xff]
      %v553 = vld [vmem:[%s388 + $0x20] sm:$0xff]
      %v554 = vld [vmem:[%s388 + $0x30] sm:$0xff]
      %v555 = vld [vmem:[%s388 + $0x38] sm:$0xff]
      %v556 = vld [vmem:[%s388 + $0x48] sm:$0xff]
      %v557 = vld [vmem:[%s388 + $0x50] sm:$0xff]
      %v558 = vld [vmem:[%s388 + $0x60] sm:$0xff]
      %v559 = vld [vmem:[%s388 + $0x68] sm:$0xff]
      %v560 = vld [vmem:[%s388 + $0x78] sm:$0xff]
      %v561 = vld [vmem:[%s388 + $0x80] sm:$0xff]
      %v562 = vld [vmem:[%s388 + $0x90] sm:$0xff]
      %v563 = vld [vmem:[%s388 + $0x98] sm:$0xff]
      %v564 = vld [vmem:[%s388 + $0xa8] sm:$0xff]
      %v565 = vld [vmem:[%s388 + $0xb0] sm:$0xff]
      %v566 = vld [vmem:[%s388 + $0xc0] sm:$0xff]
      %v567 = vld [vmem:[%s388 + $0xc8] sm:$0xff]
      %v568 = vld [vmem:[%s388 + $0xd8] sm:$0xff]
      %v569 = vld [vmem:[%s388 + $0xe0] sm:$0xff]
      %v570 = vld [vmem:[%s388 + $0xf0] sm:$0xff]
      %v571 = vld [vmem:[%s388 + $0xf8] sm:$0xff]
      %v572 = vld [vmem:[%s388 + $0x108] sm:$0xff]
      %v573 = vld [vmem:[%s388 + $0x110] sm:$0xff]
      %v574 = vld [vmem:[%s388 + $0x120] sm:$0xff]
      %v575 = vld [vmem:[%s388 + $0x128] sm:$0xff]
      %v576 = vld [vmem:[%s388 + $0x138] sm:$0xff]
      %v577 = vld [vmem:[%s388 + $0x140] sm:$0xff]
      %v578 = vld [vmem:[%s388 + $0x150] sm:$0xff]
      %v579 = vld [vmem:[%s388 + $0x158] sm:$0xff]
      %v580 = vld [vmem:[%s388 + $0x168] sm:$0xff]
      %v581 = vld [vmem:[%s388 + $0x170] sm:$0xff]
      %v582 = vld [vmem:[%s388 + $0x1] sm:$0xff]
      %v583 = vld [vmem:[%s388 + $0x9] sm:$0xff]
      %v584 = vld [vmem:[%s388 + $0x19] sm:$0xff]
      %v585 = vld [vmem:[%s388 + $0x21] sm:$0xff]
      %v586 = vld [vmem:[%s388 + $0x31] sm:$0xff]
      %v587 = vld [vmem:[%s388 + $0x39] sm:$0xff]
      %v588 = vld [vmem:[%s388 + $0x49] sm:$0xff]
      %v589 = vld [vmem:[%s388 + $0x51] sm:$0xff]
      %v590 = vld [vmem:[%s388 + $0x61] sm:$0xff]
      %v591 = vld [vmem:[%s388 + $0x69] sm:$0xff]
      %v592 = vld [vmem:[%s388 + $0x79] sm:$0xff]
      %v593 = vld [vmem:[%s388 + $0x81] sm:$0xff]
      %v594 = vld [vmem:[%s388 + $0x91] sm:$0xff]
      %v595 = vld [vmem:[%s388 + $0x99] sm:$0xff]
      %v596 = vld [vmem:[%s388 + $0xa9] sm:$0xff]
      %v597 = vld [vmem:[%s388 + $0xb1] sm:$0xff]
      %v598 = vld [vmem:[%s388 + $0xc1] sm:$0xff]
      %v599 = vld [vmem:[%s388 + $0xc9] sm:$0xff]
      %v600 = vld [vmem:[%s388 + $0xd9] sm:$0xff]
      %v601 = vld [vmem:[%s388 + $0xe1] sm:$0xff]
      %v602 = vld [vmem:[%s388 + $0xf1] sm:$0xff]
      %v603 = vld [vmem:[%s388 + $0xf9] sm:$0xff]
      %v604 = vld [vmem:[%s388 + $0x109] sm:$0xff]
      %v605 = vld [vmem:[%s388 + $0x111] sm:$0xff]
      %v606 = vld [vmem:[%s388 + $0x121] sm:$0xff]
      %v607 = vld [vmem:[%s388 + $0x129] sm:$0xff]
      %v608 = vld [vmem:[%s388 + $0x139] sm:$0xff]
      %v609 = vld [vmem:[%s388 + $0x141] sm:$0xff]
      %v610 = vld [vmem:[%s388 + $0x151] sm:$0xff]
      %v611 = vld [vmem:[%s388 + $0x159] sm:$0xff]
      %v612 = vld [vmem:[%s388 + $0x169] sm:$0xff]
      %v613 = vld [vmem:[%s388 + $0x171] sm:$0xff]
      %v614 = vld [vmem:[%s388 + $0x2] sm:$0xff]
      %v615 = vld [vmem:[%s388 + $0xa] sm:$0xff]
      %v616 = vld [vmem:[%s388 + $0x1a] sm:$0xff]
      %v617 = vld [vmem:[%s388 + $0x22] sm:$0xff]
      %v618 = vld [vmem:[%s388 + $0x32] sm:$0xff]
      %v619 = vld [vmem:[%s388 + $0x3a] sm:$0xff]
      %v620 = vld [vmem:[%s388 + $0x4a] sm:$0xff]
      %v621 = vld [vmem:[%s388 + $0x52] sm:$0xff]
      %v622 = vld [vmem:[%s388 + $0x62] sm:$0xff]
      %v623 = vld [vmem:[%s388 + $0x6a] sm:$0xff]
      %v624 = vld [vmem:[%s388 + $0x7a] sm:$0xff]
      %v625 = vld [vmem:[%s388 + $0x82] sm:$0xff]
      %v626 = vld [vmem:[%s388 + $0x92] sm:$0xff]
      %v627 = vld [vmem:[%s388 + $0x9a] sm:$0xff]
      %v628 = vld [vmem:[%s388 + $0xaa] sm:$0xff]
      %v629 = vld [vmem:[%s388 + $0xb2] sm:$0xff]
      %v630 = vld [vmem:[%s388 + $0xc2] sm:$0xff]
      %v631 = vld [vmem:[%s388 + $0xca] sm:$0xff]
      %v632 = vld [vmem:[%s388 + $0xda] sm:$0xff]
      %v633 = vld [vmem:[%s388 + $0xe2] sm:$0xff]
      %v634 = vld [vmem:[%s388 + $0xf2] sm:$0xff]
      %v635 = vld [vmem:[%s388 + $0xfa] sm:$0xff]
      %v636 = vld [vmem:[%s388 + $0x10a] sm:$0xff]
      %v637 = vld [vmem:[%s388 + $0x112] sm:$0xff]
      %v638 = vld [vmem:[%s388 + $0x122] sm:$0xff]
      %v639 = vld [vmem:[%s388 + $0x12a] sm:$0xff]
      %v640 = vld [vmem:[%s388 + $0x13a] sm:$0xff]
      %v641 = vld [vmem:[%s388 + $0x142] sm:$0xff]
      %v642 = vld [vmem:[%s388 + $0x152] sm:$0xff]
      %v643 = vld [vmem:[%s388 + $0x15a] sm:$0xff]
      %v644 = vld [vmem:[%s388 + $0x16a] sm:$0xff]
      %v645 = vld [vmem:[%s388 + $0x172] sm:$0xff]
      %s646 = scalar_lea.vmem [#allocation2], 48
      %v647 = vld [vmem:[%s646] sm:$0xff]
      %v648 = vld [vmem:[%s646 + $0x8] sm:$0xff]
      %v649 = vld [vmem:[%s646 + $0x18] sm:$0xff]
      %v650 = vld [vmem:[%s646 + $0x20] sm:$0xff]
      %v651 = vld [vmem:[%s646 + $0x30] sm:$0xff]
      %v652 = vld [vmem:[%s646 + $0x38] sm:$0xff]
      %v653 = vld [vmem:[%s646 + $0x48] sm:$0xff]
      %v654 = vld [vmem:[%s646 + $0x50] sm:$0xff]
      %v655 = vld [vmem:[%s646 + $0x60] sm:$0xff]
      %v656 = vld [vmem:[%s646 + $0x68] sm:$0xff]
      %v657 = vld [vmem:[%s646 + $0x78] sm:$0xff]
      %v658 = vld [vmem:[%s646 + $0x80] sm:$0xff]
      %v659 = vld [vmem:[%s646 + $0x90] sm:$0xff]
      %v660 = vld [vmem:[%s646 + $0x98] sm:$0xff]
      %v661 = vld [vmem:[%s646 + $0xa8] sm:$0xff]
      %v662 = vld [vmem:[%s646 + $0xb0] sm:$0xff]
      %v663 = vld [vmem:[%s646 + $0xc0] sm:$0xff]
      %v664 = vld [vmem:[%s646 + $0xc8] sm:$0xff]
      %v665 = vld [vmem:[%s646 + $0xd8] sm:$0xff]
      %v666 = vld [vmem:[%s646 + $0xe0] sm:$0xff]
      %v667 = vld [vmem:[%s646 + $0xf0] sm:$0xff]
      %v668 = vld [vmem:[%s646 + $0xf8] sm:$0xff]
      %v669 = vld [vmem:[%s646 + $0x108] sm:$0xff]
      %v670 = vld [vmem:[%s646 + $0x110] sm:$0xff]
      %v671 = vld [vmem:[%s646 + $0x120] sm:$0xff]
      %v672 = vld [vmem:[%s646 + $0x128] sm:$0xff]
      %v673 = vld [vmem:[%s646 + $0x138] sm:$0xff]
      %v674 = vld [vmem:[%s646 + $0x140] sm:$0xff]
      %v675 = vld [vmem:[%s646 + $0x150] sm:$0xff]
      %v676 = vld [vmem:[%s646 + $0x158] sm:$0xff]
      %v677 = vld [vmem:[%s646 + $0x168] sm:$0xff]
      %v678 = vld [vmem:[%s646 + $0x170] sm:$0xff]
      %v679 = vld [vmem:[%s646 + $0x1] sm:$0xff]
      %v680 = vld [vmem:[%s646 + $0x9] sm:$0xff]
      %v681 = vld [vmem:[%s646 + $0x19] sm:$0xff]
      %v682 = vld [vmem:[%s646 + $0x21] sm:$0xff]
      %v683 = vld [vmem:[%s646 + $0x31] sm:$0xff]
      %v684 = vld [vmem:[%s646 + $0x39] sm:$0xff]
      %v685 = vld [vmem:[%s646 + $0x49] sm:$0xff]
      %v686 = vld [vmem:[%s646 + $0x51] sm:$0xff]
      %v687 = vld [vmem:[%s646 + $0x61] sm:$0xff]
      %v688 = vld [vmem:[%s646 + $0x69] sm:$0xff]
      %v689 = vld [vmem:[%s646 + $0x79] sm:$0xff]
      %v690 = vld [vmem:[%s646 + $0x81] sm:$0xff]
      %v691 = vld [vmem:[%s646 + $0x91] sm:$0xff]
      %v692 = vld [vmem:[%s646 + $0x99] sm:$0xff]
      %v693 = vld [vmem:[%s646 + $0xa9] sm:$0xff]
      %v694 = vld [vmem:[%s646 + $0xb1] sm:$0xff]
      %v695 = vld [vmem:[%s646 + $0xc1] sm:$0xff]
      %v696 = vld [vmem:[%s646 + $0xc9] sm:$0xff]
      %v697 = vld [vmem:[%s646 + $0xd9] sm:$0xff]
      %v698 = vld [vmem:[%s646 + $0xe1] sm:$0xff]
      %v699 = vld [vmem:[%s646 + $0xf1] sm:$0xff]
      %v700 = vld [vmem:[%s646 + $0xf9] sm:$0xff]
      %v701 = vld [vmem:[%s646 + $0x109] sm:$0xff]
      %v702 = vld [vmem:[%s646 + $0x111] sm:$0xff]
      %v703 = vld [vmem:[%s646 + $0x121] sm:$0xff]
      %v704 = vld [vmem:[%s646 + $0x129] sm:$0xff]
      %v705 = vld [vmem:[%s646 + $0x139] sm:$0xff]
      %v706 = vld [vmem:[%s646 + $0x141] sm:$0xff]
      %v707 = vld [vmem:[%s646 + $0x151] sm:$0xff]
      %v708 = vld [vmem:[%s646 + $0x159] sm:$0xff]
      %v709 = vld [vmem:[%s646 + $0x169] sm:$0xff]
      %v710 = vld [vmem:[%s646 + $0x171] sm:$0xff]
      %v711 = vld [vmem:[%s646 + $0x2] sm:$0xff]
      %v712 = vld [vmem:[%s646 + $0xa] sm:$0xff]
      %v713 = vld [vmem:[%s646 + $0x1a] sm:$0xff]
      %v714 = vld [vmem:[%s646 + $0x22] sm:$0xff]
      %v715 = vld [vmem:[%s646 + $0x32] sm:$0xff]
      %v716 = vld [vmem:[%s646 + $0x3a] sm:$0xff]
      %v717 = vld [vmem:[%s646 + $0x4a] sm:$0xff]
      %v718 = vld [vmem:[%s646 + $0x52] sm:$0xff]
      %v719 = vld [vmem:[%s646 + $0x62] sm:$0xff]
      %v720 = vld [vmem:[%s646 + $0x6a] sm:$0xff]
      %v721 = vld [vmem:[%s646 + $0x7a] sm:$0xff]
      %v722 = vld [vmem:[%s646 + $0x82] sm:$0xff]
      %v723 = vld [vmem:[%s646 + $0x92] sm:$0xff]
      %v724 = vld [vmem:[%s646 + $0x9a] sm:$0xff]
      %v725 = vld [vmem:[%s646 + $0xaa] sm:$0xff]
      %v726 = vld [vmem:[%s646 + $0xb2] sm:$0xff]
      %v727 = vld [vmem:[%s646 + $0xc2] sm:$0xff]
      %v728 = vld [vmem:[%s646 + $0xca] sm:$0xff]
      %v729 = vld [vmem:[%s646 + $0xda] sm:$0xff]
      %v730 = vld [vmem:[%s646 + $0xe2] sm:$0xff]
      %v731 = vld [vmem:[%s646 + $0xf2] sm:$0xff]
      %v732 = vld [vmem:[%s646 + $0xfa] sm:$0xff]
      %v733 = vld [vmem:[%s646 + $0x10a] sm:$0xff]
      %v734 = vld [vmem:[%s646 + $0x112] sm:$0xff]
      %v735 = vld [vmem:[%s646 + $0x122] sm:$0xff]
      %v736 = vld [vmem:[%s646 + $0x12a] sm:$0xff]
      %v737 = vld [vmem:[%s646 + $0x13a] sm:$0xff]
      %v738 = vld [vmem:[%s646 + $0x142] sm:$0xff]
      %v739 = vld [vmem:[%s646 + $0x152] sm:$0xff]
      %v740 = vld [vmem:[%s646 + $0x15a] sm:$0xff]
      %v741 = vld [vmem:[%s646 + $0x16a] sm:$0xff]
      %v742 = vld [vmem:[%s646 + $0x172] sm:$0xff]
      %775 = vrot.lane.b32.xlu0 %v486, 4
      %v776 = vpop.permute.xlu0 %775
      %777 = vrot.lane.b32.xlu0 %v487, 4
      %v778 = vpop.permute.xlu0 %777
      %779 = vrot.lane.b32.xlu0 %v488, 4
      %v780 = vpop.permute.xlu0 %779
      %781 = vrot.lane.b32.xlu0 %v489, 4
      %v782 = vpop.permute.xlu0 %781
      %783 = vrot.lane.b32.xlu0 %v490, 4
      %v784 = vpop.permute.xlu0 %783
      %785 = vrot.lane.b32.xlu0 %v491, 4
      %v786 = vpop.permute.xlu0 %785
      %787 = vrot.lane.b32.xlu0 %v492, 4
      %v788 = vpop.permute.xlu0 %787
      %789 = vrot.lane.b32.xlu0 %v493, 4
      %v790 = vpop.permute.xlu0 %789
      %791 = vrot.lane.b32.xlu0 %v494, 4
      %v792 = vpop.permute.xlu0 %791
      %793 = vrot.lane.b32.xlu0 %v495, 4
      %v794 = vpop.permute.xlu0 %793
      %795 = vrot.lane.b32.xlu0 %v496, 4
      %v796 = vpop.permute.xlu0 %795
      %797 = vrot.lane.b32.xlu0 %v497, 4
      %v798 = vpop.permute.xlu0 %797
      %799 = vrot.lane.b32.xlu0 %v498, 4
      %v800 = vpop.permute.xlu0 %799
      %801 = vrot.lane.b32.xlu0 %v499, 4
      %v802 = vpop.permute.xlu0 %801
      %803 = vrot.lane.b32.xlu0 %v500, 4
      %v804 = vpop.permute.xlu0 %803
      %805 = vrot.lane.b32.xlu0 %v501, 4
      %v806 = vpop.permute.xlu0 %805
      %807 = vrot.lane.b32.xlu0 %v502, 4
      %v808 = vpop.permute.xlu0 %807
      %809 = vrot.lane.b32.xlu0 %v503, 4
      %v810 = vpop.permute.xlu0 %809
      %811 = vrot.lane.b32.xlu0 %v504, 4
      %v812 = vpop.permute.xlu0 %811
      %813 = vrot.lane.b32.xlu0 %v505, 4
      %v814 = vpop.permute.xlu0 %813
      %815 = vrot.lane.b32.xlu0 %v506, 4
      %v816 = vpop.permute.xlu0 %815
      %817 = vrot.lane.b32.xlu0 %v507, 4
      %v818 = vpop.permute.xlu0 %817
      %819 = vrot.lane.b32.xlu0 %v508, 4
      %v820 = vpop.permute.xlu0 %819
      %821 = vrot.lane.b32.xlu0 %v509, 4
      %v822 = vpop.permute.xlu0 %821
      %823 = vrot.lane.b32.xlu0 %v510, 4
      %v824 = vpop.permute.xlu0 %823
      %825 = vrot.lane.b32.xlu0 %v511, 4
      %v826 = vpop.permute.xlu0 %825
      %827 = vrot.lane.b32.xlu0 %v512, 4
      %v828 = vpop.permute.xlu0 %827
      %829 = vrot.lane.b32.xlu0 %v513, 4
      %v830 = vpop.permute.xlu0 %829
      %831 = vrot.lane.b32.xlu0 %v514, 4
      %v832 = vpop.permute.xlu0 %831
      %833 = vrot.lane.b32.xlu0 %v515, 4
      %v834 = vpop.permute.xlu0 %833
      %835 = vrot.lane.b32.xlu0 %v516, 4
      %v836 = vpop.permute.xlu0 %835
      %837 = vrot.lane.b32.xlu0 %v517, 4
      %v838 = vpop.permute.xlu0 %837
      %903 = vrot.lane.b32.xlu0 %v518, 8
      %v904 = vpop.permute.xlu0 %903
      %905 = vrot.lane.b32.xlu0 %v519, 8
      %v906 = vpop.permute.xlu0 %905
      %907 = vrot.lane.b32.xlu0 %v520, 8
      %v908 = vpop.permute.xlu0 %907
      %909 = vrot.lane.b32.xlu0 %v521, 8
      %v910 = vpop.permute.xlu0 %909
      %911 = vrot.lane.b32.xlu0 %v522, 8
      %v912 = vpop.permute.xlu0 %911
      %913 = vrot.lane.b32.xlu0 %v523, 8
      %v914 = vpop.permute.xlu0 %913
      %915 = vrot.lane.b32.xlu0 %v524, 8
      %v916 = vpop.permute.xlu0 %915
      %917 = vrot.lane.b32.xlu0 %v525, 8
      %v918 = vpop.permute.xlu0 %917
      %919 = vrot.lane.b32.xlu0 %v526, 8
      %v920 = vpop.permute.xlu0 %919
      %921 = vrot.lane.b32.xlu0 %v527, 8
      %v922 = vpop.permute.xlu0 %921
      %923 = vrot.lane.b32.xlu0 %v528, 8
      %v924 = vpop.permute.xlu0 %923
      %925 = vrot.lane.b32.xlu0 %v529, 8
      %v926 = vpop.permute.xlu0 %925
      %927 = vrot.lane.b32.xlu0 %v530, 8
      %v928 = vpop.permute.xlu0 %927
      %929 = vrot.lane.b32.xlu0 %v531, 8
      %v930 = vpop.permute.xlu0 %929
      %931 = vrot.lane.b32.xlu0 %v532, 8
      %v932 = vpop.permute.xlu0 %931
      %933 = vrot.lane.b32.xlu0 %v533, 8
      %v934 = vpop.permute.xlu0 %933
      %935 = vrot.lane.b32.xlu0 %v534, 8
      %v936 = vpop.permute.xlu0 %935
      %937 = vrot.lane.b32.xlu0 %v535, 8
      %v938 = vpop.permute.xlu0 %937
      %939 = vrot.lane.b32.xlu0 %v536, 8
      %v940 = vpop.permute.xlu0 %939
      %941 = vrot.lane.b32.xlu0 %v537, 8
      %v942 = vpop.permute.xlu0 %941
      %943 = vrot.lane.b32.xlu0 %v538, 8
      %v944 = vpop.permute.xlu0 %943
      %945 = vrot.lane.b32.xlu0 %v539, 8
      %v946 = vpop.permute.xlu0 %945
      %947 = vrot.lane.b32.xlu0 %v540, 8
      %v948 = vpop.permute.xlu0 %947
      %949 = vrot.lane.b32.xlu0 %v541, 8
      %v950 = vpop.permute.xlu0 %949
      %951 = vrot.lane.b32.xlu0 %v542, 8
      %v952 = vpop.permute.xlu0 %951
      %953 = vrot.lane.b32.xlu0 %v543, 8
      %v954 = vpop.permute.xlu0 %953
      %955 = vrot.lane.b32.xlu0 %v544, 8
      %v956 = vpop.permute.xlu0 %955
      %957 = vrot.lane.b32.xlu0 %v545, 8
      %v958 = vpop.permute.xlu0 %957
      %959 = vrot.lane.b32.xlu0 %v546, 8
      %v960 = vpop.permute.xlu0 %959
      %961 = vrot.lane.b32.xlu0 %v547, 8
      %v962 = vpop.permute.xlu0 %961
      %963 = vrot.lane.b32.xlu0 %v548, 8
      %v964 = vpop.permute.xlu0 %963
      %965 = vrot.lane.b32.xlu0 %v549, 8
      %v966 = vpop.permute.xlu0 %965
      %1031 = vrot.lane.b32.xlu0 %v550, 12
      %v1032 = vpop.permute.xlu0 %1031
      %1033 = vrot.lane.b32.xlu0 %v551, 12
      %v1034 = vpop.permute.xlu0 %1033
      %1035 = vrot.lane.b32.xlu0 %v552, 12
      %v1036 = vpop.permute.xlu0 %1035
      %1037 = vrot.lane.b32.xlu0 %v553, 12
      %v1038 = vpop.permute.xlu0 %1037
      %1039 = vrot.lane.b32.xlu0 %v554, 12
      %v1040 = vpop.permute.xlu0 %1039
      %1041 = vrot.lane.b32.xlu0 %v555, 12
      %v1042 = vpop.permute.xlu0 %1041
      %1043 = vrot.lane.b32.xlu0 %v556, 12
      %v1044 = vpop.permute.xlu0 %1043
      %1045 = vrot.lane.b32.xlu0 %v557, 12
      %v1046 = vpop.permute.xlu0 %1045
      %1047 = vrot.lane.b32.xlu0 %v558, 12
      %v1048 = vpop.permute.xlu0 %1047
      %1049 = vrot.lane.b32.xlu0 %v559, 12
      %v1050 = vpop.permute.xlu0 %1049
      %1051 = vrot.lane.b32.xlu0 %v560, 12
      %v1052 = vpop.permute.xlu0 %1051
      %1053 = vrot.lane.b32.xlu0 %v561, 12
      %v1054 = vpop.permute.xlu0 %1053
      %1055 = vrot.lane.b32.xlu0 %v562, 12
      %v1056 = vpop.permute.xlu0 %1055
      %1057 = vrot.lane.b32.xlu0 %v563, 12
      %v1058 = vpop.permute.xlu0 %1057
      %1059 = vrot.lane.b32.xlu0 %v564, 12
      %v1060 = vpop.permute.xlu0 %1059
      %1061 = vrot.lane.b32.xlu0 %v565, 12
      %v1062 = vpop.permute.xlu0 %1061
      %1063 = vrot.lane.b32.xlu0 %v566, 12
      %v1064 = vpop.permute.xlu0 %1063
      %1065 = vrot.lane.b32.xlu0 %v567, 12
      %v1066 = vpop.permute.xlu0 %1065
      %1067 = vrot.lane.b32.xlu0 %v568, 12
      %v1068 = vpop.permute.xlu0 %1067
      %1069 = vrot.lane.b32.xlu0 %v569, 12
      %v1070 = vpop.permute.xlu0 %1069
      %1071 = vrot.lane.b32.xlu0 %v570, 12
      %v1072 = vpop.permute.xlu0 %1071
      %1073 = vrot.lane.b32.xlu0 %v571, 12
      %v1074 = vpop.permute.xlu0 %1073
      %1075 = vrot.lane.b32.xlu0 %v572, 12
      %v1076 = vpop.permute.xlu0 %1075
      %1077 = vrot.lane.b32.xlu0 %v573, 12
      %v1078 = vpop.permute.xlu0 %1077
      %1079 = vrot.lane.b32.xlu0 %v574, 12
      %v1080 = vpop.permute.xlu0 %1079
      %1081 = vrot.lane.b32.xlu0 %v575, 12
      %v1082 = vpop.permute.xlu0 %1081
      %1083 = vrot.lane.b32.xlu0 %v576, 12
      %v1084 = vpop.permute.xlu0 %1083
      %1085 = vrot.lane.b32.xlu0 %v577, 12
      %v1086 = vpop.permute.xlu0 %1085
      %1087 = vrot.lane.b32.xlu0 %v578, 12
      %v1088 = vpop.permute.xlu0 %1087
      %1089 = vrot.lane.b32.xlu0 %v579, 12
      %v1090 = vpop.permute.xlu0 %1089
      %1091 = vrot.lane.b32.xlu0 %v580, 12
      %v1092 = vpop.permute.xlu0 %1091
      %1093 = vrot.lane.b32.xlu0 %v581, 12
      %v1094 = vpop.permute.xlu0 %1093
      %1159 = vrot.lane.b32.xlu0 %v582, 16
      %v1160 = vpop.permute.xlu0 %1159
      %1161 = vrot.lane.b32.xlu0 %v583, 16
      %v1162 = vpop.permute.xlu0 %1161
      %1163 = vrot.lane.b32.xlu0 %v584, 16
      %v1164 = vpop.permute.xlu0 %1163
      %1165 = vrot.lane.b32.xlu0 %v585, 16
      %v1166 = vpop.permute.xlu0 %1165
      %1167 = vrot.lane.b32.xlu0 %v586, 16
      %v1168 = vpop.permute.xlu0 %1167
      %1169 = vrot.lane.b32.xlu0 %v587, 16
      %v1170 = vpop.permute.xlu0 %1169
      %1171 = vrot.lane.b32.xlu0 %v588, 16
      %v1172 = vpop.permute.xlu0 %1171
      %1173 = vrot.lane.b32.xlu0 %v589, 16
      %v1174 = vpop.permute.xlu0 %1173
      %1175 = vrot.lane.b32.xlu0 %v590, 16
      %v1176 = vpop.permute.xlu0 %1175
      %1177 = vrot.lane.b32.xlu0 %v591, 16
      %v1178 = vpop.permute.xlu0 %1177
      %1179 = vrot.lane.b32.xlu0 %v592, 16
      %v1180 = vpop.permute.xlu0 %1179
      %1181 = vrot.lane.b32.xlu0 %v593, 16
      %v1182 = vpop.permute.xlu0 %1181
      %1183 = vrot.lane.b32.xlu0 %v594, 16
      %v1184 = vpop.permute.xlu0 %1183
      %1185 = vrot.lane.b32.xlu0 %v595, 16
      %v1186 = vpop.permute.xlu0 %1185
      %1187 = vrot.lane.b32.xlu0 %v596, 16
      %v1188 = vpop.permute.xlu0 %1187
      %1189 = vrot.lane.b32.xlu0 %v597, 16
      %v1190 = vpop.permute.xlu0 %1189
      %1191 = vrot.lane.b32.xlu0 %v598, 16
      %v1192 = vpop.permute.xlu0 %1191
      %1193 = vrot.lane.b32.xlu0 %v599, 16
      %v1194 = vpop.permute.xlu0 %1193
      %1195 = vrot.lane.b32.xlu0 %v600, 16
      %v1196 = vpop.permute.xlu0 %1195
      %1197 = vrot.lane.b32.xlu0 %v601, 16
      %v1198 = vpop.permute.xlu0 %1197
      %1199 = vrot.lane.b32.xlu0 %v602, 16
      %v1200 = vpop.permute.xlu0 %1199
      %1201 = vrot.lane.b32.xlu0 %v603, 16
      %v1202 = vpop.permute.xlu0 %1201
      %1203 = vrot.lane.b32.xlu0 %v604, 16
      %v1204 = vpop.permute.xlu0 %1203
      %1205 = vrot.lane.b32.xlu0 %v605, 16
      %v1206 = vpop.permute.xlu0 %1205
      %1207 = vrot.lane.b32.xlu0 %v606, 16
      %v1208 = vpop.permute.xlu0 %1207
      %1209 = vrot.lane.b32.xlu0 %v607, 16
      %v1210 = vpop.permute.xlu0 %1209
      %1211 = vrot.lane.b32.xlu0 %v608, 16
      %v1212 = vpop.permute.xlu0 %1211
      %1213 = vrot.lane.b32.xlu0 %v609, 16
      %v1214 = vpop.permute.xlu0 %1213
      %1215 = vrot.lane.b32.xlu0 %v610, 16
      %v1216 = vpop.permute.xlu0 %1215
      %1217 = vrot.lane.b32.xlu0 %v611, 16
      %v1218 = vpop.permute.xlu0 %1217
      %1219 = vrot.lane.b32.xlu0 %v612, 16
      %v1220 = vpop.permute.xlu0 %1219
      %1221 = vrot.lane.b32.xlu0 %v613, 16
      %v1222 = vpop.permute.xlu0 %1221
      %1287 = vrot.lane.b32.xlu0 %v614, 20
      %v1288 = vpop.permute.xlu0 %1287
      %1289 = vrot.lane.b32.xlu0 %v615, 20
      %v1290 = vpop.permute.xlu0 %1289
      %1291 = vrot.lane.b32.xlu0 %v616, 20
      %v1292 = vpop.permute.xlu0 %1291
      %1293 = vrot.lane.b32.xlu0 %v617, 20
      %v1294 = vpop.permute.xlu0 %1293
      %1295 = vrot.lane.b32.xlu0 %v618, 20
      %v1296 = vpop.permute.xlu0 %1295
      %1297 = vrot.lane.b32.xlu0 %v619, 20
      %v1298 = vpop.permute.xlu0 %1297
      %1299 = vrot.lane.b32.xlu0 %v620, 20
      %v1300 = vpop.permute.xlu0 %1299
      %1301 = vrot.lane.b32.xlu0 %v621, 20
      %v1302 = vpop.permute.xlu0 %1301
      %1303 = vrot.lane.b32.xlu0 %v622, 20
      %v1304 = vpop.permute.xlu0 %1303
      %1305 = vrot.lane.b32.xlu0 %v623, 20
      %v1306 = vpop.permute.xlu0 %1305
      %1307 = vrot.lane.b32.xlu0 %v624, 20
      %v1308 = vpop.permute.xlu0 %1307
      %1309 = vrot.lane.b32.xlu0 %v625, 20
      %v1310 = vpop.permute.xlu0 %1309
      %1311 = vrot.lane.b32.xlu0 %v626, 20
      %v1312 = vpop.permute.xlu0 %1311
      %1313 = vrot.lane.b32.xlu0 %v627, 20
      %v1314 = vpop.permute.xlu0 %1313
      %1315 = vrot.lane.b32.xlu0 %v628, 20
      %v1316 = vpop.permute.xlu0 %1315
      %1317 = vrot.lane.b32.xlu0 %v629, 20
      %v1318 = vpop.permute.xlu0 %1317
      %1319 = vrot.lane.b32.xlu0 %v630, 20
      %v1320 = vpop.permute.xlu0 %1319
      %1321 = vrot.lane.b32.xlu0 %v631, 20
      %v1322 = vpop.permute.xlu0 %1321
      %1323 = vrot.lane.b32.xlu0 %v632, 20
      %v1324 = vpop.permute.xlu0 %1323
      %1325 = vrot.lane.b32.xlu0 %v633, 20
      %v1326 = vpop.permute.xlu0 %1325
      %1327 = vrot.lane.b32.xlu0 %v634, 20
      %v1328 = vpop.permute.xlu0 %1327
      %1329 = vrot.lane.b32.xlu0 %v635, 20
      %v1330 = vpop.permute.xlu0 %1329
      %1331 = vrot.lane.b32.xlu0 %v636, 20
      %v1332 = vpop.permute.xlu0 %1331
      %1333 = vrot.lane.b32.xlu0 %v637, 20
      %v1334 = vpop.permute.xlu0 %1333
      %1335 = vrot.lane.b32.xlu0 %v638, 20
      %v1336 = vpop.permute.xlu0 %1335
      %1337 = vrot.lane.b32.xlu0 %v639, 20
      %v1338 = vpop.permute.xlu0 %1337
      %1339 = vrot.lane.b32.xlu0 %v640, 20
      %v1340 = vpop.permute.xlu0 %1339
      %1341 = vrot.lane.b32.xlu0 %v641, 20
      %v1342 = vpop.permute.xlu0 %1341
      %1343 = vrot.lane.b32.xlu0 %v642, 20
      %v1344 = vpop.permute.xlu0 %1343
      %1345 = vrot.lane.b32.xlu0 %v643, 20
      %v1346 = vpop.permute.xlu0 %1345
      %1347 = vrot.lane.b32.xlu0 %v644, 20
      %v1348 = vpop.permute.xlu0 %1347
      %1349 = vrot.lane.b32.xlu0 %v645, 20
      %v1350 = vpop.permute.xlu0 %1349
      %1415 = vrot.lane.b32.xlu0 %v647, 24
      %v1416 = vpop.permute.xlu0 %1415
      %1417 = vrot.lane.b32.xlu0 %v648, 24
      %v1418 = vpop.permute.xlu0 %1417
      %1419 = vrot.lane.b32.xlu0 %v649, 24
      %v1420 = vpop.permute.xlu0 %1419
      %1421 = vrot.lane.b32.xlu0 %v650, 24
      %v1422 = vpop.permute.xlu0 %1421
      %1423 = vrot.lane.b32.xlu0 %v651, 24
      %v1424 = vpop.permute.xlu0 %1423
      %1425 = vrot.lane.b32.xlu0 %v652, 24
      %v1426 = vpop.permute.xlu0 %1425
      %1427 = vrot.lane.b32.xlu0 %v653, 24
      %v1428 = vpop.permute.xlu0 %1427
      %1429 = vrot.lane.b32.xlu0 %v654, 24
      %v1430 = vpop.permute.xlu0 %1429
      %1431 = vrot.lane.b32.xlu0 %v655, 24
      %v1432 = vpop.permute.xlu0 %1431
      %1433 = vrot.lane.b32.xlu0 %v656, 24
      %v1434 = vpop.permute.xlu0 %1433
      %1435 = vrot.lane.b32.xlu0 %v657, 24
      %v1436 = vpop.permute.xlu0 %1435
      %1437 = vrot.lane.b32.xlu0 %v658, 24
      %v1438 = vpop.permute.xlu0 %1437
      %1439 = vrot.lane.b32.xlu0 %v659, 24
      %v1440 = vpop.permute.xlu0 %1439
      %1441 = vrot.lane.b32.xlu0 %v660, 24
      %v1442 = vpop.permute.xlu0 %1441
      %1443 = vrot.lane.b32.xlu0 %v661, 24
      %v1444 = vpop.permute.xlu0 %1443
      %1445 = vrot.lane.b32.xlu0 %v662, 24
      %v1446 = vpop.permute.xlu0 %1445
      %1447 = vrot.lane.b32.xlu0 %v663, 24
      %v1448 = vpop.permute.xlu0 %1447
      %1449 = vrot.lane.b32.xlu0 %v664, 24
      %v1450 = vpop.permute.xlu0 %1449
      %1451 = vrot.lane.b32.xlu0 %v665, 24
      %v1452 = vpop.permute.xlu0 %1451
      %1453 = vrot.lane.b32.xlu0 %v666, 24
      %v1454 = vpop.permute.xlu0 %1453
      %1455 = vrot.lane.b32.xlu0 %v667, 24
      %v1456 = vpop.permute.xlu0 %1455
      %1457 = vrot.lane.b32.xlu0 %v668, 24
      %v1458 = vpop.permute.xlu0 %1457
      %1459 = vrot.lane.b32.xlu0 %v669, 24
      %v1460 = vpop.permute.xlu0 %1459
      %1461 = vrot.lane.b32.xlu0 %v670, 24
      %v1462 = vpop.permute.xlu0 %1461
      %1463 = vrot.lane.b32.xlu0 %v671, 24
      %v1464 = vpop.permute.xlu0 %1463
      %1465 = vrot.lane.b32.xlu0 %v672, 24
      %v1466 = vpop.permute.xlu0 %1465
      %1467 = vrot.lane.b32.xlu0 %v673, 24
      %v1468 = vpop.permute.xlu0 %1467
      %1469 = vrot.lane.b32.xlu0 %v674, 24
      %v1470 = vpop.permute.xlu0 %1469
      %1471 = vrot.lane.b32.xlu0 %v675, 24
      %v1472 = vpop.permute.xlu0 %1471
      %1473 = vrot.lane.b32.xlu0 %v676, 24
      %v1474 = vpop.permute.xlu0 %1473
      %1475 = vrot.lane.b32.xlu0 %v677, 24
      %v1476 = vpop.permute.xlu0 %1475
      %1477 = vrot.lane.b32.xlu0 %v678, 24
      %v1478 = vpop.permute.xlu0 %1477
      %1543 = vrot.lane.b32.xlu0 %v679, 28
      %v1544 = vpop.permute.xlu0 %1543
      %1545 = vrot.lane.b32.xlu0 %v680, 28
      %v1546 = vpop.permute.xlu0 %1545
      %1547 = vrot.lane.b32.xlu0 %v681, 28
      %v1548 = vpop.permute.xlu0 %1547
      %1549 = vrot.lane.b32.xlu0 %v682, 28
      %v1550 = vpop.permute.xlu0 %1549
      %1551 = vrot.lane.b32.xlu0 %v683, 28
      %v1552 = vpop.permute.xlu0 %1551
      %1553 = vrot.lane.b32.xlu0 %v684, 28
      %v1554 = vpop.permute.xlu0 %1553
      %1555 = vrot.lane.b32.xlu0 %v685, 28
      %v1556 = vpop.permute.xlu0 %1555
      %1557 = vrot.lane.b32.xlu0 %v686, 28
      %v1558 = vpop.permute.xlu0 %1557
      %1559 = vrot.lane.b32.xlu0 %v687, 28
      %v1560 = vpop.permute.xlu0 %1559
      %1561 = vrot.lane.b32.xlu0 %v688, 28
      %v1562 = vpop.permute.xlu0 %1561
      %1563 = vrot.lane.b32.xlu0 %v689, 28
      %v1564 = vpop.permute.xlu0 %1563
      %1565 = vrot.lane.b32.xlu0 %v690, 28
      %v1566 = vpop.permute.xlu0 %1565
      %1567 = vrot.lane.b32.xlu0 %v691, 28
      %v1568 = vpop.permute.xlu0 %1567
      %1569 = vrot.lane.b32.xlu0 %v692, 28
      %v1570 = vpop.permute.xlu0 %1569
      %1571 = vrot.lane.b32.xlu0 %v693, 28
      %v1572 = vpop.permute.xlu0 %1571
      %1573 = vrot.lane.b32.xlu0 %v694, 28
      %v1574 = vpop.permute.xlu0 %1573
      %1575 = vrot.lane.b32.xlu0 %v695, 28
      %v1576 = vpop.permute.xlu0 %1575
      %1577 = vrot.lane.b32.xlu0 %v696, 28
      %v1578 = vpop.permute.xlu0 %1577
      %1579 = vrot.lane.b32.xlu0 %v697, 28
      %v1580 = vpop.permute.xlu0 %1579
      %1581 = vrot.lane.b32.xlu0 %v698, 28
      %v1582 = vpop.permute.xlu0 %1581
      %1583 = vrot.lane.b32.xlu0 %v699, 28
      %v1584 = vpop.permute.xlu0 %1583
      %1585 = vrot.lane.b32.xlu0 %v700, 28
      %v1586 = vpop.permute.xlu0 %1585
      %1587 = vrot.lane.b32.xlu0 %v701, 28
      %v1588 = vpop.permute.xlu0 %1587
      %1589 = vrot.lane.b32.xlu0 %v702, 28
      %v1590 = vpop.permute.xlu0 %1589
      %1591 = vrot.lane.b32.xlu0 %v703, 28
      %v1592 = vpop.permute.xlu0 %1591
      %1593 = vrot.lane.b32.xlu0 %v704, 28
      %v1594 = vpop.permute.xlu0 %1593
      %1595 = vrot.lane.b32.xlu0 %v705, 28
      %v1596 = vpop.permute.xlu0 %1595
      %1597 = vrot.lane.b32.xlu0 %v706, 28
      %v1598 = vpop.permute.xlu0 %1597
      %1599 = vrot.lane.b32.xlu0 %v707, 28
      %v1600 = vpop.permute.xlu0 %1599
      %1601 = vrot.lane.b32.xlu0 %v708, 28
      %v1602 = vpop.permute.xlu0 %1601
      %1603 = vrot.lane.b32.xlu0 %v709, 28
      %v1604 = vpop.permute.xlu0 %1603
      %1605 = vrot.lane.b32.xlu0 %v710, 28
      %v1606 = vpop.permute.xlu0 %1605
      %1671 = vrot.lane.b32.xlu0 %v711, 32
      %v1672 = vpop.permute.xlu0 %1671
      %1673 = vrot.lane.b32.xlu0 %v712, 32
      %v1674 = vpop.permute.xlu0 %1673
      %1675 = vrot.lane.b32.xlu0 %v713, 32
      %v1676 = vpop.permute.xlu0 %1675
      %1677 = vrot.lane.b32.xlu0 %v714, 32
      %v1678 = vpop.permute.xlu0 %1677
      %1679 = vrot.lane.b32.xlu0 %v715, 32
      %v1680 = vpop.permute.xlu0 %1679
      %1681 = vrot.lane.b32.xlu0 %v716, 32
      %v1682 = vpop.permute.xlu0 %1681
      %1683 = vrot.lane.b32.xlu0 %v717, 32
      %v1684 = vpop.permute.xlu0 %1683
      %1685 = vrot.lane.b32.xlu0 %v718, 32
      %v1686 = vpop.permute.xlu0 %1685
      %1687 = vrot.lane.b32.xlu0 %v719, 32
      %v1688 = vpop.permute.xlu0 %1687
      %1689 = vrot.lane.b32.xlu0 %v720, 32
      %v1690 = vpop.permute.xlu0 %1689
      %1691 = vrot.lane.b32.xlu0 %v721, 32
      %v1692 = vpop.permute.xlu0 %1691
      %1693 = vrot.lane.b32.xlu0 %v722, 32
      %v1694 = vpop.permute.xlu0 %1693
      %1695 = vrot.lane.b32.xlu0 %v723, 32
      %v1696 = vpop.permute.xlu0 %1695
      %1697 = vrot.lane.b32.xlu0 %v724, 32
      %v1698 = vpop.permute.xlu0 %1697
      %1699 = vrot.lane.b32.xlu0 %v725, 32
      %v1700 = vpop.permute.xlu0 %1699
      %1701 = vrot.lane.b32.xlu0 %v726, 32
      %v1702 = vpop.permute.xlu0 %1701
      %1703 = vrot.lane.b32.xlu0 %v727, 32
      %v1704 = vpop.permute.xlu0 %1703
      %1705 = vrot.lane.b32.xlu0 %v728, 32
      %v1706 = vpop.permute.xlu0 %1705
      %1707 = vrot.lane.b32.xlu0 %v729, 32
      %v1708 = vpop.permute.xlu0 %1707
      %1709 = vrot.lane.b32.xlu0 %v730, 32
      %v1710 = vpop.permute.xlu0 %1709
      %1711 = vrot.lane.b32.xlu0 %v731, 32
      %v1712 = vpop.permute.xlu0 %1711
      %1713 = vrot.lane.b32.xlu0 %v732, 32
      %v1714 = vpop.permute.xlu0 %1713
      %1715 = vrot.lane.b32.xlu0 %v733, 32
      %v1716 = vpop.permute.xlu0 %1715
      %1717 = vrot.lane.b32.xlu0 %v734, 32
      %v1718 = vpop.permute.xlu0 %1717
      %1719 = vrot.lane.b32.xlu0 %v735, 32
      %v1720 = vpop.permute.xlu0 %1719
      %1721 = vrot.lane.b32.xlu0 %v736, 32
      %v1722 = vpop.permute.xlu0 %1721
      %1723 = vrot.lane.b32.xlu0 %v737, 32
      %v1724 = vpop.permute.xlu0 %1723
      %1725 = vrot.lane.b32.xlu0 %v738, 32
      %v1726 = vpop.permute.xlu0 %1725
      %1727 = vrot.lane.b32.xlu0 %v739, 32
      %v1728 = vpop.permute.xlu0 %1727
      %1729 = vrot.lane.b32.xlu0 %v740, 32
      %v1730 = vpop.permute.xlu0 %1729
      %1731 = vrot.lane.b32.xlu0 %v741, 32
      %v1732 = vpop.permute.xlu0 %1731
      %1733 = vrot.lane.b32.xlu0 %v742, 32
      %v1734 = vpop.permute.xlu0 %1733
      %v1767 = vsel %vm379, %v454, %v776
      %v1768 = vsel %vm379, %v455, %v778
      %v1769 = vsel %vm379, %v456, %v780
      %v1770 = vsel %vm379, %v457, %v782
      %v1771 = vsel %vm379, %v458, %v784
      %v1772 = vsel %vm379, %v459, %v786
      %v1773 = vsel %vm379, %v460, %v788
      %v1774 = vsel %vm379, %v461, %v790
      %v1775 = vsel %vm379, %v462, %v792
      %v1776 = vsel %vm379, %v463, %v794
      %v1777 = vsel %vm379, %v464, %v796
      %v1778 = vsel %vm379, %v465, %v798
      %v1779 = vsel %vm379, %v466, %v800
      %v1780 = vsel %vm379, %v467, %v802
      %v1781 = vsel %vm379, %v468, %v804
      %v1782 = vsel %vm379, %v469, %v806
      %v1783 = vsel %vm379, %v470, %v808
      %v1784 = vsel %vm379, %v471, %v810
      %v1785 = vsel %vm379, %v472, %v812
      %v1786 = vsel %vm379, %v473, %v814
      %v1787 = vsel %vm379, %v474, %v816
      %v1788 = vsel %vm379, %v475, %v818
      %v1789 = vsel %vm379, %v476, %v820
      %v1790 = vsel %vm379, %v477, %v822
      %v1791 = vsel %vm379, %v478, %v824
      %v1792 = vsel %vm379, %v479, %v826
      %v1793 = vsel %vm379, %v480, %v828
      %v1794 = vsel %vm379, %v481, %v830
      %v1795 = vsel %vm379, %v482, %v832
      %v1796 = vsel %vm379, %v483, %v834
      %v1797 = vsel %vm379, %v484, %v836
      %v1798 = vsel %vm379, %v485, %v838
      %vm1799 = vcmask 64512
      %v1800 = vsel %vm1799, %v1767, %v904
      %v1801 = vsel %vm1799, %v1768, %v906
      %v1802 = vsel %vm1799, %v1769, %v908
      %v1803 = vsel %vm1799, %v1770, %v910
      %v1804 = vsel %vm1799, %v1771, %v912
      %v1805 = vsel %vm1799, %v1772, %v914
      %v1806 = vsel %vm1799, %v1773, %v916
      %v1807 = vsel %vm1799, %v1774, %v918
      %v1808 = vsel %vm1799, %v1775, %v920
      %v1809 = vsel %vm1799, %v1776, %v922
      %v1810 = vsel %vm1799, %v1777, %v924
      %v1811 = vsel %vm1799, %v1778, %v926
      %v1812 = vsel %vm1799, %v1779, %v928
      %v1813 = vsel %vm1799, %v1780, %v930
      %v1814 = vsel %vm1799, %v1781, %v932
      %v1815 = vsel %vm1799, %v1782, %v934
      %v1816 = vsel %vm1799, %v1783, %v936
      %v1817 = vsel %vm1799, %v1784, %v938
      %v1818 = vsel %vm1799, %v1785, %v940
      %v1819 = vsel %vm1799, %v1786, %v942
      %v1820 = vsel %vm1799, %v1787, %v944
      %v1821 = vsel %vm1799, %v1788, %v946
      %v1822 = vsel %vm1799, %v1789, %v948
      %v1823 = vsel %vm1799, %v1790, %v950
      %v1824 = vsel %vm1799, %v1791, %v952
      %v1825 = vsel %vm1799, %v1792, %v954
      %v1826 = vsel %vm1799, %v1793, %v956
      %v1827 = vsel %vm1799, %v1794, %v958
      %v1828 = vsel %vm1799, %v1795, %v960
      %v1829 = vsel %vm1799, %v1796, %v962
      %v1830 = vsel %vm1799, %v1797, %v964
      %v1831 = vsel %vm1799, %v1798, %v966
      %vm1832 = vcmask 97280
      %v1833 = vsel %vm1832, %v1800, %v1032
      %v1834 = vsel %vm1832, %v1801, %v1034
      %v1835 = vsel %vm1832, %v1802, %v1036
      %v1836 = vsel %vm1832, %v1803, %v1038
      %v1837 = vsel %vm1832, %v1804, %v1040
      %v1838 = vsel %vm1832, %v1805, %v1042
      %v1839 = vsel %vm1832, %v1806, %v1044
      %v1840 = vsel %vm1832, %v1807, %v1046
      %v1841 = vsel %vm1832, %v1808, %v1048
      %v1842 = vsel %vm1832, %v1809, %v1050
      %v1843 = vsel %vm1832, %v1810, %v1052
      %v1844 = vsel %vm1832, %v1811, %v1054
      %v1845 = vsel %vm1832, %v1812, %v1056
      %v1846 = vsel %vm1832, %v1813, %v1058
      %v1847 = vsel %vm1832, %v1814, %v1060
      %v1848 = vsel %vm1832, %v1815, %v1062
      %v1849 = vsel %vm1832, %v1816, %v1064
      %v1850 = vsel %vm1832, %v1817, %v1066
      %v1851 = vsel %vm1832, %v1818, %v1068
      %v1852 = vsel %vm1832, %v1819, %v1070
      %v1853 = vsel %vm1832, %v1820, %v1072
      %v1854 = vsel %vm1832, %v1821, %v1074
      %v1855 = vsel %vm1832, %v1822, %v1076
      %v1856 = vsel %vm1832, %v1823, %v1078
      %v1857 = vsel %vm1832, %v1824, %v1080
      %v1858 = vsel %vm1832, %v1825, %v1082
      %v1859 = vsel %vm1832, %v1826, %v1084
      %v1860 = vsel %vm1832, %v1827, %v1086
      %v1861 = vsel %vm1832, %v1828, %v1088
      %v1862 = vsel %vm1832, %v1829, %v1090
      %v1863 = vsel %vm1832, %v1830, %v1092
      %v1864 = vsel %vm1832, %v1831, %v1094
      %vm1865 = vcmask 130048
      %v1866 = vsel %vm1865, %v1833, %v1160
      %v1867 = vsel %vm1865, %v1834, %v1162
      %v1868 = vsel %vm1865, %v1835, %v1164
      %v1869 = vsel %vm1865, %v1836, %v1166
      %v1870 = vsel %vm1865, %v1837, %v1168
      %v1871 = vsel %vm1865, %v1838, %v1170
      %v1872 = vsel %vm1865, %v1839, %v1172
      %v1873 = vsel %vm1865, %v1840, %v1174
      %v1874 = vsel %vm1865, %v1841, %v1176
      %v1875 = vsel %vm1865, %v1842, %v1178
      %v1876 = vsel %vm1865, %v1843, %v1180
      %v1877 = vsel %vm1865, %v1844, %v1182
      %v1878 = vsel %vm1865, %v1845, %v1184
      %v1879 = vsel %vm1865, %v1846, %v1186
      %v1880 = vsel %vm1865, %v1847, %v1188
      %v1881 = vsel %vm1865, %v1848, %v1190
      %v1882 = vsel %vm1865, %v1849, %v1192
      %v1883 = vsel %vm1865, %v1850, %v1194
      %v1884 = vsel %vm1865, %v1851, %v1196
      %v1885 = vsel %vm1865, %v1852, %v1198
      %v1886 = vsel %vm1865, %v1853, %v1200
      %v1887 = vsel %vm1865, %v1854, %v1202
      %v1888 = vsel %vm1865, %v1855, %v1204
      %v1889 = vsel %vm1865, %v1856, %v1206
      %v1890 = vsel %vm1865, %v1857, %v1208
      %v1891 = vsel %vm1865, %v1858, %v1210
      %v1892 = vsel %vm1865, %v1859, %v1212
      %v1893 = vsel %vm1865, %v1860, %v1214
      %v1894 = vsel %vm1865, %v1861, %v1216
      %v1895 = vsel %vm1865, %v1862, %v1218
      %v1896 = vsel %vm1865, %v1863, %v1220
      %v1897 = vsel %vm1865, %v1864, %v1222
      %vm1898 = vcmask 162816
      %v1899 = vsel %vm1898, %v1866, %v1288
      %v1900 = vsel %vm1898, %v1867, %v1290
      %v1901 = vsel %vm1898, %v1868, %v1292
      %v1902 = vsel %vm1898, %v1869, %v1294
      %v1903 = vsel %vm1898, %v1870, %v1296
      %v1904 = vsel %vm1898, %v1871, %v1298
      %v1905 = vsel %vm1898, %v1872, %v1300
      %v1906 = vsel %vm1898, %v1873, %v1302
      %v1907 = vsel %vm1898, %v1874, %v1304
      %v1908 = vsel %vm1898, %v1875, %v1306
      %v1909 = vsel %vm1898, %v1876, %v1308
      %v1910 = vsel %vm1898, %v1877, %v1310
      %v1911 = vsel %vm1898, %v1878, %v1312
      %v1912 = vsel %vm1898, %v1879, %v1314
      %v1913 = vsel %vm1898, %v1880, %v1316
      %v1914 = vsel %vm1898, %v1881, %v1318
      %v1915 = vsel %vm1898, %v1882, %v1320
      %v1916 = vsel %vm1898, %v1883, %v1322
      %v1917 = vsel %vm1898, %v1884, %v1324
      %v1918 = vsel %vm1898, %v1885, %v1326
      %v1919 = vsel %vm1898, %v1886, %v1328
      %v1920 = vsel %vm1898, %v1887, %v1330
      %v1921 = vsel %vm1898, %v1888, %v1332
      %v1922 = vsel %vm1898, %v1889, %v1334
      %v1923 = vsel %vm1898, %v1890, %v1336
      %v1924 = vsel %vm1898, %v1891, %v1338
      %v1925 = vsel %vm1898, %v1892, %v1340
      %v1926 = vsel %vm1898, %v1893, %v1342
      %v1927 = vsel %vm1898, %v1894, %v1344
      %v1928 = vsel %vm1898, %v1895, %v1346
      %v1929 = vsel %vm1898, %v1896, %v1348
      %v1930 = vsel %vm1898, %v1897, %v1350
      %vm1931 = vcmask 195584
      %v1932 = vsel %vm1931, %v1899, %v1416
      %v1933 = vsel %vm1931, %v1900, %v1418
      %v1934 = vsel %vm1931, %v1901, %v1420
      %v1935 = vsel %vm1931, %v1902, %v1422
      %v1936 = vsel %vm1931, %v1903, %v1424
      %v1937 = vsel %vm1931, %v1904, %v1426
      %v1938 = vsel %vm1931, %v1905, %v1428
      %v1939 = vsel %vm1931, %v1906, %v1430
      %v1940 = vsel %vm1931, %v1907, %v1432
      %v1941 = vsel %vm1931, %v1908, %v1434
      %v1942 = vsel %vm1931, %v1909, %v1436
      %v1943 = vsel %vm1931, %v1910, %v1438
      %v1944 = vsel %vm1931, %v1911, %v1440
      %v1945 = vsel %vm1931, %v1912, %v1442
      %v1946 = vsel %vm1931, %v1913, %v1444
      %v1947 = vsel %vm1931, %v1914, %v1446
      %v1948 = vsel %vm1931, %v1915, %v1448
      %v1949 = vsel %vm1931, %v1916, %v1450
      %v1950 = vsel %vm1931, %v1917, %v1452
      %v1951 = vsel %vm1931, %v1918, %v1454
      %v1952 = vsel %vm1931, %v1919, %v1456
      %v1953 = vsel %vm1931, %v1920, %v1458
      %v1954 = vsel %vm1931, %v1921, %v1460
      %v1955 = vsel %vm1931, %v1922, %v1462
      %v1956 = vsel %vm1931, %v1923, %v1464
      %v1957 = vsel %vm1931, %v1924, %v1466
      %v1958 = vsel %vm1931, %v1925, %v1468
      %v1959 = vsel %vm1931, %v1926, %v1470
      %v1960 = vsel %vm1931, %v1927, %v1472
      %v1961 = vsel %vm1931, %v1928, %v1474
      %v1962 = vsel %vm1931, %v1929, %v1476
      %v1963 = vsel %vm1931, %v1930, %v1478
      %vm1964 = vcmask 228352
      %v1965 = vsel %vm1964, %v1932, %v1544
      %v1966 = vsel %vm1964, %v1933, %v1546
      %v1967 = vsel %vm1964, %v1934, %v1548
      %v1968 = vsel %vm1964, %v1935, %v1550
      %v1969 = vsel %vm1964, %v1936, %v1552
      %v1970 = vsel %vm1964, %v1937, %v1554
      %v1971 = vsel %vm1964, %v1938, %v1556
      %v1972 = vsel %vm1964, %v1939, %v1558
      %v1973 = vsel %vm1964, %v1940, %v1560
      %v1974 = vsel %vm1964, %v1941, %v1562
      %v1975 = vsel %vm1964, %v1942, %v1564
      %v1976 = vsel %vm1964, %v1943, %v1566
      %v1977 = vsel %vm1964, %v1944, %v1568
      %v1978 = vsel %vm1964, %v1945, %v1570
      %v1979 = vsel %vm1964, %v1946, %v1572
      %v1980 = vsel %vm1964, %v1947, %v1574
      %v1981 = vsel %vm1964, %v1948, %v1576
      %v1982 = vsel %vm1964, %v1949, %v1578
      %v1983 = vsel %vm1964, %v1950, %v1580
      %v1984 = vsel %vm1964, %v1951, %v1582
      %v1985 = vsel %vm1964, %v1952, %v1584
      %v1986 = vsel %vm1964, %v1953, %v1586
      %v1987 = vsel %vm1964, %v1954, %v1588
      %v1988 = vsel %vm1964, %v1955, %v1590
      %v1989 = vsel %vm1964, %v1956, %v1592
      %v1990 = vsel %vm1964, %v1957, %v1594
      %v1991 = vsel %vm1964, %v1958, %v1596
      %v1992 = vsel %vm1964, %v1959, %v1598
      %v1993 = vsel %vm1964, %v1960, %v1600
      %v1994 = vsel %vm1964, %v1961, %v1602
      %v1995 = vsel %vm1964, %v1962, %v1604
      %v1996 = vsel %vm1964, %v1963, %v1606
      %vm1997 = vcmask 261120
      %v1998 = vsel %vm1997, %v1965, %v1672
      %v1999 = vsel %vm1997, %v1966, %v1674
      %v2000 = vsel %vm1997, %v1967, %v1676
      %v2001 = vsel %vm1997, %v1968, %v1678
      %v2002 = vsel %vm1997, %v1969, %v1680
      %v2003 = vsel %vm1997, %v1970, %v1682
      %v2004 = vsel %vm1997, %v1971, %v1684
      %v2005 = vsel %vm1997, %v1972, %v1686
      %v2006 = vsel %vm1997, %v1973, %v1688
      %v2007 = vsel %vm1997, %v1974, %v1690
      %v2008 = vsel %vm1997, %v1975, %v1692
      %v2009 = vsel %vm1997, %v1976, %v1694
      %v2010 = vsel %vm1997, %v1977, %v1696
      %v2011 = vsel %vm1997, %v1978, %v1698
      %v2012 = vsel %vm1997, %v1979, %v1700
      %v2013 = vsel %vm1997, %v1980, %v1702
      %v2014 = vsel %vm1997, %v1981, %v1704
      %v2015 = vsel %vm1997, %v1982, %v1706
      %v2016 = vsel %vm1997, %v1983, %v1708
      %v2017 = vsel %vm1997, %v1984, %v1710
      %v2018 = vsel %vm1997, %v1985, %v1712
      %v2019 = vsel %vm1997, %v1986, %v1714
      %v2020 = vsel %vm1997, %v1987, %v1716
      %v2021 = vsel %vm1997, %v1988, %v1718
      %v2022 = vsel %vm1997, %v1989, %v1720
      %v2023 = vsel %vm1997, %v1990, %v1722
      %v2024 = vsel %vm1997, %v1991, %v1724
      %v2025 = vsel %vm1997, %v1992, %v1726
      %v2026 = vsel %vm1997, %v1993, %v1728
      %v2027 = vsel %vm1997, %v1994, %v1730
      %v2028 = vsel %vm1997, %v1995, %v1732
      %v2029 = vsel %vm1997, %v1996, %v1734
      %v2030 = vpack.c.bf16 %v1999, %v1998
      %v2031 = vpack.c.bf16 %v2001, %v2000
      %v2032 = vpack.c.bf16 %v2003, %v2002
      %v2033 = vpack.c.bf16 %v2005, %v2004
      %v2034 = vpack.c.bf16 %v2007, %v2006
      %v2035 = vpack.c.bf16 %v2009, %v2008
      %v2036 = vpack.c.bf16 %v2011, %v2010
      %v2037 = vpack.c.bf16 %v2013, %v2012
      %v2038 = vpack.c.bf16 %v2015, %v2014
      %v2039 = vpack.c.bf16 %v2017, %v2016
      %v2040 = vpack.c.bf16 %v2019, %v2018
      %v2041 = vpack.c.bf16 %v2021, %v2020
      %v2042 = vpack.c.bf16 %v2023, %v2022
      %v2043 = vpack.c.bf16 %v2025, %v2024
      %v2044 = vpack.c.bf16 %v2027, %v2026
      %v2045 = vpack.c.bf16 %v2029, %v2028
      %v2046 = vld [vmem:[%s1] sm:$0xf]
      %v2047 = vld [vmem:[%s1 + $0x4] sm:$0xf]
      %v2048 = vld [vmem:[%s1 + $0x8] sm:$0xf]
      %v2049 = vld [vmem:[%s1 + $0xc] sm:$0xf]
      %v2050 = vld [vmem:[%s1 + $0x10] sm:$0x3]
      %v2056 = vunpack.c.l.b16 %v2046
      %v2057 = vunpack.c.l.b16 %v2047
      %v2058 = vunpack.c.l.b16 %v2048
      %v2059 = vunpack.c.l.b16 %v2049
      %v2060 = vunpack.c.l.b16 %v2050
      %v2061 = vpack.c.b16 %v2057, %v2056
      %v2062 = vpack.c.b16 %v2059, %v2058
      %v2063 = vpack.c.b16 %v2060, %v2060
      %vm2066 = vcmask 293888
      %v2068 = vsel %vm2066, %v2030, 0
      %v2071 = vsel %vm2066, %v2031, 0
      %v2074 = vsel %vm2066, %v2032, 0
      %v2077 = vsel %vm2066, %v2033, 0
      %v2080 = vsel %vm2066, %v2034, 0
      %v2083 = vsel %vm2066, %v2035, 0
      %v2086 = vsel %vm2066, %v2036, 0
      %v2089 = vsel %vm2066, %v2037, 0
      %v2092 = vsel %vm2066, %v2038, 0
      %v2095 = vsel %vm2066, %v2039, 0
      %v2098 = vsel %vm2066, %v2040, 0
      %v2101 = vsel %vm2066, %v2041, 0
      %v2104 = vsel %vm2066, %v2042, 0
      %v2107 = vsel %vm2066, %v2043, 0
      %v2110 = vsel %vm2066, %v2044, 0
      %v2113 = vsel %vm2066, %v2045, 0
      %vm2115 = vcmask 1041408
      %v2117 = vsel %vm2115, %v2063, 0
      %2119 = vmatprep.subr.bf16.mxu0 0
      %2120 = vmatpush1.bf16.msra.mxu0 %v2061
      %2121 = vmatprep.subr.bf16.mxu0 0
      %2122 = vmatpush1.bf16.msra.mxu0 %v2062
      %2123 = vmatprep.subr.bf16.mxu0 0
      %2124 = vmatpush1.bf16.msra.mxu0 %v2117
      %2125 = vmatprep.subr.bf16.mxu0 0
      %2126 = vmatpush1.bf16.msra.mxu0 0
      %2127 = vmatprep.subr.bf16.mxu0 0
      %2128 = vmatpush1.bf16.msra.mxu0 0
      %2129 = vmatprep.subr.bf16.mxu0 0
      %2130 = vmatpush1.bf16.msra.mxu0 0
      %2131 = vmatprep.subr.bf16.mxu0 0
      %2132 = vmatpush1.bf16.msra.mxu0 0
      %2133 = vmatprep.subr.bf16.mxu0 0
      %2134 = vmatpush1.bf16.msra.mxu0 0
      %2135 = vmatprep.subr.bf16.mxu0 0
      %2136 = vmatpush1.bf16.msra.mxu0 0
      %2137 = vmatprep.subr.bf16.mxu0 0
      %2138 = vmatpush1.bf16.msra.mxu0 0
      %2139 = vmatprep.subr.bf16.mxu0 0
      %2140 = vmatpush1.bf16.msra.mxu0 0
      %2141 = vmatprep.subr.bf16.mxu0 0
      %2142 = vmatpush1.bf16.msra.mxu0 0
      %2143 = vmatprep.subr.bf16.mxu0 0
      %2144 = vmatpush1.bf16.msra.mxu0 0
      %2145 = vmatprep.subr.bf16.mxu0 0
      %2146 = vmatpush1.bf16.msra.mxu0 0
      %2147 = vmatprep.subr.bf16.mxu0 0
      %2148 = vmatpush1.bf16.msra.mxu0 0
      %2149 = vmatprep.subr.bf16.mxu0 0
      %2150 = vmatpush1.bf16.msra.mxu0 0
      %2151 = vmatprep.mubr.bf16.mxu0 0
      %2152 = vmatmul.mubr.bf16.gmra.mrb[0].mxu0 %v2068
      %v2153 = vpop.f32.mrb[0].mxu0
      %v2154 = vadd.f32 0.0, %v2153
      %v2155 = vpop.f32.mrb[0].mxu0
      %v2156 = vpop.f32.mrb[0].mxu0
      %v2157 = vadd.f32 0.0, %v2156
      %v2158 = vpop.f32.mrb[0].mxu0
      %2159 = vmatprep.mubr.bf16.mxu0 0
      %2160 = vmatmul.mubr.bf16.gmra.mrb[0].mxu0 %v2071
      %v2161 = vpop.f32.mrb[0].mxu0
      %v2162 = vadd.f32 0.0, %v2161
      %v2163 = vpop.f32.mrb[0].mxu0
      %v2164 = vpop.f32.mrb[0].mxu0
      %v2165 = vadd.f32 0.0, %v2164
      %v2166 = vpop.f32.mrb[0].mxu0
      %2167 = vmatprep.mubr.bf16.mxu0 0
      %2168 = vmatmul.mubr.bf16.gmra.mrb[0].mxu0 %v2074
      %v2169 = vpop.f32.mrb[0].mxu0
      %v2170 = vadd.f32 0.0, %v2169
      %v2171 = vpop.f32.mrb[0].mxu0
      %v2172 = vpop.f32.mrb[0].mxu0
      %v2173 = vadd.f32 0.0, %v2172
      %v2174 = vpop.f32.mrb[0].mxu0
      %2175 = vmatprep.mubr.bf16.mxu0 0
      %2176 = vmatmul.mubr.bf16.gmra.mrb[0].mxu0 %v2077
      %v2177 = vpop.f32.mrb[0].mxu0
      %v2178 = vadd.f32 0.0, %v2177
      %v2179 = vpop.f32.mrb[0].mxu0
      %v2180 = vpop.f32.mrb[0].mxu0
      %v2181 = vadd.f32 0.0, %v2180
      %v2182 = vpop.f32.mrb[0].mxu0
      %2183 = vmatprep.mubr.bf16.mxu0 0
      %2184 = vmatmul.mubr.bf16.gmra.mrb[0].mxu0 %v2080
      %v2185 = vpop.f32.mrb[0].mxu0
      %v2186 = vadd.f32 0.0, %v2185
      %v2187 = vpop.f32.mrb[0].mxu0
      %v2188 = vpop.f32.mrb[0].mxu0
      %v2189 = vadd.f32 0.0, %v2188
      %v2190 = vpop.f32.mrb[0].mxu0
      %2191 = vmatprep.mubr.bf16.mxu0 0
      %2192 = vmatmul.mubr.bf16.gmra.mrb[0].mxu0 %v2083
      %v2193 = vpop.f32.mrb[0].mxu0
      %v2194 = vadd.f32 0.0, %v2193
      %v2195 = vpop.f32.mrb[0].mxu0
      %v2196 = vpop.f32.mrb[0].mxu0
      %v2197 = vadd.f32 0.0, %v2196
      %v2198 = vpop.f32.mrb[0].mxu0
      %2199 = vmatprep.mubr.bf16.mxu0 0
      %2200 = vmatmul.mubr.bf16.gmra.mrb[0].mxu0 %v2086
      %v2201 = vpop.f32.mrb[0].mxu0
      %v2202 = vadd.f32 0.0, %v2201
      %v2203 = vpop.f32.mrb[0].mxu0
      %v2204 = vpop.f32.mrb[0].mxu0
      %v2205 = vadd.f32 0.0, %v2204
      %v2206 = vpop.f32.mrb[0].mxu0
      %2207 = vmatprep.mubr.bf16.mxu0 0
      %2208 = vmatmul.mubr.bf16.gmra.mrb[0].mxu0 %v2089
      %v2209 = vpop.f32.mrb[0].mxu0
      %v2210 = vadd.f32 0.0, %v2209
      %v2211 = vpop.f32.mrb[0].mxu0
      %v2212 = vpop.f32.mrb[0].mxu0
      %v2213 = vadd.f32 0.0, %v2212
      %v2214 = vpop.f32.mrb[0].mxu0
      %2215 = vmatprep.mubr.bf16.mxu0 0
      %2216 = vmatmul.mubr.bf16.gmra.mrb[0].mxu0 %v2092
      %v2217 = vpop.f32.mrb[0].mxu0
      %v2218 = vadd.f32 0.0, %v2217
      %v2219 = vpop.f32.mrb[0].mxu0
      %v2220 = vpop.f32.mrb[0].mxu0
      %v2221 = vadd.f32 0.0, %v2220
      %v2222 = vpop.f32.mrb[0].mxu0
      %2223 = vmatprep.mubr.bf16.mxu0 0
      %2224 = vmatmul.mubr.bf16.gmra.mrb[0].mxu0 %v2095
      %v2225 = vpop.f32.mrb[0].mxu0
      %v2226 = vadd.f32 0.0, %v2225
      %v2227 = vpop.f32.mrb[0].mxu0
      %v2228 = vpop.f32.mrb[0].mxu0
      %v2229 = vadd.f32 0.0, %v2228
      %v2230 = vpop.f32.mrb[0].mxu0
      %2231 = vmatprep.mubr.bf16.mxu0 0
      %2232 = vmatmul.mubr.bf16.gmra.mrb[0].mxu0 %v2098
      %v2233 = vpop.f32.mrb[0].mxu0
      %v2234 = vadd.f32 0.0, %v2233
      %v2235 = vpop.f32.mrb[0].mxu0
      %v2236 = vpop.f32.mrb[0].mxu0
      %v2237 = vadd.f32 0.0, %v2236
      %v2238 = vpop.f32.mrb[0].mxu0
      %2239 = vmatprep.mubr.bf16.mxu0 0
      %2240 = vmatmul.mubr.bf16.gmra.mrb[0].mxu0 %v2101
      %v2241 = vpop.f32.mrb[0].mxu0
      %v2242 = vadd.f32 0.0, %v2241
      %v2243 = vpop.f32.mrb[0].mxu0
      %v2244 = vpop.f32.mrb[0].mxu0
      %v2245 = vadd.f32 0.0, %v2244
      %v2246 = vpop.f32.mrb[0].mxu0
      %2247 = vmatprep.mubr.bf16.mxu0 0
      %2248 = vmatmul.mubr.bf16.gmra.mrb[0].mxu0 %v2104
      %v2249 = vpop.f32.mrb[0].mxu0
      %v2250 = vadd.f32 0.0, %v2249
      %v2251 = vpop.f32.mrb[0].mxu0
      %v2252 = vpop.f32.mrb[0].mxu0
      %v2253 = vadd.f32 0.0, %v2252
      %v2254 = vpop.f32.mrb[0].mxu0
      %2255 = vmatprep.mubr.bf16.mxu0 0
      %2256 = vmatmul.mubr.bf16.gmra.mrb[0].mxu0 %v2107
      %v2257 = vpop.f32.mrb[0].mxu0
      %v2258 = vadd.f32 0.0, %v2257
      %v2259 = vpop.f32.mrb[0].mxu0
      %v2260 = vpop.f32.mrb[0].mxu0
      %v2261 = vadd.f32 0.0, %v2260
      %v2262 = vpop.f32.mrb[0].mxu0
      %2263 = vmatprep.mubr.bf16.mxu0 0
      %2264 = vmatmul.mubr.bf16.gmra.mrb[0].mxu0 %v2110
      %v2265 = vpop.f32.mrb[0].mxu0
      %v2266 = vadd.f32 0.0, %v2265
      %v2267 = vpop.f32.mrb[0].mxu0
      %v2268 = vpop.f32.mrb[0].mxu0
      %v2269 = vadd.f32 0.0, %v2268
      %v2270 = vpop.f32.mrb[0].mxu0
      %2271 = vmatprep.mubr.bf16.mxu0 0
      %2272 = vmatmul.mubr.bf16.gmra.mrb[0].mxu0 %v2113
      %v2273 = vpop.f32.mrb[0].mxu0
      %v2274 = vadd.f32 0.0, %v2273
      %v2275 = vpop.f32.mrb[0].mxu0
      %v2276 = vpop.f32.mrb[0].mxu0
      %v2277 = vadd.f32 0.0, %v2276
      %v2278 = vpop.f32.mrb[0].mxu0
      %2279 = vdwg.mxu0
      %v2280 = vsel %vm379, %v2154, 0.0
      %v2281 = vsel %vm379, %v2157, 0.0
      %v2282 = vadd.f32 %v2280, %v2281
      %v2283 = vsel %vm379, %v2162, 0.0
      %v2284 = vadd.f32 %v2282, %v2283
      %v2285 = vsel %vm379, %v2165, 0.0
      %v2286 = vadd.f32 %v2284, %v2285
      %v2287 = vsel %vm379, %v2170, 0.0
      %v2288 = vadd.f32 %v2286, %v2287
      %v2289 = vsel %vm379, %v2173, 0.0
      %v2290 = vadd.f32 %v2288, %v2289
      %v2291 = vsel %vm379, %v2178, 0.0
      %v2292 = vadd.f32 %v2290, %v2291
      %v2293 = vsel %vm379, %v2181, 0.0
      %v2294 = vadd.f32 %v2292, %v2293
      %v2295 = vsel %vm379, %v2186, 0.0
      %v2296 = vadd.f32 %v2294, %v2295
      %v2297 = vsel %vm379, %v2189, 0.0
      %v2298 = vadd.f32 %v2296, %v2297
      %v2299 = vsel %vm379, %v2194, 0.0
      %v2300 = vadd.f32 %v2298, %v2299
      %v2301 = vsel %vm379, %v2197, 0.0
      %v2302 = vadd.f32 %v2300, %v2301
      %v2303 = vsel %vm379, %v2202, 0.0
      %v2304 = vadd.f32 %v2302, %v2303
      %v2305 = vsel %vm379, %v2205, 0.0
      %v2306 = vadd.f32 %v2304, %v2305
      %v2307 = vsel %vm379, %v2210, 0.0
      %v2308 = vadd.f32 %v2306, %v2307
      %v2309 = vsel %vm379, %v2213, 0.0
      %v2310 = vadd.f32 %v2308, %v2309
      %v2311 = vsel %vm379, %v2218, 0.0
      %v2312 = vadd.f32 %v2310, %v2311
      %v2313 = vsel %vm379, %v2221, 0.0
      %v2314 = vadd.f32 %v2312, %v2313
      %v2315 = vsel %vm379, %v2226, 0.0
      %v2316 = vadd.f32 %v2314, %v2315
      %v2317 = vsel %vm379, %v2229, 0.0
      %v2318 = vadd.f32 %v2316, %v2317
      %v2319 = vsel %vm379, %v2234, 0.0
      %v2320 = vadd.f32 %v2318, %v2319
      %v2321 = vsel %vm379, %v2237, 0.0
      %v2322 = vadd.f32 %v2320, %v2321
      %v2323 = vsel %vm379, %v2242, 0.0
      %v2324 = vadd.f32 %v2322, %v2323
      %v2325 = vsel %vm379, %v2245, 0.0
      %v2326 = vadd.f32 %v2324, %v2325
      %v2327 = vsel %vm379, %v2250, 0.0
      %v2328 = vadd.f32 %v2326, %v2327
      %v2329 = vsel %vm379, %v2253, 0.0
      %v2330 = vadd.f32 %v2328, %v2329
      %v2331 = vsel %vm379, %v2258, 0.0
      %v2332 = vadd.f32 %v2330, %v2331
      %v2333 = vsel %vm379, %v2261, 0.0
      %v2334 = vadd.f32 %v2332, %v2333
      %v2335 = vsel %vm379, %v2266, 0.0
      %v2336 = vadd.f32 %v2334, %v2335
      %v2337 = vsel %vm379, %v2269, 0.0
      %v2338 = vadd.f32 %v2336, %v2337
      %v2339 = vsel %vm379, %v2274, 0.0
      %v2340 = vadd.f32 %v2338, %v2339
      %v2341 = vsel %vm379, %v2277, 0.0
      %v2342 = vadd.f32 %v2340, %v2341
      %v2343 = vrot.slane %v2342, 4
      %v2344 = vadd.f32 %v2342, %v2343
      %v2345 = vrot.slane %v2344, 2
      %v2346 = vadd.f32 %v2344, %v2345
      %v2347 = vrot.slane %v2346, 1
      %v2348 = vadd.f32 %v2346, %v2347
      %v2349 = vmul.f32 %v2154, %v2154
      %v2350 = vmul.f32 %v2157, %v2157
      %v2351 = vmul.f32 %v2162, %v2162
      %v2352 = vmul.f32 %v2165, %v2165
      %v2353 = vmul.f32 %v2170, %v2170
      %v2354 = vmul.f32 %v2173, %v2173
      %v2355 = vmul.f32 %v2178, %v2178
      %v2356 = vmul.f32 %v2181, %v2181
      %v2357 = vmul.f32 %v2186, %v2186
      %v2358 = vmul.f32 %v2189, %v2189
      %v2359 = vmul.f32 %v2194, %v2194
      %v2360 = vmul.f32 %v2197, %v2197
      %v2361 = vmul.f32 %v2202, %v2202
      %v2362 = vmul.f32 %v2205, %v2205
      %v2363 = vmul.f32 %v2210, %v2210
      %v2364 = vmul.f32 %v2213, %v2213
      %v2365 = vmul.f32 %v2218, %v2218
      %v2366 = vmul.f32 %v2221, %v2221
      %v2367 = vmul.f32 %v2226, %v2226
      %v2368 = vmul.f32 %v2229, %v2229
      %v2369 = vmul.f32 %v2234, %v2234
      %v2370 = vmul.f32 %v2237, %v2237
      %v2371 = vmul.f32 %v2242, %v2242
      %v2372 = vmul.f32 %v2245, %v2245
      %v2373 = vmul.f32 %v2250, %v2250
      %v2374 = vmul.f32 %v2253, %v2253
      %v2375 = vmul.f32 %v2258, %v2258
      %v2376 = vmul.f32 %v2261, %v2261
      %v2377 = vmul.f32 %v2266, %v2266
      %v2378 = vmul.f32 %v2269, %v2269
      %v2379 = vmul.f32 %v2274, %v2274
      %v2380 = vmul.f32 %v2277, %v2277
      %v2381 = vsel %vm379, %v2349, 0.0
      %v2382 = vsel %vm379, %v2350, 0.0
      %v2383 = vadd.f32 %v2381, %v2382
      %v2384 = vsel %vm379, %v2351, 0.0
      %v2385 = vadd.f32 %v2383, %v2384
      %v2386 = vsel %vm379, %v2352, 0.0
      %v2387 = vadd.f32 %v2385, %v2386
      %v2388 = vsel %vm379, %v2353, 0.0
      %v2389 = vadd.f32 %v2387, %v2388
      %v2390 = vsel %vm379, %v2354, 0.0
      %v2391 = vadd.f32 %v2389, %v2390
      %v2392 = vsel %vm379, %v2355, 0.0
      %v2393 = vadd.f32 %v2391, %v2392
      %v2394 = vsel %vm379, %v2356, 0.0
      %v2395 = vadd.f32 %v2393, %v2394
      %v2396 = vsel %vm379, %v2357, 0.0
      %v2397 = vadd.f32 %v2395, %v2396
      %v2398 = vsel %vm379, %v2358, 0.0
      %v2399 = vadd.f32 %v2397, %v2398
      %v2400 = vsel %vm379, %v2359, 0.0
      %v2401 = vadd.f32 %v2399, %v2400
      %v2402 = vsel %vm379, %v2360, 0.0
      %v2403 = vadd.f32 %v2401, %v2402
      %v2404 = vsel %vm379, %v2361, 0.0
      %v2405 = vadd.f32 %v2403, %v2404
      %v2406 = vsel %vm379, %v2362, 0.0
      %v2407 = vadd.f32 %v2405, %v2406
      %v2408 = vsel %vm379, %v2363, 0.0
      %v2409 = vadd.f32 %v2407, %v2408
      %v2410 = vsel %vm379, %v2364, 0.0
      %v2411 = vadd.f32 %v2409, %v2410
      %v2412 = vsel %vm379, %v2365, 0.0
      %v2413 = vadd.f32 %v2411, %v2412
      %v2414 = vsel %vm379, %v2366, 0.0
      %v2415 = vadd.f32 %v2413, %v2414
      %v2416 = vsel %vm379, %v2367, 0.0
      %v2417 = vadd.f32 %v2415, %v2416
      %v2418 = vsel %vm379, %v2368, 0.0
      %v2419 = vadd.f32 %v2417, %v2418
      %v2420 = vsel %vm379, %v2369, 0.0
      %v2421 = vadd.f32 %v2419, %v2420
      %v2422 = vsel %vm379, %v2370, 0.0
      %v2423 = vadd.f32 %v2421, %v2422
      %v2424 = vsel %vm379, %v2371, 0.0
      %v2425 = vadd.f32 %v2423, %v2424
      %v2426 = vsel %vm379, %v2372, 0.0
      %v2427 = vadd.f32 %v2425, %v2426
      %v2428 = vsel %vm379, %v2373, 0.0
      %v2429 = vadd.f32 %v2427, %v2428
      %v2430 = vsel %vm379, %v2374, 0.0
      %v2431 = vadd.f32 %v2429, %v2430
      %v2432 = vsel %vm379, %v2375, 0.0
      %v2433 = vadd.f32 %v2431, %v2432
      %v2434 = vsel %vm379, %v2376, 0.0
      %v2435 = vadd.f32 %v2433, %v2434
      %v2436 = vsel %vm379, %v2377, 0.0
      %v2437 = vadd.f32 %v2435, %v2436
      %v2438 = vsel %vm379, %v2378, 0.0
      %v2439 = vadd.f32 %v2437, %v2438
      %v2440 = vsel %vm379, %v2379, 0.0
      %v2441 = vadd.f32 %v2439, %v2440
      %v2442 = vsel %vm379, %v2380, 0.0
      %v2443 = vadd.f32 %v2441, %v2442
      %v2444 = vrot.slane %v2443, 4
      %v2445 = vadd.f32 %v2443, %v2444
      %v2446 = vrot.slane %v2445, 2
      %v2447 = vadd.f32 %v2445, %v2446
      %v2448 = vrot.slane %v2447, 1
      %v2449 = vadd.f32 %v2447, %v2448
      %vm2450 = vcmask 1040384
      %v2451 = vsel %vm2450, %v2348, %v2449
      %2452 = vst.msk [vmem:[%s235] sm:$0x3] %vm382, %v2451
      %2453 = vst.msk [vmem:[%s231] sm:$0xff] %vm379, %v2154
      %2454 = vst.msk [vmem:[%s231 + $0x8] sm:$0xff] %vm379, %v2157
      %2455 = vst.msk [vmem:[%s231 + $0x10] sm:$0xff] %vm379, %v2162
      %2456 = vst.msk [vmem:[%s231 + $0x18] sm:$0xff] %vm379, %v2165
      %2457 = vst.msk [vmem:[%s231 + $0x20] sm:$0xff] %vm379, %v2170
      %2458 = vst.msk [vmem:[%s231 + $0x28] sm:$0xff] %vm379, %v2173
      %2459 = vst.msk [vmem:[%s231 + $0x30] sm:$0xff] %vm379, %v2178
      %2460 = vst.msk [vmem:[%s231 + $0x38] sm:$0xff] %vm379, %v2181
      %2461 = vst.msk [vmem:[%s231 + $0x40] sm:$0xff] %vm379, %v2186
      %2462 = vst.msk [vmem:[%s231 + $0x48] sm:$0xff] %vm379, %v2189
      %2463 = vst.msk [vmem:[%s231 + $0x50] sm:$0xff] %vm379, %v2194
      %2464 = vst.msk [vmem:[%s231 + $0x58] sm:$0xff] %vm379, %v2197
      %2465 = vst.msk [vmem:[%s231 + $0x60] sm:$0xff] %vm379, %v2202
      %2466 = vst.msk [vmem:[%s231 + $0x68] sm:$0xff] %vm379, %v2205
      %2467 = vst.msk [vmem:[%s231 + $0x70] sm:$0xff] %vm379, %v2210
      %2468 = vst.msk [vmem:[%s231 + $0x78] sm:$0xff] %vm379, %v2213
      %2469 = vst.msk [vmem:[%s231 + $0x80] sm:$0xff] %vm379, %v2218
      %2470 = vst.msk [vmem:[%s231 + $0x88] sm:$0xff] %vm379, %v2221
      %2471 = vst.msk [vmem:[%s231 + $0x90] sm:$0xff] %vm379, %v2226
      %2472 = vst.msk [vmem:[%s231 + $0x98] sm:$0xff] %vm379, %v2229
      %2473 = vst.msk [vmem:[%s231 + $0xa0] sm:$0xff] %vm379, %v2234
      %2474 = vst.msk [vmem:[%s231 + $0xa8] sm:$0xff] %vm379, %v2237
      %2475 = vst.msk [vmem:[%s231 + $0xb0] sm:$0xff] %vm379, %v2242
      %2476 = vst.msk [vmem:[%s231 + $0xb8] sm:$0xff] %vm379, %v2245
      %2477 = vst.msk [vmem:[%s231 + $0xc0] sm:$0xff] %vm379, %v2250
      %2478 = vst.msk [vmem:[%s231 + $0xc8] sm:$0xff] %vm379, %v2253
      %2479 = vst.msk [vmem:[%s231 + $0xd0] sm:$0xff] %vm379, %v2258
      %2480 = vst.msk [vmem:[%s231 + $0xd8] sm:$0xff] %vm379, %v2261
      %2481 = vst.msk [vmem:[%s231 + $0xe0] sm:$0xff] %vm379, %v2266
      %2482 = vst.msk [vmem:[%s231 + $0xe8] sm:$0xff] %vm379, %v2269
      %2483 = vst.msk [vmem:[%s231 + $0xf0] sm:$0xff] %vm379, %v2274
      %2484 = vst.msk [vmem:[%s231 + $0xf8] sm:$0xff] %vm379, %v2277
      %p2485 = scmp.lt.s32.totalorder %s17, 1
      %s2486 = scalar_select %p2485, %s17, 1
      %s2487 = smul.addr %s2486, 32
      %s2488 = smul.addr %s2487, 8
      %s2489 = scalar_lea.vmem %s4, %s2488
      %p2490 = scmp.lt.s32.totalorder %s17, 1
      %s2491 = scalar_select %p2490, %s17, 1
      %s2492 = smul.addr %s2491, 2
      %s2493 = scalar_lea.vmem %s5, %s2492
      // Predicated region
      $region37: #{bottleneck_pallas.5} parent=35 // pred_check
        %p2494 = pneg %p124
      $region38: #{bottleneck_pallas.5} parent=35 // pred_check_branch
        %2496 = sbr.rel (%p2494) target = $region40
      $region39: #{bottleneck_pallas.5} parent=35 // pred_region
        _
      $region40: #{bottleneck_pallas.5} parent=35 // pred_fallthru
        _
      // Predicated region
      $region41: #{bottleneck_pallas.5} parent=35 // pred_check
        %p2497 = pneg %p150
      $region42: #{bottleneck_pallas.5} parent=35 // pred_check_branch
        %2499 = sbr.rel (%p2497) target = $region44
      $region43: #{bottleneck_pallas.5} parent=35 // pred_region
        _
      $region44: #{bottleneck_pallas.5} parent=35 // pred_fallthru
        _
    $region36: #{bottleneck_pallas.5} parent=5 // pred_fallthru
      _
    %p2500 = scmp.le.s32.totalorder 2, %s12
    // Predicated region
    $region45: #{bottleneck_pallas.5} parent=5 // pred_check
      %p2501 = pneg %p2500
    $region46: #{bottleneck_pallas.5} parent=5 // pred_check_branch
      %2503 = sbr.rel (%p2501) target = $region48
    $region47: #{bottleneck_pallas.5} parent=5 // pred_region
      %s2504 = ssub.s32 %s12, 2
      // Predicated region
      $region49: #{bottleneck_pallas.5} parent=47 // pred_check
        %p2505 = pneg %p130
      $region50: #{bottleneck_pallas.5} parent=47 // pred_check_branch
        %2507 = sbr.rel (%p2505) target = $region52
      $region51: #{bottleneck_pallas.5} parent=47 // pred_region
        %p2508 = scmp.lt.s32.totalorder %s18, 1
        %s2509 = scalar_select %p2508, %s18, 1
        %s2510 = smul.addr %s2509, 32
        %s2511 = smul.addr %s2510, 8
        %s2512 = scalar_lea.vmem %s4, %s2511
      $region52: #{bottleneck_pallas.5} parent=47 // pred_fallthru
        _
      // Predicated region
      $region53: #{bottleneck_pallas.5} parent=47 // pred_check
        %p2513 = pneg %p156
      $region54: #{bottleneck_pallas.5} parent=47 // pred_check_branch
        %2515 = sbr.rel (%p2513) target = $region56
      $region55: #{bottleneck_pallas.5} parent=47 // pred_region
        %p2516 = scmp.lt.s32.totalorder %s18, 1
        %s2517 = scalar_select %p2516, %s18, 1
        %s2518 = smul.addr %s2517, 2
        %s2519 = scalar_lea.vmem %s5, %s2518
      $region56: #{bottleneck_pallas.5} parent=47 // pred_fallthru
        _
    $region48: #{bottleneck_pallas.5} parent=5 // pred_fallthru
      _
  $region6: #{bottleneck_pallas.5} parent=0 // loop_footer
    %s16 = sadd.s32 1, %s12
  $region7: #{bottleneck_pallas.5} parent=0 // loop_footer_branch
    %11 = sbr.rel target = $region3
  $region8: #{bottleneck_pallas.5} parent=0 // loop_exit
    _

</llo_original>
